<compile_context>
chip_gen: v6e
topology: v6e:2x2x1
jax: 0.10.0
libtpu: 0.0.40
codegen_flags: <defaults>
</compile_context>

<pallas_src>
import functools

import numpy as np
import jax
import jax.numpy as jnp
from jax.experimental import pallas as pl
from jax.experimental.pallas import tpu as pltpu

NZ = 16      # nz
NGF = 8      # ngf
BATCH = 2
BN_EPS = 1e-5

LAYER_CFG = [
    # (Cin, Cout, kernel, stride, padding) — matches the nn.Sequential.
    (NZ,      NGF * 8, 4, 1, 0),
    (NGF * 8, NGF * 4, 4, 2, 1),
    (NGF * 4, NGF * 2, 4, 2, 1),
    (NGF * 2, NGF,     4, 2, 1),
    (NGF,     64,      4, 2, 1),
]


# ----------------------------- Pallas kernel --------------------------------

def _generator_kernel(x_ref,
                      m1, s1, e1, m2, s2, e2, m3, s3, e3, m4, s4, e4,
                      m5_ref, o_ref, h_scratch, *, inv_ns):
    """Fused DCGAN generator: 4x [convT+BN+ReLU] once, then gridded convT+tanh."""

    def convT_bn_relu(x, m_ref, s_ref, e_ref, inv_n):
        # ConvTranspose1d as a dense matmul on the channel-major flattened
        # activation; bf16 operands, f32 MXU accumulation.
        y = jnp.dot(x.astype(jnp.bfloat16), m_ref[...],
                    preferred_element_type=jnp.float32)            # (B, C*L)
        cl = y.shape[1]
        c = s_ref.shape[1]

        # Per-channel batch statistics with ONE indicator matmul: stack the
        # batch-summed y and y*y rows into (2, C*L) and hit S once.
        yb = jnp.sum(y, axis=0, keepdims=True)                     # (1, C*L)
        y2b = jnp.sum(y * y, axis=0, keepdims=True)                # (1, C*L)
        row0 = jax.lax.broadcasted_iota(jnp.int32, (2, cl), 0) == 0
        stats = jnp.where(row0, yb, y2b)                           # (2, C*L)
        sums = jnp.dot(stats, s_ref[...],
                       preferred_element_type=jnp.float32)         # (2, C)
        mean = sums[0:1] * inv_n                                   # (1, C)
        ex2 = sums[1:2] * inv_n                                    # (1, C)
        # Clamp: E[y^2] - mean^2 can go slightly negative from cancellation.
        var = jnp.maximum(ex2 - mean * mean, 0.0)

        # BN affine init (gamma=1, beta=0) folded away.
        scale = jax.lax.rsqrt(var + BN_EPS)                        # (1, C)
        shift = -mean * scale                                      # (1, C)

        # Broadcast per-channel scale/shift back to C*L lanes with ONE dot.
        srow0 = jax.lax.broadcasted_iota(jnp.int32, (2, c), 0) == 0
        ss = jnp.where(srow0, scale, shift)                        # (2, C)
        ss_full = jnp.dot(ss, e_ref[...],
                          preferred_element_type=jnp.float32)      # (2, C*L)
        return jnp.maximum(y * ss_full[0:1] + ss_full[1:2], 0.0)

    # Layers 1-4 run once; result persists in VMEM scratch across the grid.
    @pl.when(pl.program_id(0) == 0)
    def _():
        h = x_ref[...]                                             # (B, NZ)
        h = convT_bn_relu(h, m1, s1, e1, inv_ns[0])
        h = convT_bn_relu(h, m2, s2, e2, inv_ns[1])
        h = convT_bn_relu(h, m3, s3, e3, inv_ns[2])
        h = convT_bn_relu(h, m4, s4, e4, inv_ns[3])
        h_scratch[...] = h.astype(jnp.bfloat16)                    # (B, 256)

    # Layer 5: one (B, 256) @ (256, TN) column block per grid step, then tanh.
    y5 = jnp.dot(h_scratch[...], m5_ref[...],
                 preferred_element_type=jnp.float32)               # (B, TN)
    o_ref[...] = jnp.tanh(y5)


# --------------------------- Parameter / glue setup --------------------------

def build_convT_matrix(w, lin, stride, pad):
    """ConvTranspose1d weights (Cin, Cout, K) -> dense (Cin*Lin, Cout*Lout).

    out[b, co, lo] = sum_{ci, li, k : lo = li*stride - pad + k} x[b, ci, li] * w[ci, co, k]
    """
    cin, cout, k = w.shape
    lout = (lin - 1) * stride - 2 * pad + k
    m = np.zeros((cin * lin, cout * lout), dtype=np.float32)
    for li in range(lin):
        for kk in range(k):
            lo = li * stride - pad + kk
            if 0 <= lo < lout:
                rows = np.arange(cin) * lin + li
                cols = np.arange(cout) * lout + lo
                m[np.ix_(rows, cols)] += w[:, :, kk]
    return m, lout


def build_pool_matrices(cout, lout):
    """S: (Cout*Lout, Cout) per-channel sum; E: (Cout, Cout*Lout) expand."""
    s = np.zeros((cout * lout, cout), dtype=np.float32)
    e = np.zeros((cout, cout * lout), dtype=np.float32)
    for c in range(cout):
        s[c * lout:(c + 1) * lout, c] = 1.0
        e[c, c * lout:(c + 1) * lout] = 1.0
    return s, e


def build_generator(weights, layer_cfg, batch, lin0=1, tn=512):
    """Builds constant matrices ONCE and returns (jitted forward, device operands)."""
    prefix_ops = []          # m1, s1, e1, ..., m4, s4, e4
    inv_ns = []
    lin = lin0
    m5 = None
    for i, ((cin, cout, k, st, p), w) in enumerate(zip(layer_cfg, weights)):
        m_np, lout = build_convT_matrix(np.asarray(w, dtype=np.float32), lin, st, p)
        m = jnp.asarray(m_np, dtype=jnp.bfloat16)   # bf16 weights, f32 accumulation
        if i < len(layer_cfg) - 1:
            s_np, e_np = build_pool_matrices(cout, lout)
            prefix_ops += [m, jnp.asarray(s_np), jnp.asarray(e_np)]
            inv_ns.append(1.0 / float(batch * lout))   # BN stats over B*Lout
        else:
            m5 = m
        lin = lout
    cout_last, lout_last = layer_cfg[-1][1], lin
    ncols = cout_last * lout_last                    # 64 * 64 = 4096
    k5 = m5.shape[0]                                 # Cin*Lin of layer 5 = 256
    assert ncols % tn == 0 and tn % 128 == 0
    grid = (ncols // tn,)

    kernel = functools.partial(_generator_kernel, inv_ns=tuple(inv_ns))

    x_shape = (batch, layer_cfg[0][0] * lin0)
    # Prefix operands: full-array blocks with a constant index map -> DMA'd
    # once (block index never changes), resident in VMEM for the whole grid.
    in_specs = [pl.BlockSpec(x_shape, lambda j: (0, 0))]
    in_specs += [pl.BlockSpec(op.shape, lambda j: (0, 0)) for op in prefix_ops]
    # Layer-5 weight: streamed / double-buffered in 512-column blocks.
    in_specs += [pl.BlockSpec((k5, tn), lambda j: (0, j))]

    fused = pl.pallas_call(
        kernel,
        out_shape=jax.ShapeDtypeStruct((batch, ncols), jnp.float32),
        grid_spec=pltpu.PrefetchScalarGridSpec(
            num_scalar_prefetch=0,
            grid=grid,
            in_specs=in_specs,
            out_specs=pl.BlockSpec((batch, tn), lambda j: (0, j)),
            scratch_shapes=[pltpu.VMEM((batch, k5), jnp.bfloat16)],
        ),
        compiler_params=pltpu.CompilerParams(
            dimension_semantics=("arbitrary",),        # scratch carries across j
            vmem_limit_bytes=8 * 1024 * 1024,
        ),
    )
    # TODO(synk): on v7x, a ("parallel",) column grid would shard blocks across
    # both TensorCores, but the layer-1..4 prefix would then need per-core
    # (re)computation; kept sequential so the prefix runs exactly once.

    operands = prefix_ops + [m5]

    @jax.jit
    def forward(z, ops):
        x = z.reshape(z.shape[0], -1)                 # channel-major flatten (L=1)
        flat = fused(x, *ops)                         # (B, 4096)
        return flat.reshape(z.shape[0], cout_last, lout_last)   # NCL

    return forward, operands


if __name__ == "__main__":
    key = jax.random.PRNGKey(0)
    keys = jax.random.split(key, 6)

    # Deterministic weight init (DCGAN-style N(0, 0.02)); PyTorch ConvTranspose1d
    # weight shape is (in_channels, out_channels, kernel).
    weights = []
    for i, (cin, cout, k, _, _) in enumerate(LAYER_CFG):
        w = 0.02 * jax.random.normal(keys[i + 1], (cin, cout, k), dtype=jnp.float32)
        weights.append(w)

    # Build constant matrices once; forward is jitted and reuses them.
    forward, operands = build_generator(weights, LAYER_CFG, BATCH, lin0=1)

    # Latent input z: (B, nz, 1), NCL layout as in DCGAN.
    z = jax.random.normal(keys[0], (BATCH, NZ, 1), dtype=jnp.float32)

    out = forward(z, operands)                        # (2, 64, 64) NCL
    jax.block_until_ready(out)

    assert out.shape == (BATCH, 64, 64), out.shape
    assert bool(jnp.all(jnp.isfinite(out)))
    print("KERNEL_OK")
</pallas_src>

<mosaic_0001>
module attributes {stable_mosaic.version = 11 : i64} {
  func.func @_generator_kernel(%arg0: i32, %arg1: memref<2x16xf32, #tpu.memory_space<vmem>>, %arg2: memref<16x256xbf16, #tpu.memory_space<vmem>>, %arg3: memref<256x64xf32, #tpu.memory_space<vmem>>, %arg4: memref<64x256xf32, #tpu.memory_space<vmem>>, %arg5: memref<256x256xbf16, #tpu.memory_space<vmem>>, %arg6: memref<256x32xf32, #tpu.memory_space<vmem>>, %arg7: memref<32x256xf32, #tpu.memory_space<vmem>>, %arg8: memref<256x256xbf16, #tpu.memory_space<vmem>>, %arg9: memref<256x16xf32, #tpu.memory_space<vmem>>, %arg10: memref<16x256xf32, #tpu.memory_space<vmem>>, %arg11: memref<256x256xbf16, #tpu.memory_space<vmem>>, %arg12: memref<256x8xf32, #tpu.memory_space<vmem>>, %arg13: memref<8x256xf32, #tpu.memory_space<vmem>>, %arg14: memref<256x512xbf16, #tpu.memory_space<vmem>>, %arg15: memref<2x512xf32, #tpu.memory_space<vmem>>, %arg16: memref<2x256xbf16, #tpu.memory_space<vmem>>) attributes {dimension_semantics = [#tpu.dimension_semantics<arbitrary>], iteration_bounds = array<i64: 8>, scalar_prefetch = 0 : i64, scratch_operands = 1 : i64, tpu.core_type = #tpu.core_type<tc>, window_params = [{pipeline_mode = #tpu.pipeline_mode<synchronous>, transform_indices = @transform_0, window_bounds = array<i64: 2, 16>}, {pipeline_mode = #tpu.pipeline_mode<synchronous>, transform_indices = @transform_1, window_bounds = array<i64: 16, 256>}, {pipeline_mode = #tpu.pipeline_mode<synchronous>, transform_indices = @transform_2, window_bounds = array<i64: 256, 64>}, {pipeline_mode = #tpu.pipeline_mode<synchronous>, transform_indices = @transform_3, window_bounds = array<i64: 64, 256>}, {pipeline_mode = #tpu.pipeline_mode<synchronous>, transform_indices = @transform_4, window_bounds = array<i64: 256, 256>}, {pipeline_mode = #tpu.pipeline_mode<synchronous>, transform_indices = @transform_5, window_bounds = array<i64: 256, 32>}, {pipeline_mode = #tpu.pipeline_mode<synchronous>, transform_indices = @transform_6, window_bounds = array<i64: 32, 256>}, {pipeline_mode = #tpu.pipeline_mode<synchronous>, transform_indices = @transform_7, window_bounds = array<i64: 256, 256>}, {pipeline_mode = #tpu.pipeline_mode<synchronous>, transform_indices = @transform_8, window_bounds = array<i64: 256, 16>}, {pipeline_mode = #tpu.pipeline_mode<synchronous>, transform_indices = @transform_9, window_bounds = array<i64: 16, 256>}, {pipeline_mode = #tpu.pipeline_mode<synchronous>, transform_indices = @transform_10, window_bounds = array<i64: 256, 256>}, {pipeline_mode = #tpu.pipeline_mode<synchronous>, transform_indices = @transform_11, window_bounds = array<i64: 256, 8>}, {pipeline_mode = #tpu.pipeline_mode<synchronous>, transform_indices = @transform_12, window_bounds = array<i64: 8, 256>}, {transform_indices = @transform_13, window_bounds = array<i64: 256, 512>}, {transform_indices = @transform_14, window_bounds = array<i64: 2, 512>}]} {
    %c0_i32 = arith.constant 0 : i32
    %0 = arith.cmpi eq, %arg0, %c0_i32 : i32
    %1 = arith.extui %0 : i1 to i32
    %c0_i32_0 = arith.constant 0 : i32
    %2 = arith.cmpi ne, %1, %c0_i32_0 : i32
    scf.if %2 {
      %c0_6 = arith.constant 0 : index
      %c0_7 = arith.constant 0 : index
      %8 = vector.load %arg1[%c0_6, %c0_7] : memref<2x16xf32, #tpu.memory_space<vmem>>, vector<2x16xf32>
      %9 = arith.truncf %8 : vector<2x16xf32> to vector<2x16xbf16>
      %c0_8 = arith.constant 0 : index
      %c0_9 = arith.constant 0 : index
      %10 = vector.load %arg2[%c0_8, %c0_9] : memref<16x256xbf16, #tpu.memory_space<vmem>>, vector<16x256xbf16>
      %cst_10 = arith.constant dense<0.000000e+00> : vector<2x256xf32>
      %11 = tpu.matmul %9, %10, %cst_10 {dimension_numbers = #tpu.dot_dimension_numbers<[1], [0], [0], [1], [0, 0, 1, 1], [], []>} : vector<2x16xbf16>, vector<16x256xbf16>, vector<2x256xf32> -> vector<2x256xf32>
      %cst_11 = arith.constant dense<0.000000e+00> : vector<256xf32>
      %12 = vector.multi_reduction <add>, %11, %cst_11 [0] : vector<2x256xf32> to vector<256xf32>
      %13 = vector.shape_cast %12 : vector<256xf32> to vector<1x256xf32>
      %14 = arith.mulf %11, %11 : vector<2x256xf32>
      %cst_12 = arith.constant dense<0.000000e+00> : vector<256xf32>
      %15 = vector.multi_reduction <add>, %14, %cst_12 [0] : vector<2x256xf32> to vector<256xf32>
      %16 = vector.shape_cast %15 : vector<256xf32> to vector<1x256xf32>
      %17 = tpu.iota {dimensions = array<i32: 0>} : vector<2x256xi32>
      %c0_i32_13 = arith.constant 0 : i32
      %18 = vector.broadcast %c0_i32_13 : i32 to vector<2x256xi32>
      %19 = arith.cmpi eq, %17, %18 : vector<2x256xi32>
      %20 = vector.shape_cast %13 : vector<1x256xf32> to vector<1x256xf32>
      %21 = vector.broadcast %20 : vector<1x256xf32> to vector<2x256xf32>
      %22 = vector.shape_cast %16 : vector<1x256xf32> to vector<1x256xf32>
      %23 = vector.broadcast %22 : vector<1x256xf32> to vector<2x256xf32>
      %24 = arith.select %19, %21, %23 : vector<2x256xi1>, vector<2x256xf32>
      %c0_14 = arith.constant 0 : index
      %c0_15 = arith.constant 0 : index
      %25 = vector.load %arg3[%c0_14, %c0_15] : memref<256x64xf32, #tpu.memory_space<vmem>>, vector<256x64xf32>
      %cst_16 = arith.constant dense<0.000000e+00> : vector<2x64xf32>
      %26 = tpu.matmul %24, %25, %cst_16 {dimension_numbers = #tpu.dot_dimension_numbers<[1], [0], [0], [1], [0, 0, 1, 1], [], []>} : vector<2x256xf32>, vector<256x64xf32>, vector<2x64xf32> -> vector<2x64xf32>
      %27 = vector.extract_strided_slice %26 {offsets = [0, 0], sizes = [1, 64], strides = [1, 1]} : vector<2x64xf32> to vector<1x64xf32>
      %cst_17 = arith.constant 1.250000e-01 : f32
      %28 = vector.broadcast %cst_17 : f32 to vector<1x64xf32>
      %29 = arith.mulf %27, %28 : vector<1x64xf32>
      %30 = vector.extract_strided_slice %26 {offsets = [1, 0], sizes = [1, 64], strides = [1, 1]} : vector<2x64xf32> to vector<1x64xf32>
      %cst_18 = arith.constant 1.250000e-01 : f32
      %31 = vector.broadcast %cst_18 : f32 to vector<1x64xf32>
      %32 = arith.mulf %30, %31 : vector<1x64xf32>
      %33 = arith.mulf %29, %29 : vector<1x64xf32>
      %34 = arith.subf %32, %33 : vector<1x64xf32>
      %cst_19 = arith.constant 0.000000e+00 : f32
      %35 = vector.broadcast %cst_19 : f32 to vector<1x64xf32>
      %36 = arith.maximumf %34, %35 : vector<1x64xf32>
      %cst_20 = arith.constant 9.99999974E-6 : f32
      %37 = vector.broadcast %cst_20 : f32 to vector<1x64xf32>
      %38 = arith.addf %36, %37 : vector<1x64xf32>
      %39 = math.rsqrt %38 : vector<1x64xf32>
      %cst_21 = arith.constant 0.000000e+00 : f32
      %40 = vector.broadcast %cst_21 : f32 to vector<1x64xf32>
      %41 = arith.subf %40, %29 : vector<1x64xf32>
      %42 = arith.mulf %41, %39 : vector<1x64xf32>
      %43 = tpu.iota {dimensions = array<i32: 0>} : vector<2x64xi32>
      %c0_i32_22 = arith.constant 0 : i32
      %44 = vector.broadcast %c0_i32_22 : i32 to vector<2x64xi32>
      %45 = arith.cmpi eq, %43, %44 : vector<2x64xi32>
      %46 = vector.shape_cast %39 : vector<1x64xf32> to vector<1x64xf32>
      %47 = vector.broadcast %46 : vector<1x64xf32> to vector<2x64xf32>
      %48 = vector.shape_cast %42 : vector<1x64xf32> to vector<1x64xf32>
      %49 = vector.broadcast %48 : vector<1x64xf32> to vector<2x64xf32>
      %50 = arith.select %45, %47, %49 : vector<2x64xi1>, vector<2x64xf32>
      %c0_23 = arith.constant 0 : index
      %c0_24 = arith.constant 0 : index
      %51 = vector.load %arg4[%c0_23, %c0_24] : memref<64x256xf32, #tpu.memory_space<vmem>>, vector<64x256xf32>
      %cst_25 = arith.constant dense<0.000000e+00> : vector<2x256xf32>
      %52 = tpu.matmul %50, %51, %cst_25 {dimension_numbers = #tpu.dot_dimension_numbers<[1], [0], [0], [1], [0, 0, 1, 1], [], []>} : vector<2x64xf32>, vector<64x256xf32>, vector<2x256xf32> -> vector<2x256xf32>
      %53 = vector.extract_strided_slice %52 {offsets = [0, 0], sizes = [1, 256], strides = [1, 1]} : vector<2x256xf32> to vector<1x256xf32>
      %54 = vector.broadcast %53 : vector<1x256xf32> to vector<2x256xf32>
      %55 = arith.mulf %11, %54 : vector<2x256xf32>
      %56 = vector.extract_strided_slice %52 {offsets = [1, 0], sizes = [1, 256], strides = [1, 1]} : vector<2x256xf32> to vector<1x256xf32>
      %57 = vector.broadcast %56 : vector<1x256xf32> to vector<2x256xf32>
      %58 = arith.addf %55, %57 : vector<2x256xf32>
      %cst_26 = arith.constant 0.000000e+00 : f32
      %59 = vector.broadcast %cst_26 : f32 to vector<2x256xf32>
      %60 = arith.maximumf %58, %59 : vector<2x256xf32>
      %61 = arith.truncf %60 : vector<2x256xf32> to vector<2x256xbf16>
      %c0_27 = arith.constant 0 : index
      %c0_28 = arith.constant 0 : index
      %62 = vector.load %arg5[%c0_27, %c0_28] : memref<256x256xbf16, #tpu.memory_space<vmem>>, vector<256x256xbf16>
      %cst_29 = arith.constant dense<0.000000e+00> : vector<2x256xf32>
      %63 = tpu.matmul %61, %62, %cst_29 {dimension_numbers = #tpu.dot_dimension_numbers<[1], [0], [0], [1], [0, 0, 1, 1], [], []>} : vector<2x256xbf16>, vector<256x256xbf16>, vector<2x256xf32> -> vector<2x256xf32>
      %cst_30 = arith.constant dense<0.000000e+00> : vector<256xf32>
      %64 = vector.multi_reduction <add>, %63, %cst_30 [0] : vector<2x256xf32> to vector<256xf32>
      %65 = vector.shape_cast %64 : vector<256xf32> to vector<1x256xf32>
      %66 = arith.mulf %63, %63 : vector<2x256xf32>
      %cst_31 = arith.constant dense<0.000000e+00> : vector<256xf32>
      %67 = vector.multi_reduction <add>, %66, %cst_31 [0] : vector<2x256xf32> to vector<256xf32>
      %68 = vector.shape_cast %67 : vector<256xf32> to vector<1x256xf32>
      %69 = tpu.iota {dimensions = array<i32: 0>} : vector<2x256xi32>
      %c0_i32_32 = arith.constant 0 : i32
      %70 = vector.broadcast %c0_i32_32 : i32 to vector<2x256xi32>
      %71 = arith.cmpi eq, %69, %70 : vector<2x256xi32>
      %72 = vector.shape_cast %65 : vector<1x256xf32> to vector<1x256xf32>
      %73 = vector.broadcast %72 : vector<1x256xf32> to vector<2x256xf32>
      %74 = vector.shape_cast %68 : vector<1x256xf32> to vector<1x256xf32>
      %75 = vector.broadcast %74 : vector<1x256xf32> to vector<2x256xf32>
      %76 = arith.select %71, %73, %75 : vector<2x256xi1>, vector<2x256xf32>
      %c0_33 = arith.constant 0 : index
      %c0_34 = arith.constant 0 : index
      %77 = vector.load %arg6[%c0_33, %c0_34] : memref<256x32xf32, #tpu.memory_space<vmem>>, vector<256x32xf32>
      %cst_35 = arith.constant dense<0.000000e+00> : vector<2x32xf32>
      %78 = tpu.matmul %76, %77, %cst_35 {dimension_numbers = #tpu.dot_dimension_numbers<[1], [0], [0], [1], [0, 0, 1, 1], [], []>} : vector<2x256xf32>, vector<256x32xf32>, vector<2x32xf32> -> vector<2x32xf32>
      %79 = vector.extract_strided_slice %78 {offsets = [0, 0], sizes = [1, 32], strides = [1, 1]} : vector<2x32xf32> to vector<1x32xf32>
      %cst_36 = arith.constant 6.250000e-02 : f32
      %80 = vector.broadcast %cst_36 : f32 to vector<1x32xf32>
      %81 = arith.mulf %79, %80 : vector<1x32xf32>
      %82 = vector.extract_strided_slice %78 {offsets = [1, 0], sizes = [1, 32], strides = [1, 1]} : vector<2x32xf32> to vector<1x32xf32>
      %cst_37 = arith.constant 6.250000e-02 : f32
      %83 = vector.broadcast %cst_37 : f32 to vector<1x32xf32>
      %84 = arith.mulf %82, %83 : vector<1x32xf32>
      %85 = arith.mulf %81, %81 : vector<1x32xf32>
      %86 = arith.subf %84, %85 : vector<1x32xf32>
      %cst_38 = arith.constant 0.000000e+00 : f32
      %87 = vector.broadcast %cst_38 : f32 to vector<1x32xf32>
      %88 = arith.maximumf %86, %87 : vector<1x32xf32>
      %cst_39 = arith.constant 9.99999974E-6 : f32
      %89 = vector.broadcast %cst_39 : f32 to vector<1x32xf32>
      %90 = arith.addf %88, %89 : vector<1x32xf32>
      %91 = math.rsqrt %90 : vector<1x32xf32>
      %cst_40 = arith.constant 0.000000e+00 : f32
      %92 = vector.broadcast %cst_40 : f32 to vector<1x32xf32>
      %93 = arith.subf %92, %81 : vector<1x32xf32>
      %94 = arith.mulf %93, %91 : vector<1x32xf32>
      %95 = tpu.iota {dimensions = array<i32: 0>} : vector<2x32xi32>
      %c0_i32_41 = arith.constant 0 : i32
      %96 = vector.broadcast %c0_i32_41 : i32 to vector<2x32xi32>
      %97 = arith.cmpi eq, %95, %96 : vector<2x32xi32>
      %98 = vector.shape_cast %91 : vector<1x32xf32> to vector<1x32xf32>
      %99 = vector.broadcast %98 : vector<1x32xf32> to vector<2x32xf32>
      %100 = vector.shape_cast %94 : vector<1x32xf32> to vector<1x32xf32>
      %101 = vector.broadcast %100 : vector<1x32xf32> to vector<2x32xf32>
      %102 = arith.select %97, %99, %101 : vector<2x32xi1>, vector<2x32xf32>
      %c0_42 = arith.constant 0 : index
      %c0_43 = arith.constant 0 : index
      %103 = vector.load %arg7[%c0_42, %c0_43] : memref<32x256xf32, #tpu.memory_space<vmem>>, vector<32x256xf32>
      %cst_44 = arith.constant dense<0.000000e+00> : vector<2x256xf32>
      %104 = tpu.matmul %102, %103, %cst_44 {dimension_numbers = #tpu.dot_dimension_numbers<[1], [0], [0], [1], [0, 0, 1, 1], [], []>} : vector<2x32xf32>, vector<32x256xf32>, vector<2x256xf32> -> vector<2x256xf32>
      %105 = vector.extract_strided_slice %104 {offsets = [0, 0], sizes = [1, 256], strides = [1, 1]} : vector<2x256xf32> to vector<1x256xf32>
      %106 = vector.broadcast %105 : vector<1x256xf32> to vector<2x256xf32>
      %107 = arith.mulf %63, %106 : vector<2x256xf32>
      %108 = vector.extract_strided_slice %104 {offsets = [1, 0], sizes = [1, 256], strides = [1, 1]} : vector<2x256xf32> to vector<1x256xf32>
      %109 = vector.broadcast %108 : vector<1x256xf32> to vector<2x256xf32>
      %110 = arith.addf %107, %109 : vector<2x256xf32>
      %cst_45 = arith.constant 0.000000e+00 : f32
      %111 = vector.broadcast %cst_45 : f32 to vector<2x256xf32>
      %112 = arith.maximumf %110, %111 : vector<2x256xf32>
      %113 = arith.truncf %112 : vector<2x256xf32> to vector<2x256xbf16>
      %c0_46 = arith.constant 0 : index
      %c0_47 = arith.constant 0 : index
      %114 = vector.load %arg8[%c0_46, %c0_47] : memref<256x256xbf16, #tpu.memory_space<vmem>>, vector<256x256xbf16>
      %cst_48 = arith.constant dense<0.000000e+00> : vector<2x256xf32>
      %115 = tpu.matmul %113, %114, %cst_48 {dimension_numbers = #tpu.dot_dimension_numbers<[1], [0], [0], [1], [0, 0, 1, 1], [], []>} : vector<2x256xbf16>, vector<256x256xbf16>, vector<2x256xf32> -> vector<2x256xf32>
      %cst_49 = arith.constant dense<0.000000e+00> : vector<256xf32>
      %116 = vector.multi_reduction <add>, %115, %cst_49 [0] : vector<2x256xf32> to vector<256xf32>
      %117 = vector.shape_cast %116 : vector<256xf32> to vector<1x256xf32>
      %118 = arith.mulf %115, %115 : vector<2x256xf32>
      %cst_50 = arith.constant dense<0.000000e+00> : vector<256xf32>
      %119 = vector.multi_reduction <add>, %118, %cst_50 [0] : vector<2x256xf32> to vector<256xf32>
      %120 = vector.shape_cast %119 : vector<256xf32> to vector<1x256xf32>
      %121 = tpu.iota {dimensions = array<i32: 0>} : vector<2x256xi32>
      %c0_i32_51 = arith.constant 0 : i32
      %122 = vector.broadcast %c0_i32_51 : i32 to vector<2x256xi32>
      %123 = arith.cmpi eq, %121, %122 : vector<2x256xi32>
      %124 = vector.shape_cast %117 : vector<1x256xf32> to vector<1x256xf32>
      %125 = vector.broadcast %124 : vector<1x256xf32> to vector<2x256xf32>
      %126 = vector.shape_cast %120 : vector<1x256xf32> to vector<1x256xf32>
      %127 = vector.broadcast %126 : vector<1x256xf32> to vector<2x256xf32>
      %128 = arith.select %123, %125, %127 : vector<2x256xi1>, vector<2x256xf32>
      %c0_52 = arith.constant 0 : index
      %c0_53 = arith.constant 0 : index
      %129 = vector.load %arg9[%c0_52, %c0_53] : memref<256x16xf32, #tpu.memory_space<vmem>>, vector<256x16xf32>
      %cst_54 = arith.constant dense<0.000000e+00> : vector<2x16xf32>
      %130 = tpu.matmul %128, %129, %cst_54 {dimension_numbers = #tpu.dot_dimension_numbers<[1], [0], [0], [1], [0, 0, 1, 1], [], []>} : vector<2x256xf32>, vector<256x16xf32>, vector<2x16xf32> -> vector<2x16xf32>
      %131 = vector.extract_strided_slice %130 {offsets = [0, 0], sizes = [1, 16], strides = [1, 1]} : vector<2x16xf32> to vector<1x16xf32>
      %cst_55 = arith.constant 3.125000e-02 : f32
      %132 = vector.broadcast %cst_55 : f32 to vector<1x16xf32>
      %133 = arith.mulf %131, %132 : vector<1x16xf32>
      %134 = vector.extract_strided_slice %130 {offsets = [1, 0], sizes = [1, 16], strides = [1, 1]} : vector<2x16xf32> to vector<1x16xf32>
      %cst_56 = arith.constant 3.125000e-02 : f32
      %135 = vector.broadcast %cst_56 : f32 to vector<1x16xf32>
      %136 = arith.mulf %134, %135 : vector<1x16xf32>
      %137 = arith.mulf %133, %133 : vector<1x16xf32>
      %138 = arith.subf %136, %137 : vector<1x16xf32>
      %cst_57 = arith.constant 0.000000e+00 : f32
      %139 = vector.broadcast %cst_57 : f32 to vector<1x16xf32>
      %140 = arith.maximumf %138, %139 : vector<1x16xf32>
      %cst_58 = arith.constant 9.99999974E-6 : f32
      %141 = vector.broadcast %cst_58 : f32 to vector<1x16xf32>
      %142 = arith.addf %140, %141 : vector<1x16xf32>
      %143 = math.rsqrt %142 : vector<1x16xf32>
      %cst_59 = arith.constant 0.000000e+00 : f32
      %144 = vector.broadcast %cst_59 : f32 to vector<1x16xf32>
      %145 = arith.subf %144, %133 : vector<1x16xf32>
      %146 = arith.mulf %145, %143 : vector<1x16xf32>
      %147 = tpu.iota {dimensions = array<i32: 0>} : vector<2x16xi32>
      %c0_i32_60 = arith.constant 0 : i32
      %148 = vector.broadcast %c0_i32_60 : i32 to vector<2x16xi32>
      %149 = arith.cmpi eq, %147, %148 : vector<2x16xi32>
      %150 = vector.shape_cast %143 : vector<1x16xf32> to vector<1x16xf32>
      %151 = vector.broadcast %150 : vector<1x16xf32> to vector<2x16xf32>
      %152 = vector.shape_cast %146 : vector<1x16xf32> to vector<1x16xf32>
      %153 = vector.broadcast %152 : vector<1x16xf32> to vector<2x16xf32>
      %154 = arith.select %149, %151, %153 : vector<2x16xi1>, vector<2x16xf32>
      %c0_61 = arith.constant 0 : index
      %c0_62 = arith.constant 0 : index
      %155 = vector.load %arg10[%c0_61, %c0_62] : memref<16x256xf32, #tpu.memory_space<vmem>>, vector<16x256xf32>
      %cst_63 = arith.constant dense<0.000000e+00> : vector<2x256xf32>
      %156 = tpu.matmul %154, %155, %cst_63 {dimension_numbers = #tpu.dot_dimension_numbers<[1], [0], [0], [1], [0, 0, 1, 1], [], []>} : vector<2x16xf32>, vector<16x256xf32>, vector<2x256xf32> -> vector<2x256xf32>
      %157 = vector.extract_strided_slice %156 {offsets = [0, 0], sizes = [1, 256], strides = [1, 1]} : vector<2x256xf32> to vector<1x256xf32>
      %158 = vector.broadcast %157 : vector<1x256xf32> to vector<2x256xf32>
      %159 = arith.mulf %115, %158 : vector<2x256xf32>
      %160 = vector.extract_strided_slice %156 {offsets = [1, 0], sizes = [1, 256], strides = [1, 1]} : vector<2x256xf32> to vector<1x256xf32>
      %161 = vector.broadcast %160 : vector<1x256xf32> to vector<2x256xf32>
      %162 = arith.addf %159, %161 : vector<2x256xf32>
      %cst_64 = arith.constant 0.000000e+00 : f32
      %163 = vector.broadcast %cst_64 : f32 to vector<2x256xf32>
      %164 = arith.maximumf %162, %163 : vector<2x256xf32>
      %165 = arith.truncf %164 : vector<2x256xf32> to vector<2x256xbf16>
      %c0_65 = arith.constant 0 : index
      %c0_66 = arith.constant 0 : index
      %166 = vector.load %arg11[%c0_65, %c0_66] : memref<256x256xbf16, #tpu.memory_space<vmem>>, vector<256x256xbf16>
      %cst_67 = arith.constant dense<0.000000e+00> : vector<2x256xf32>
      %167 = tpu.matmul %165, %166, %cst_67 {dimension_numbers = #tpu.dot_dimension_numbers<[1], [0], [0], [1], [0, 0, 1, 1], [], []>} : vector<2x256xbf16>, vector<256x256xbf16>, vector<2x256xf32> -> vector<2x256xf32>
      %cst_68 = arith.constant dense<0.000000e+00> : vector<256xf32>
      %168 = vector.multi_reduction <add>, %167, %cst_68 [0] : vector<2x256xf32> to vector<256xf32>
      %169 = vector.shape_cast %168 : vector<256xf32> to vector<1x256xf32>
      %170 = arith.mulf %167, %167 : vector<2x256xf32>
      %cst_69 = arith.constant dense<0.000000e+00> : vector<256xf32>
      %171 = vector.multi_reduction <add>, %170, %cst_69 [0] : vector<2x256xf32> to vector<256xf32>
      %172 = vector.shape_cast %171 : vector<256xf32> to vector<1x256xf32>
      %173 = tpu.iota {dimensions = array<i32: 0>} : vector<2x256xi32>
      %c0_i32_70 = arith.constant 0 : i32
      %174 = vector.broadcast %c0_i32_70 : i32 to vector<2x256xi32>
      %175 = arith.cmpi eq, %173, %174 : vector<2x256xi32>
      %176 = vector.shape_cast %169 : vector<1x256xf32> to vector<1x256xf32>
      %177 = vector.broadcast %176 : vector<1x256xf32> to vector<2x256xf32>
      %178 = vector.shape_cast %172 : vector<1x256xf32> to vector<1x256xf32>
      %179 = vector.broadcast %178 : vector<1x256xf32> to vector<2x256xf32>
      %180 = arith.select %175, %177, %179 : vector<2x256xi1>, vector<2x256xf32>
      %c0_71 = arith.constant 0 : index
      %c0_72 = arith.constant 0 : index
      %181 = vector.load %arg12[%c0_71, %c0_72] : memref<256x8xf32, #tpu.memory_space<vmem>>, vector<256x8xf32>
      %cst_73 = arith.constant dense<0.000000e+00> : vector<2x8xf32>
      %182 = tpu.matmul %180, %181, %cst_73 {dimension_numbers = #tpu.dot_dimension_numbers<[1], [0], [0], [1], [0, 0, 1, 1], [], []>} : vector<2x256xf32>, vector<256x8xf32>, vector<2x8xf32> -> vector<2x8xf32>
      %183 = vector.extract_strided_slice %182 {offsets = [0, 0], sizes = [1, 8], strides = [1, 1]} : vector<2x8xf32> to vector<1x8xf32>
      %cst_74 = arith.constant 1.562500e-02 : f32
      %184 = vector.broadcast %cst_74 : f32 to vector<1x8xf32>
      %185 = arith.mulf %183, %184 : vector<1x8xf32>
      %186 = vector.extract_strided_slice %182 {offsets = [1, 0], sizes = [1, 8], strides = [1, 1]} : vector<2x8xf32> to vector<1x8xf32>
      %cst_75 = arith.constant 1.562500e-02 : f32
      %187 = vector.broadcast %cst_75 : f32 to vector<1x8xf32>
      %188 = arith.mulf %186, %187 : vector<1x8xf32>
      %189 = arith.mulf %185, %185 : vector<1x8xf32>
      %190 = arith.subf %188, %189 : vector<1x8xf32>
      %cst_76 = arith.constant 0.000000e+00 : f32
      %191 = vector.broadcast %cst_76 : f32 to vector<1x8xf32>
      %192 = arith.maximumf %190, %191 : vector<1x8xf32>
      %cst_77 = arith.constant 9.99999974E-6 : f32
      %193 = vector.broadcast %cst_77 : f32 to vector<1x8xf32>
      %194 = arith.addf %192, %193 : vector<1x8xf32>
      %195 = math.rsqrt %194 : vector<1x8xf32>
      %cst_78 = arith.constant 0.000000e+00 : f32
      %196 = vector.broadcast %cst_78 : f32 to vector<1x8xf32>
      %197 = arith.subf %196, %185 : vector<1x8xf32>
      %198 = arith.mulf %197, %195 : vector<1x8xf32>
      %199 = tpu.iota {dimensions = array<i32: 0>} : vector<2x8xi32>
      %c0_i32_79 = arith.constant 0 : i32
      %200 = vector.broadcast %c0_i32_79 : i32 to vector<2x8xi32>
      %201 = arith.cmpi eq, %199, %200 : vector<2x8xi32>
      %202 = vector.shape_cast %195 : vector<1x8xf32> to vector<1x8xf32>
      %203 = vector.broadcast %202 : vector<1x8xf32> to vector<2x8xf32>
      %204 = vector.shape_cast %198 : vector<1x8xf32> to vector<1x8xf32>
      %205 = vector.broadcast %204 : vector<1x8xf32> to vector<2x8xf32>
      %206 = arith.select %201, %203, %205 : vector<2x8xi1>, vector<2x8xf32>
      %c0_80 = arith.constant 0 : index
      %c0_81 = arith.constant 0 : index
      %207 = vector.load %arg13[%c0_80, %c0_81] : memref<8x256xf32, #tpu.memory_space<vmem>>, vector<8x256xf32>
      %cst_82 = arith.constant dense<0.000000e+00> : vector<2x256xf32>
      %208 = tpu.matmul %206, %207, %cst_82 {dimension_numbers = #tpu.dot_dimension_numbers<[1], [0], [0], [1], [0, 0, 1, 1], [], []>} : vector<2x8xf32>, vector<8x256xf32>, vector<2x256xf32> -> vector<2x256xf32>
      %209 = vector.extract_strided_slice %208 {offsets = [0, 0], sizes = [1, 256], strides = [1, 1]} : vector<2x256xf32> to vector<1x256xf32>
      %210 = vector.broadcast %209 : vector<1x256xf32> to vector<2x256xf32>
      %211 = arith.mulf %167, %210 : vector<2x256xf32>
      %212 = vector.extract_strided_slice %208 {offsets = [1, 0], sizes = [1, 256], strides = [1, 1]} : vector<2x256xf32> to vector<1x256xf32>
      %213 = vector.broadcast %212 : vector<1x256xf32> to vector<2x256xf32>
      %214 = arith.addf %211, %213 : vector<2x256xf32>
      %cst_83 = arith.constant 0.000000e+00 : f32
      %215 = vector.broadcast %cst_83 : f32 to vector<2x256xf32>
      %216 = arith.maximumf %214, %215 : vector<2x256xf32>
      %217 = arith.truncf %216 : vector<2x256xf32> to vector<2x256xbf16>
      %c0_84 = arith.constant 0 : index
      %c0_85 = arith.constant 0 : index
      %218 = vector.load %arg16[%c0_84, %c0_85] : memref<2x256xbf16, #tpu.memory_space<vmem>>, vector<2x256xbf16>
      tpu.vector_store %arg16[%c0_84, %c0_85], %217 {strides = array<i32>} : memref<2x256xbf16, #tpu.memory_space<vmem>>, vector<2x256xbf16>,
    } else {
    }
    %c0 = arith.constant 0 : index
    %c0_1 = arith.constant 0 : index
    %3 = vector.load %arg16[%c0, %c0_1] : memref<2x256xbf16, #tpu.memory_space<vmem>>, vector<2x256xbf16>
    %c0_2 = arith.constant 0 : index
    %c0_3 = arith.constant 0 : index
    %4 = vector.load %arg14[%c0_2, %c0_3] : memref<256x512xbf16, #tpu.memory_space<vmem>>, vector<256x512xbf16>
    %cst = arith.constant dense<0.000000e+00> : vector<2x512xf32>
    %5 = tpu.matmul %3, %4, %cst {dimension_numbers = #tpu.dot_dimension_numbers<[1], [0], [0], [1], [0, 0, 1, 1], [], []>} : vector<2x256xbf16>, vector<256x512xbf16>, vector<2x512xf32> -> vector<2x512xf32>
    %6 = math.tanh %5 : vector<2x512xf32>
    %c0_4 = arith.constant 0 : index
    %c0_5 = arith.constant 0 : index
    %7 = vector.load %arg15[%c0_4, %c0_5] : memref<2x512xf32, #tpu.memory_space<vmem>>, vector<2x512xf32>
    tpu.vector_store %arg15[%c0_4, %c0_5], %6 {strides = array<i32>} : memref<2x512xf32, #tpu.memory_space<vmem>>, vector<2x512xf32>,
    return
  }
  func.func @transform_0(%arg0: i32) -> (i32, i32) {
    %c0_i32 = arith.constant 0 : i32
    %c0_i32_0 = arith.constant 0 : i32
    %c0_i32_1 = arith.constant 0 : i32
    return %c0_i32, %c0_i32_0 : i32, i32
  }
  func.func @transform_1(%arg0: i32) -> (i32, i32) {
    %c0_i32 = arith.constant 0 : i32
    %c0_i32_0 = arith.constant 0 : i32
    %c0_i32_1 = arith.constant 0 : i32
    return %c0_i32, %c0_i32_0 : i32, i32
  }
  func.func @transform_2(%arg0: i32) -> (i32, i32) {
    %c0_i32 = arith.constant 0 : i32
    %c0_i32_0 = arith.constant 0 : i32
    %c0_i32_1 = arith.constant 0 : i32
    return %c0_i32, %c0_i32_0 : i32, i32
  }
  func.func @transform_3(%arg0: i32) -> (i32, i32) {
    %c0_i32 = arith.constant 0 : i32
    %c0_i32_0 = arith.constant 0 : i32
    %c0_i32_1 = arith.constant 0 : i32
    return %c0_i32, %c0_i32_0 : i32, i32
  }
  func.func @transform_4(%arg0: i32) -> (i32, i32) {
    %c0_i32 = arith.constant 0 : i32
    %c0_i32_0 = arith.constant 0 : i32
    %c0_i32_1 = arith.constant 0 : i32
    return %c0_i32, %c0_i32_0 : i32, i32
  }
  func.func @transform_5(%arg0: i32) -> (i32, i32) {
    %c0_i32 = arith.constant 0 : i32
    %c0_i32_0 = arith.constant 0 : i32
    %c0_i32_1 = arith.constant 0 : i32
    return %c0_i32, %c0_i32_0 : i32, i32
  }
  func.func @transform_6(%arg0: i32) -> (i32, i32) {
    %c0_i32 = arith.constant 0 : i32
    %c0_i32_0 = arith.constant 0 : i32
    %c0_i32_1 = arith.constant 0 : i32
    return %c0_i32, %c0_i32_0 : i32, i32
  }
  func.func @transform_7(%arg0: i32) -> (i32, i32) {
    %c0_i32 = arith.constant 0 : i32
    %c0_i32_0 = arith.constant 0 : i32
    %c0_i32_1 = arith.constant 0 : i32
    return %c0_i32, %c0_i32_0 : i32, i32
  }
  func.func @transform_8(%arg0: i32) -> (i32, i32) {
    %c0_i32 = arith.constant 0 : i32
    %c0_i32_0 = arith.constant 0 : i32
    %c0_i32_1 = arith.constant 0 : i32
    return %c0_i32, %c0_i32_0 : i32, i32
  }
  func.func @transform_9(%arg0: i32) -> (i32, i32) {
    %c0_i32 = arith.constant 0 : i32
    %c0_i32_0 = arith.constant 0 : i32
    %c0_i32_1 = arith.constant 0 : i32
    return %c0_i32, %c0_i32_0 : i32, i32
  }
  func.func @transform_10(%arg0: i32) -> (i32, i32) {
    %c0_i32 = arith.constant 0 : i32
    %c0_i32_0 = arith.constant 0 : i32
    %c0_i32_1 = arith.constant 0 : i32
    return %c0_i32, %c0_i32_0 : i32, i32
  }
  func.func @transform_11(%arg0: i32) -> (i32, i32) {
    %c0_i32 = arith.constant 0 : i32
    %c0_i32_0 = arith.constant 0 : i32
    %c0_i32_1 = arith.constant 0 : i32
    return %c0_i32, %c0_i32_0 : i32, i32
  }
  func.func @transform_12(%arg0: i32) -> (i32, i32) {
    %c0_i32 = arith.constant 0 : i32
    %c0_i32_0 = arith.constant 0 : i32
    %c0_i32_1 = arith.constant 0 : i32
    return %c0_i32, %c0_i32_0 : i32, i32
  }
  func.func @transform_13(%arg0: i32) -> (i32, i32) {
    %c0_i32 = arith.constant 0 : i32
    %c0_i32_0 = arith.constant 0 : i32
    return %c0_i32, %arg0 : i32, i32
  }
  func.func @transform_14(%arg0: i32) -> (i32, i32) {
    %c0_i32 = arith.constant 0 : i32
    %c0_i32_0 = arith.constant 0 : i32
    return %c0_i32, %arg0 : i32, i32
  }
}

</mosaic_0001>

<llo_original>
// kernel: forward.1
$region0: #{forward.1}
  #allocation0 [shape = 'u32[]', space=smem, size = 0x4, offset = 0x4, fixed_abs, tag = 'smem constant byte address 0x4 - core index']
  #allocation1 [shape = 'u32[144,128]{1,0:T(1,128)}', space=vmem, size = 0x12000, scoped, tag = 'internal scratch']
  #allocation2 [shape = 'bf16[2,256]{1,0:T(2,128)(2,1)}', space=vmem, size = 0x400, scoped, tag = 'scratch operand']
  %s0 = inlined_call_operand.hbm [shape: f32[2,16], index: 0, kind: input, shape index: {}]
  %s1 = inlined_call_operand.hbm [shape: bf16[16,256], index: 1, kind: input, shape index: {}]
  %s2 = inlined_call_operand.vmem [shape: f32[256,64], index: 2, kind: input, shape index: {}]
  %s3 = inlined_call_operand.hbm [shape: f32[64,256], index: 3, kind: input, shape index: {}]
  %s4 = inlined_call_operand.hbm [shape: bf16[256,256], index: 4, kind: input, shape index: {}]
  %s5 = inlined_call_operand.vmem [shape: f32[256,32], index: 5, kind: input, shape index: {}]
  %s6 = inlined_call_operand.hbm [shape: f32[32,256], index: 6, kind: input, shape index: {}]
  %s7 = inlined_call_operand.hbm [shape: bf16[256,256], index: 7, kind: input, shape index: {}]
  %s8 = inlined_call_operand.vmem [shape: f32[256,16], index: 8, kind: input, shape index: {}]
  %s9 = inlined_call_operand.hbm [shape: f32[16,256], index: 9, kind: input, shape index: {}]
  %s10 = inlined_call_operand.hbm [shape: bf16[256,256], index: 10, kind: input, shape index: {}]
  %s11 = inlined_call_operand.vmem [shape: f32[256,8], index: 11, kind: input, shape index: {}]
  %s12 = inlined_call_operand.hbm [shape: f32[8,256], index: 12, kind: input, shape index: {}]
  %s13 = inlined_call_operand.hbm [shape: bf16[256,4096], index: 13, kind: input, shape index: {}]
  %s14 = inlined_call_operand.vmem [shape: f32[2,4096], index: 14, kind: output, shape index: {}]
  %s15 = sld [smem:[#allocation0]]
  $region133: #{forward.1} parent=0
    _
  %s17 = ssub.s32 1, %s15
  %s18 = scalar_select 0, %s17, %s15
  $region1: #{forward.1} parent=0
    #allocation3 [shape = 'u8[1024]{0}', space=vmem, size = 0x400, scoped, tag = 'input window, operand 0, single buffered']
    #allocation4 [shape = 's32[2]{0}', space=sflag, size = 0x8, scoped, tag = 'scoped memory for forward.1']
    #allocation5 [shape = 'u8[8192]{0}', space=vmem, size = 0x2000, scoped, tag = 'input window, operand 1, single buffered']
    #allocation6 [shape = 's32[1]{0}', space=sflag, size = 0x4, scoped, tag = 'scoped memory for forward.1']
    #allocation7 [shape = 'u8[65536]{0}', space=vmem, size = 0x10000, scoped, tag = 'input window, operand 3, single buffered']
    #allocation8 [shape = 'u8[131072]{0}', space=vmem, size = 0x20000, scoped, tag = 'input window, operand 4, single buffered']
    #allocation9 [shape = 's32[1]{0}', space=sflag, size = 0x4, scoped, tag = 'scoped memory for forward.1']
    #allocation10 [shape = 'u8[32768]{0}', space=vmem, size = 0x8000, scoped, tag = 'input window, operand 6, single buffered']
    #allocation11 [shape = 'u8[131072]{0}', space=vmem, size = 0x20000, scoped, tag = 'input window, operand 7, single buffered']
    #allocation12 [shape = 's32[1]{0}', space=sflag, size = 0x4, scoped, tag = 'scoped memory for forward.1']
    #allocation13 [shape = 'u8[16384]{0}', space=vmem, size = 0x4000, scoped, tag = 'input window, operand 9, single buffered']
    #allocation14 [shape = 'u8[131072]{0}', space=vmem, size = 0x20000, scoped, tag = 'input window, operand 10, single buffered']
    #allocation15 [shape = 's32[1]{0}', space=sflag, size = 0x4, scoped, tag = 'scoped memory for forward.1']
    #allocation16 [shape = 'u8[8192]{0}', space=vmem, size = 0x2000, scoped, tag = 'input window, operand 12, single buffered']
    #allocation17 [shape = 'u8[524288]{0}', space=vmem, size = 0x80000, scoped, tag = 'input window, operand 13']
    #allocation18 [shape = 's32[2]{0}', space=sflag, size = 0x8, scoped, tag = 'scoped memory for forward.1']
    %19 = vsyncpa [#allocation4], 0
    %20 = vsyncpa [#allocation6], 0
    %21 = vsyncpa [#allocation9], 0
    %22 = vsyncpa [#allocation12], 0
    %23 = vsyncpa [#allocation15], 0
    %24 = vsyncpa [#allocation18], 0
    %s25 = scalar_lea.sflag [#allocation18], 1
    %26 = vsyncpa %s25, 0
    loop: start=0, step=1, limit=10
    $region2: #{forward.1} parent=1 // loop_pre_header
      _
    $region3: #{forward.1} parent=1 // loop_header
      %s28 = sphi 0, %s32
      %p29 = scmp.ge.s32.totalorder %s28, 10
      %s36 = sphi 0, %s36
      %s38 = sphi 0, %s36
      %s39 = sphi 0, %s38
      %s53 = sphi 0, %s39
      %s57 = sphi 0, %s57
      %s59 = sphi 0, %s57
      %s60 = sphi 0, %s59
      %s74 = sphi 0, %s60
      %s78 = sphi 0, %s78
      %s80 = sphi 0, %s78
      %s81 = sphi 0, %s80
      %s95 = sphi 0, %s81
      %s99 = sphi 0, %s99
      %s101 = sphi 0, %s99
      %s102 = sphi 0, %s101
      %s116 = sphi 0, %s102
      %s120 = sphi 0, %s120
      %s122 = sphi 0, %s120
      %s123 = sphi 0, %s122
      %s137 = sphi 0, %s123
      %s141 = sphi 0, %s141
      %s143 = sphi 0, %s141
      %s144 = sphi 0, %s143
      %s158 = sphi 0, %s144
      %s162 = sphi 0, %s162
      %s164 = sphi 0, %s162
      %s165 = sphi 0, %s164
      %s179 = sphi 0, %s165
      %s183 = sphi 0, %s183
      %s185 = sphi 0, %s183
      %s186 = sphi 0, %s185
      %s200 = sphi 0, %s186
      %s204 = sphi 0, %s204
      %s206 = sphi 0, %s204
      %s207 = sphi 0, %s206
      %s221 = sphi 0, %s207
      %s225 = sphi 0, %s225
      %s227 = sphi 0, %s225
      %s228 = sphi 0, %s227
      %s242 = sphi 0, %s228
      %s246 = sphi 0, %s246
      %s248 = sphi 0, %s246
      %s249 = sphi 0, %s248
      %s263 = sphi 0, %s249
      %s267 = sphi 0, %s267
      %s269 = sphi 0, %s267
      %s270 = sphi 0, %s269
      %s284 = sphi 0, %s270
      %s288 = sphi 0, %s288
      %s290 = sphi 0, %s288
      %s291 = sphi 0, %s290
      %s305 = sphi 0, %s291
      %s311 = sphi 0, %s313
      %s314 = sphi 0, %s311
      %s315 = sphi 0, %s314
      %s331 = sphi 0, %s315
      %s337 = sphi 0, %s339
      %s340 = sphi 0, %s337
      %s341 = sphi 0, %s340
      %s357 = sphi 0, %s341
    $region4: #{forward.1} parent=1 // loop_header_branch
      %31 = sbr.rel (%p29) target = $region8
    $region5: #{forward.1} parent=1 // loop_body
      %s33 = ssub.s32 %s28, 1
      %s34 = ssub.s32 %s28, 2
      %s35 = sadd.s32 %s28, 1
      %s37 = sadd.s32 %s36, 1
      %p40 = scmp.eq.s32.totalorder %s28, 7
      %p41 = scmp.ne.s32.totalorder %s36, %s38
      %p42 = scmp.eq.s32.totalorder %s28, 0
      %p43 = por %p41, %p42
      %p44 = scmp.ne.s32.totalorder %s36, %s38
      %p45 = scmp.eq.s32.totalorder %s33, 7
      %p46 = por %p44, %p45
      %p47 = scmp.ne.s32.totalorder %s38, %s39
      %p48 = scmp.eq.s32.totalorder %s33, 0
      %p49 = por %p47, %p48
      %p50 = scmp.ne.s32.totalorder %s38, %s39
      %p51 = scmp.eq.s32.totalorder %s34, 7
      %p52 = por %p50, %p51
      %p54 = scmp.ne.s32.totalorder %s39, %s53
      %p55 = scmp.eq.s32.totalorder %s34, 0
      %p56 = por %p54, %p55
      %s58 = sadd.s32 %s57, 1
      %p61 = scmp.eq.s32.totalorder %s28, 7
      %p62 = scmp.ne.s32.totalorder %s57, %s59
      %p63 = scmp.eq.s32.totalorder %s28, 0
      %p64 = por %p62, %p63
      %p65 = scmp.ne.s32.totalorder %s57, %s59
      %p66 = scmp.eq.s32.totalorder %s33, 7
      %p67 = por %p65, %p66
      %p68 = scmp.ne.s32.totalorder %s59, %s60
      %p69 = scmp.eq.s32.totalorder %s33, 0
      %p70 = por %p68, %p69
      %p71 = scmp.ne.s32.totalorder %s59, %s60
      %p72 = scmp.eq.s32.totalorder %s34, 7
      %p73 = por %p71, %p72
      %p75 = scmp.ne.s32.totalorder %s60, %s74
      %p76 = scmp.eq.s32.totalorder %s34, 0
      %p77 = por %p75, %p76
      %s79 = sadd.s32 %s78, 1
      %p82 = scmp.eq.s32.totalorder %s28, 7
      %p83 = scmp.ne.s32.totalorder %s78, %s80
      %p84 = scmp.eq.s32.totalorder %s28, 0
      %p85 = por %p83, %p84
      %p86 = scmp.ne.s32.totalorder %s78, %s80
      %p87 = scmp.eq.s32.totalorder %s33, 7
      %p88 = por %p86, %p87
      %p89 = scmp.ne.s32.totalorder %s80, %s81
      %p90 = scmp.eq.s32.totalorder %s33, 0
      %p91 = por %p89, %p90
      %p92 = scmp.ne.s32.totalorder %s80, %s81
      %p93 = scmp.eq.s32.totalorder %s34, 7
      %p94 = por %p92, %p93
      %p96 = scmp.ne.s32.totalorder %s81, %s95
      %p97 = scmp.eq.s32.totalorder %s34, 0
      %p98 = por %p96, %p97
      %s100 = sadd.s32 %s99, 1
      %p103 = scmp.eq.s32.totalorder %s28, 7
      %p104 = scmp.ne.s32.totalorder %s99, %s101
      %p105 = scmp.eq.s32.totalorder %s28, 0
      %p106 = por %p104, %p105
      %p107 = scmp.ne.s32.totalorder %s99, %s101
      %p108 = scmp.eq.s32.totalorder %s33, 7
      %p109 = por %p107, %p108
      %p110 = scmp.ne.s32.totalorder %s101, %s102
      %p111 = scmp.eq.s32.totalorder %s33, 0
      %p112 = por %p110, %p111
      %p113 = scmp.ne.s32.totalorder %s101, %s102
      %p114 = scmp.eq.s32.totalorder %s34, 7
      %p115 = por %p113, %p114
      %p117 = scmp.ne.s32.totalorder %s102, %s116
      %p118 = scmp.eq.s32.totalorder %s34, 0
      %p119 = por %p117, %p118
      %s121 = sadd.s32 %s120, 1
      %p124 = scmp.eq.s32.totalorder %s28, 7
      %p125 = scmp.ne.s32.totalorder %s120, %s122
      %p126 = scmp.eq.s32.totalorder %s28, 0
      %p127 = por %p125, %p126
      %p128 = scmp.ne.s32.totalorder %s120, %s122
      %p129 = scmp.eq.s32.totalorder %s33, 7
      %p130 = por %p128, %p129
      %p131 = scmp.ne.s32.totalorder %s122, %s123
      %p132 = scmp.eq.s32.totalorder %s33, 0
      %p133 = por %p131, %p132
      %p134 = scmp.ne.s32.totalorder %s122, %s123
      %p135 = scmp.eq.s32.totalorder %s34, 7
      %p136 = por %p134, %p135
      %p138 = scmp.ne.s32.totalorder %s123, %s137
      %p139 = scmp.eq.s32.totalorder %s34, 0
      %p140 = por %p138, %p139
      %s142 = sadd.s32 %s141, 1
      %p145 = scmp.eq.s32.totalorder %s28, 7
      %p146 = scmp.ne.s32.totalorder %s141, %s143
      %p147 = scmp.eq.s32.totalorder %s28, 0
      %p148 = por %p146, %p147
      %p149 = scmp.ne.s32.totalorder %s141, %s143
      %p150 = scmp.eq.s32.totalorder %s33, 7
      %p151 = por %p149, %p150
      %p152 = scmp.ne.s32.totalorder %s143, %s144
      %p153 = scmp.eq.s32.totalorder %s33, 0
      %p154 = por %p152, %p153
      %p155 = scmp.ne.s32.totalorder %s143, %s144
      %p156 = scmp.eq.s32.totalorder %s34, 7
      %p157 = por %p155, %p156
      %p159 = scmp.ne.s32.totalorder %s144, %s158
      %p160 = scmp.eq.s32.totalorder %s34, 0
      %p161 = por %p159, %p160
      %s163 = sadd.s32 %s162, 1
      %p166 = scmp.eq.s32.totalorder %s28, 7
      %p167 = scmp.ne.s32.totalorder %s162, %s164
      %p168 = scmp.eq.s32.totalorder %s28, 0
      %p169 = por %p167, %p168
      %p170 = scmp.ne.s32.totalorder %s162, %s164
      %p171 = scmp.eq.s32.totalorder %s33, 7
      %p172 = por %p170, %p171
      %p173 = scmp.ne.s32.totalorder %s164, %s165
      %p174 = scmp.eq.s32.totalorder %s33, 0
      %p175 = por %p173, %p174
      %p176 = scmp.ne.s32.totalorder %s164, %s165
      %p177 = scmp.eq.s32.totalorder %s34, 7
      %p178 = por %p176, %p177
      %p180 = scmp.ne.s32.totalorder %s165, %s179
      %p181 = scmp.eq.s32.totalorder %s34, 0
      %p182 = por %p180, %p181
      %s184 = sadd.s32 %s183, 1
      %p187 = scmp.eq.s32.totalorder %s28, 7
      %p188 = scmp.ne.s32.totalorder %s183, %s185
      %p189 = scmp.eq.s32.totalorder %s28, 0
      %p190 = por %p188, %p189
      %p191 = scmp.ne.s32.totalorder %s183, %s185
      %p192 = scmp.eq.s32.totalorder %s33, 7
      %p193 = por %p191, %p192
      %p194 = scmp.ne.s32.totalorder %s185, %s186
      %p195 = scmp.eq.s32.totalorder %s33, 0
      %p196 = por %p194, %p195
      %p197 = scmp.ne.s32.totalorder %s185, %s186
      %p198 = scmp.eq.s32.totalorder %s34, 7
      %p199 = por %p197, %p198
      %p201 = scmp.ne.s32.totalorder %s186, %s200
      %p202 = scmp.eq.s32.totalorder %s34, 0
      %p203 = por %p201, %p202
      %s205 = sadd.s32 %s204, 1
      %p208 = scmp.eq.s32.totalorder %s28, 7
      %p209 = scmp.ne.s32.totalorder %s204, %s206
      %p210 = scmp.eq.s32.totalorder %s28, 0
      %p211 = por %p209, %p210
      %p212 = scmp.ne.s32.totalorder %s204, %s206
      %p213 = scmp.eq.s32.totalorder %s33, 7
      %p214 = por %p212, %p213
      %p215 = scmp.ne.s32.totalorder %s206, %s207
      %p216 = scmp.eq.s32.totalorder %s33, 0
      %p217 = por %p215, %p216
      %p218 = scmp.ne.s32.totalorder %s206, %s207
      %p219 = scmp.eq.s32.totalorder %s34, 7
      %p220 = por %p218, %p219
      %p222 = scmp.ne.s32.totalorder %s207, %s221
      %p223 = scmp.eq.s32.totalorder %s34, 0
      %p224 = por %p222, %p223
      %s226 = sadd.s32 %s225, 1
      %p229 = scmp.eq.s32.totalorder %s28, 7
      %p230 = scmp.ne.s32.totalorder %s225, %s227
      %p231 = scmp.eq.s32.totalorder %s28, 0
      %p232 = por %p230, %p231
      %p233 = scmp.ne.s32.totalorder %s225, %s227
      %p234 = scmp.eq.s32.totalorder %s33, 7
      %p235 = por %p233, %p234
      %p236 = scmp.ne.s32.totalorder %s227, %s228
      %p237 = scmp.eq.s32.totalorder %s33, 0
      %p238 = por %p236, %p237
      %p239 = scmp.ne.s32.totalorder %s227, %s228
      %p240 = scmp.eq.s32.totalorder %s34, 7
      %p241 = por %p239, %p240
      %p243 = scmp.ne.s32.totalorder %s228, %s242
      %p244 = scmp.eq.s32.totalorder %s34, 0
      %p245 = por %p243, %p244
      %s247 = sadd.s32 %s246, 1
      %p250 = scmp.eq.s32.totalorder %s28, 7
      %p251 = scmp.ne.s32.totalorder %s246, %s248
      %p252 = scmp.eq.s32.totalorder %s28, 0
      %p253 = por %p251, %p252
      %p254 = scmp.ne.s32.totalorder %s246, %s248
      %p255 = scmp.eq.s32.totalorder %s33, 7
      %p256 = por %p254, %p255
      %p257 = scmp.ne.s32.totalorder %s248, %s249
      %p258 = scmp.eq.s32.totalorder %s33, 0
      %p259 = por %p257, %p258
      %p260 = scmp.ne.s32.totalorder %s248, %s249
      %p261 = scmp.eq.s32.totalorder %s34, 7
      %p262 = por %p260, %p261
      %p264 = scmp.ne.s32.totalorder %s249, %s263
      %p265 = scmp.eq.s32.totalorder %s34, 0
      %p266 = por %p264, %p265
      %s268 = sadd.s32 %s267, 1
      %p271 = scmp.eq.s32.totalorder %s28, 7
      %p272 = scmp.ne.s32.totalorder %s267, %s269
      %p273 = scmp.eq.s32.totalorder %s28, 0
      %p274 = por %p272, %p273
      %p275 = scmp.ne.s32.totalorder %s267, %s269
      %p276 = scmp.eq.s32.totalorder %s33, 7
      %p277 = por %p275, %p276
      %p278 = scmp.ne.s32.totalorder %s269, %s270
      %p279 = scmp.eq.s32.totalorder %s33, 0
      %p280 = por %p278, %p279
      %p281 = scmp.ne.s32.totalorder %s269, %s270
      %p282 = scmp.eq.s32.totalorder %s34, 7
      %p283 = por %p281, %p282
      %p285 = scmp.ne.s32.totalorder %s270, %s284
      %p286 = scmp.eq.s32.totalorder %s34, 0
      %p287 = por %p285, %p286
      %s289 = sadd.s32 %s288, 1
      %p292 = scmp.eq.s32.totalorder %s28, 7
      %p293 = scmp.ne.s32.totalorder %s288, %s290
      %p294 = scmp.eq.s32.totalorder %s28, 0
      %p295 = por %p293, %p294
      %p296 = scmp.ne.s32.totalorder %s288, %s290
      %p297 = scmp.eq.s32.totalorder %s33, 7
      %p298 = por %p296, %p297
      %p299 = scmp.ne.s32.totalorder %s290, %s291
      %p300 = scmp.eq.s32.totalorder %s33, 0
      %p301 = por %p299, %p300
      %p302 = scmp.ne.s32.totalorder %s290, %s291
      %p303 = scmp.eq.s32.totalorder %s34, 7
      %p304 = por %p302, %p303
      %p306 = scmp.ne.s32.totalorder %s291, %s305
      %p307 = scmp.eq.s32.totalorder %s34, 0
      %p308 = por %p306, %p307
      %s309 = ssub.s32 %s28, %s35
      %p310 = scmp.eq.s32.totalorder %s309, 0
      %s312 = sadd.s32 %s311, 1
      %s313 = scalar_select %p310, %s311, %s312
      %p316 = pneg %p310
      %p317 = scmp.eq.s32.totalorder %s28, 7
      %p318 = por %p316, %p317
      %p319 = scmp.ne.s32.totalorder %s311, %s314
      %p320 = scmp.eq.s32.totalorder %s28, 0
      %p321 = por %p319, %p320
      %p322 = scmp.ne.s32.totalorder %s311, %s314
      %p323 = scmp.eq.s32.totalorder %s33, 7
      %p324 = por %p322, %p323
      %p325 = scmp.ne.s32.totalorder %s314, %s315
      %p326 = scmp.eq.s32.totalorder %s33, 0
      %p327 = por %p325, %p326
      %p328 = scmp.ne.s32.totalorder %s314, %s315
      %p329 = scmp.eq.s32.totalorder %s34, 7
      %p330 = por %p328, %p329
      %p332 = scmp.ne.s32.totalorder %s315, %s331
      %p333 = scmp.eq.s32.totalorder %s34, 0
      %p334 = por %p332, %p333
      %s335 = ssub.s32 %s28, %s35
      %p336 = scmp.eq.s32.totalorder %s335, 0
      %s338 = sadd.s32 %s337, 1
      %s339 = scalar_select %p336, %s337, %s338
      %p342 = pneg %p336
      %p343 = scmp.eq.s32.totalorder %s28, 7
      %p344 = por %p342, %p343
      %p345 = scmp.ne.s32.totalorder %s337, %s340
      %p346 = scmp.eq.s32.totalorder %s28, 0
      %p347 = por %p345, %p346
      %p348 = scmp.ne.s32.totalorder %s337, %s340
      %p349 = scmp.eq.s32.totalorder %s33, 7
      %p350 = por %p348, %p349
      %p351 = scmp.ne.s32.totalorder %s340, %s341
      %p352 = scmp.eq.s32.totalorder %s33, 0
      %p353 = por %p351, %p352
      %p354 = scmp.ne.s32.totalorder %s340, %s341
      %p355 = scmp.eq.s32.totalorder %s34, 7
      %p356 = por %p354, %p355
      %p358 = scmp.ne.s32.totalorder %s341, %s357
      %p359 = scmp.eq.s32.totalorder %s34, 0
      %p360 = por %p358, %p359
      %p361 = scmp.le.s32.totalorder 1, %s28
      %p362 = scmp.lt.s32.totalorder %s28, 9
      %p363 = pnand %p361, %p362
      %p364 = pneg %p363
      // Predicated region
      $region9: #{forward.1} parent=5 // pred_check
        _
      $region10: #{forward.1} parent=5 // pred_check_branch
        %366 = sbr.rel (%p363) target = $region12
      $region11: #{forward.1} parent=5 // pred_region
        %s367 = ssub.s32 %s28, 1
        // Predicated region
        $region13: #{forward.1} parent=11 // pred_check
          %p368 = pneg %p49
        $region14: #{forward.1} parent=11 // pred_check_branch
          %370 = sbr.rel (%p368) target = $region16
        $region15: #{forward.1} parent=11 // pred_region
          %s372 = ssub.s32 32, 32
          %373 = vsyncadd [#allocation4], %s372
          %s375 = sshll.u32 [#allocation3], 4
          %s376 = int_to_ptr.vmem [resolvable:$true] %s375
          %378 = dma.hbm_to_vmem [thread:$0]  %s0, 32, %s376, [#allocation4]
        $region16: #{forward.1} parent=11 // pred_fallthru
          _
        // Predicated region
        $region17: #{forward.1} parent=11 // pred_check
          %p379 = pneg %p70
        $region18: #{forward.1} parent=11 // pred_check_branch
          %381 = sbr.rel (%p379) target = $region20
        $region19: #{forward.1} parent=11 // pred_region
          %s383 = ssub.s32 256, 256
          %384 = vsyncadd [#allocation6], %s383
          %s385 = sshll.u32 [#allocation5], 4
          %s386 = int_to_ptr.vmem [resolvable:$true] %s385
          %391 = dma.hbm_to_vmem [thread:$0]  %s1, 256, %s386, [#allocation6], 128, 128, 8
        $region20: #{forward.1} parent=11 // pred_fallthru
          _
        // Predicated region
        $region21: #{forward.1} parent=11 // pred_check
          %p392 = pneg %p91
        $region22: #{forward.1} parent=11 // pred_check_branch
          %394 = sbr.rel (%p392) target = $region24
        $region23: #{forward.1} parent=11 // pred_region
          _
        $region24: #{forward.1} parent=11 // pred_fallthru
          _
        // Predicated region
        $region25: #{forward.1} parent=11 // pred_check
          %p395 = pneg %p112
        $region26: #{forward.1} parent=11 // pred_check_branch
          %397 = sbr.rel (%p395) target = $region28
        $region27: #{forward.1} parent=11 // pred_region
          %s399 = ssub.s32 2048, 2048
          %400 = vsyncadd [#allocation6], %s399
          %s401 = sshll.u32 [#allocation7], 4
          %s402 = int_to_ptr.vmem [resolvable:$true] %s401
          %407 = dma.hbm_to_vmem [thread:$0]  %s3, 2048, %s402, [#allocation6], 256, 256, 16
        $region28: #{forward.1} parent=11 // pred_fallthru
          _
        // Predicated region
        $region29: #{forward.1} parent=11 // pred_check
          %p408 = pneg %p133
        $region30: #{forward.1} parent=11 // pred_check_branch
          %410 = sbr.rel (%p408) target = $region32
        $region31: #{forward.1} parent=11 // pred_region
          %s412 = ssub.s32 4096, 4096
          %413 = vsyncadd [#allocation9], %s412
          %s414 = sshll.u32 [#allocation8], 4
          %s415 = int_to_ptr.vmem [resolvable:$true] %s414
          %420 = dma.hbm_to_vmem [thread:$0]  %s4, 4096, %s415, [#allocation9], 128, 128, 8
        $region32: #{forward.1} parent=11 // pred_fallthru
          _
        // Predicated region
        $region33: #{forward.1} parent=11 // pred_check
          %p421 = pneg %p154
        $region34: #{forward.1} parent=11 // pred_check_branch
          %423 = sbr.rel (%p421) target = $region36
        $region35: #{forward.1} parent=11 // pred_region
          _
        $region36: #{forward.1} parent=11 // pred_fallthru
          _
        // Predicated region
        $region37: #{forward.1} parent=11 // pred_check
          %p424 = pneg %p175
        $region38: #{forward.1} parent=11 // pred_check_branch
          %426 = sbr.rel (%p424) target = $region40
        $region39: #{forward.1} parent=11 // pred_region
          %s428 = ssub.s32 1024, 1024
          %429 = vsyncadd [#allocation9], %s428
          %s430 = sshll.u32 [#allocation10], 4
          %s431 = int_to_ptr.vmem [resolvable:$true] %s430
          %436 = dma.hbm_to_vmem [thread:$0]  %s6, 1024, %s431, [#allocation9], 256, 256, 16
        $region40: #{forward.1} parent=11 // pred_fallthru
          _
        // Predicated region
        $region41: #{forward.1} parent=11 // pred_check
          %p437 = pneg %p196
        $region42: #{forward.1} parent=11 // pred_check_branch
          %439 = sbr.rel (%p437) target = $region44
        $region43: #{forward.1} parent=11 // pred_region
          %s441 = ssub.s32 4096, 4096
          %442 = vsyncadd [#allocation12], %s441
          %s443 = sshll.u32 [#allocation11], 4
          %s444 = int_to_ptr.vmem [resolvable:$true] %s443
          %449 = dma.hbm_to_vmem [thread:$0]  %s7, 4096, %s444, [#allocation12], 128, 128, 8
        $region44: #{forward.1} parent=11 // pred_fallthru
          _
        // Predicated region
        $region45: #{forward.1} parent=11 // pred_check
          %p450 = pneg %p217
        $region46: #{forward.1} parent=11 // pred_check_branch
          %452 = sbr.rel (%p450) target = $region48
        $region47: #{forward.1} parent=11 // pred_region
          _
        $region48: #{forward.1} parent=11 // pred_fallthru
          _
        // Predicated region
        $region49: #{forward.1} parent=11 // pred_check
          %p453 = pneg %p238
        $region50: #{forward.1} parent=11 // pred_check_branch
          %455 = sbr.rel (%p453) target = $region52
        $region51: #{forward.1} parent=11 // pred_region
          %s457 = ssub.s32 512, 512
          %458 = vsyncadd [#allocation12], %s457
          %s459 = sshll.u32 [#allocation13], 4
          %s460 = int_to_ptr.vmem [resolvable:$true] %s459
          %465 = dma.hbm_to_vmem [thread:$0]  %s9, 512, %s460, [#allocation12], 256, 256, 16
        $region52: #{forward.1} parent=11 // pred_fallthru
          _
        // Predicated region
        $region53: #{forward.1} parent=11 // pred_check
          %p466 = pneg %p259
        $region54: #{forward.1} parent=11 // pred_check_branch
          %468 = sbr.rel (%p466) target = $region56
        $region55: #{forward.1} parent=11 // pred_region
          %s470 = ssub.s32 4096, 4096
          %471 = vsyncadd [#allocation15], %s470
          %s472 = sshll.u32 [#allocation14], 4
          %s473 = int_to_ptr.vmem [resolvable:$true] %s472
          %478 = dma.hbm_to_vmem [thread:$0]  %s10, 4096, %s473, [#allocation15], 128, 128, 8
        $region56: #{forward.1} parent=11 // pred_fallthru
          _
        // Predicated region
        $region57: #{forward.1} parent=11 // pred_check
          %p479 = pneg %p280
        $region58: #{forward.1} parent=11 // pred_check_branch
          %481 = sbr.rel (%p479) target = $region60
        $region59: #{forward.1} parent=11 // pred_region
          _
        $region60: #{forward.1} parent=11 // pred_fallthru
          _
        // Predicated region
        $region61: #{forward.1} parent=11 // pred_check
          %p482 = pneg %p301
        $region62: #{forward.1} parent=11 // pred_check_branch
          %484 = sbr.rel (%p482) target = $region64
        $region63: #{forward.1} parent=11 // pred_region
          %s486 = ssub.s32 256, 256
          %487 = vsyncadd [#allocation15], %s486
          %s489 = sshll.u32 [#allocation16], 4
          %s490 = int_to_ptr.vmem [resolvable:$true] %s489
          %492 = dma.hbm_to_vmem [thread:$0]  %s12, 256, %s490, [#allocation15]
        $region64: #{forward.1} parent=11 // pred_fallthru
          _
      $region12: #{forward.1} parent=5 // pred_fallthru
        _
      %p493 = scmp.lt.s32.totalorder %s28, 8
      // Predicated region
      $region65: #{forward.1} parent=5 // pred_check
        %p494 = pneg %p493
      $region66: #{forward.1} parent=5 // pred_check_branch
        %496 = sbr.rel (%p494) target = $region68
      $region67: #{forward.1} parent=5 // pred_region
        // Predicated region
        $region69: #{forward.1} parent=67 // pred_check
          %p497 = pneg %p321
        $region70: #{forward.1} parent=67 // pred_check_branch
          %499 = sbr.rel (%p497) target = $region72
        $region71: #{forward.1} parent=67 // pred_region
          %s500 = sand.u32 %s311, 1
          %s501 = scalar_lea.sflag [#allocation18], %s500
          %s502 = sand.u32 %s311, 1
          %s503 = smul.addr %s502, 512
          %s504 = scalar_lea.vmem [#allocation17], %s503
          %s505 = smul.u32 4, %s28
          %s507 = ssub.s32 8192, 8192
          %508 = vsyncadd %s501, %s507
          %s509 = smul.addr %s505, 64
          %s510 = scalar_lea.hbm %s13, %s509
          %s511 = sshll.u32 %s504, 4
          %s512 = int_to_ptr.vmem [resolvable:$true] %s511
          %517 = dma.hbm_to_vmem [thread:$0]  %s510, 8192, %s512, %s501, 2048, 256, 16
        $region72: #{forward.1} parent=67 // pred_fallthru
          _
      $region68: #{forward.1} parent=5 // pred_fallthru
        _
      %p518 = scmp.le.s32.totalorder 1, %s28
      %p519 = scmp.lt.s32.totalorder %s28, 9
      %p520 = pnand %p518, %p519
      %p521 = pneg %p520
      // Predicated region
      $region73: #{forward.1} parent=5 // pred_check
        _
      $region74: #{forward.1} parent=5 // pred_check_branch
        %523 = sbr.rel (%p520) target = $region76
      $region75: #{forward.1} parent=5 // pred_region
        %s524 = ssub.s32 %s28, 1
        // Predicated region
        $region77: #{forward.1} parent=75 // pred_check
          %p525 = pneg %p49
        $region78: #{forward.1} parent=75 // pred_check_branch
          %527 = sbr.rel (%p525) target = $region80
        $region79: #{forward.1} parent=75 // pred_region
          %528 = dma.done [#allocation4], 32
        $region80: #{forward.1} parent=75 // pred_fallthru
          _
        // Predicated region
        $region81: #{forward.1} parent=75 // pred_check
          %p529 = pneg %p70
        $region82: #{forward.1} parent=75 // pred_check_branch
          %531 = sbr.rel (%p529) target = $region84
        $region83: #{forward.1} parent=75 // pred_region
          %532 = dma.done [#allocation6], 256
        $region84: #{forward.1} parent=75 // pred_fallthru
          _
        // Predicated region
        $region85: #{forward.1} parent=75 // pred_check
          %p533 = pneg %p112
        $region86: #{forward.1} parent=75 // pred_check_branch
          %535 = sbr.rel (%p533) target = $region88
        $region87: #{forward.1} parent=75 // pred_region
          %536 = dma.done [#allocation6], 2048
        $region88: #{forward.1} parent=75 // pred_fallthru
          _
        // Predicated region
        $region89: #{forward.1} parent=75 // pred_check
          %p537 = pneg %p133
        $region90: #{forward.1} parent=75 // pred_check_branch
          %539 = sbr.rel (%p537) target = $region92
        $region91: #{forward.1} parent=75 // pred_region
          %540 = dma.done [#allocation9], 4096
        $region92: #{forward.1} parent=75 // pred_fallthru
          _
        // Predicated region
        $region93: #{forward.1} parent=75 // pred_check
          %p541 = pneg %p175
        $region94: #{forward.1} parent=75 // pred_check_branch
          %543 = sbr.rel (%p541) target = $region96
        $region95: #{forward.1} parent=75 // pred_region
          %544 = dma.done [#allocation9], 1024
        $region96: #{forward.1} parent=75 // pred_fallthru
          _
        // Predicated region
        $region97: #{forward.1} parent=75 // pred_check
          %p545 = pneg %p196
        $region98: #{forward.1} parent=75 // pred_check_branch
          %547 = sbr.rel (%p545) target = $region100
        $region99: #{forward.1} parent=75 // pred_region
          %548 = dma.done [#allocation12], 4096
        $region100: #{forward.1} parent=75 // pred_fallthru
          _
        // Predicated region
        $region101: #{forward.1} parent=75 // pred_check
          %p549 = pneg %p238
        $region102: #{forward.1} parent=75 // pred_check_branch
          %551 = sbr.rel (%p549) target = $region104
        $region103: #{forward.1} parent=75 // pred_region
          %552 = dma.done [#allocation12], 512
        $region104: #{forward.1} parent=75 // pred_fallthru
          _
        // Predicated region
        $region105: #{forward.1} parent=75 // pred_check
          %p553 = pneg %p259
        $region106: #{forward.1} parent=75 // pred_check_branch
          %555 = sbr.rel (%p553) target = $region108
        $region107: #{forward.1} parent=75 // pred_region
          %556 = dma.done [#allocation15], 4096
        $region108: #{forward.1} parent=75 // pred_fallthru
          _
        // Predicated region
        $region109: #{forward.1} parent=75 // pred_check
          %p557 = pneg %p301
        $region110: #{forward.1} parent=75 // pred_check_branch
          %559 = sbr.rel (%p557) target = $region112
        $region111: #{forward.1} parent=75 // pred_region
          %560 = dma.done [#allocation15], 256
        $region112: #{forward.1} parent=75 // pred_fallthru
          _
        %s561 = sand.u32 %s314, 1
        %s562 = scalar_lea.sflag [#allocation18], %s561
        %s563 = sand.u32 %s314, 1
        %s564 = smul.addr %s563, 512
        %s565 = scalar_lea.vmem [#allocation17], %s564
        // Predicated region
        $region113: #{forward.1} parent=75 // pred_check
          %p566 = pneg %p327
        $region114: #{forward.1} parent=75 // pred_check_branch
          %568 = sbr.rel (%p566) target = $region116
        $region115: #{forward.1} parent=75 // pred_region
          %569 = dma.done %s562, 8192
        $region116: #{forward.1} parent=75 // pred_fallthru
          _
        %p570 = pneg %p49
        %p571 = pneg %p46
        %p572 = pneg %p70
        %p573 = pneg %p67
        %p574 = pneg %p91
        %p575 = pneg %p88
        %p576 = pneg %p112
        %p577 = pneg %p109
        %p578 = pneg %p133
        %p579 = pneg %p130
        %p580 = pneg %p154
        %p581 = pneg %p151
        %p582 = pneg %p175
        %p583 = pneg %p172
        %p584 = pneg %p196
        %p585 = pneg %p193
        %p586 = pneg %p217
        %p587 = pneg %p214
        %p588 = pneg %p238
        %p589 = pneg %p235
        %p590 = pneg %p259
        %p591 = pneg %p256
        %p592 = pneg %p280
        %p593 = pneg %p277
        %p594 = pneg %p301
        %p595 = pneg %p298
        %s596 = sand.u32 %s314, 1
        %s597 = scalar_lea.sflag [#allocation18], %s596
        %s598 = sand.u32 %s314, 1
        %s599 = smul.addr %s598, 512
        %s600 = scalar_lea.vmem [#allocation17], %s599
        %p601 = pneg %p327
        %p602 = pneg %p324
        %p603 = pneg %p353
        %p604 = pneg %p350
        %s605 = smul.u32 4, %s33
        %p606 = scmp.lt.s32.totalorder %s605, 31
        %s607 = scalar_select %p606, %s605, 31
        %s608 = smul.addr %s607, 2
        %s609 = scalar_lea.vmem %s14, %s608
        %s610 = smul.u32 4, %s33
        %s611 = smul.u32 4, %s33
        %p612 = scmp.lt.s32.totalorder %s611, 31
        %s613 = scalar_select %p612, %s611, 31
        %s614 = smul.addr %s613, 2
        %s615 = scalar_lea.vmem %s14, %s614
        %s616 = smul.u32 4, %s33
        %p618 = scmp.eq.s32.totalorder %s33, 0
        // Predicated region
        $region117: #{forward.1} parent=75 // pred_check
          %p619 = pneg %p618
        $region118: #{forward.1} parent=75 // pred_check_branch
          %621 = sbr.rel (%p619) target = $region120
        $region119: #{forward.1} parent=75 // pred_region
          %v622 = vld [vmem:[#allocation3] sm:$0x3]
          %v623 = vpack.c.bf16 %v622, %v622
          %v624 = vld [vmem:[#allocation5] sm:$0xff]
          %v625 = vld [vmem:[#allocation5 + $0x8] sm:$0xff]
          %v628 = vunpack.c.l.b16 %v624
          %v629 = vunpack.c.h.b16 %v624
          %v630 = vunpack.c.l.b16 %v625
          %v631 = vunpack.c.h.b16 %v625
          %v632 = vpack.c.b16 %v630, %v628
          %v633 = vpack.c.b16 %v631, %v629
          %vm636 = vcmask 130048
          %v638 = vsel %vm636, %v623, 0
          %640 = vmatprep.subr.bf16.mxu0 0
          %641 = vmatpush1.bf16.msra.mxu0 0
          %642 = vmatprep.subr.bf16.mxu0 0
          %643 = vmatpush1.bf16.msra.mxu0 0
          %644 = vmatprep.subr.bf16.mxu0 0
          %645 = vmatpush1.bf16.msra.mxu0 0
          %646 = vmatprep.subr.bf16.mxu0 0
          %647 = vmatpush1.bf16.msra.mxu0 0
          %648 = vmatprep.subr.bf16.mxu0 0
          %649 = vmatpush1.bf16.msra.mxu0 0
          %650 = vmatprep.subr.bf16.mxu0 0
          %651 = vmatpush1.bf16.msra.mxu0 0
          %652 = vmatprep.subr.bf16.mxu0 0
          %653 = vmatpush1.bf16.msra.mxu0 0
          %654 = vmatprep.subr.bf16.mxu0 %v633
          %655 = vmatpush1.bf16.msra.mxu0 %v632
          %656 = vmatprep.subr.bf16.mxu0 0
          %657 = vmatpush2.bf16.msra.mxu0 0
          %658 = vmatprep.subr.bf16.mxu0 0
          %659 = vmatpush2.bf16.msra.mxu0 0
          %660 = vmatprep.subr.bf16.mxu0 0
          %661 = vmatpush2.bf16.msra.mxu0 0
          %662 = vmatprep.subr.bf16.mxu0 0
          %663 = vmatpush2.bf16.msra.mxu0 0
          %664 = vmatprep.subr.bf16.mxu0 0
          %665 = vmatpush2.bf16.msra.mxu0 0
          %666 = vmatprep.subr.bf16.mxu0 0
          %667 = vmatpush2.bf16.msra.mxu0 0
          %668 = vmatprep.subr.bf16.mxu0 0
          %669 = vmatpush2.bf16.msra.mxu0 0
          %670 = vmatprep.subr.bf16.mxu0 0
          %671 = vmatpush2.bf16.msra.mxu0 0
          %672 = vmatprep.mubr.bf16.mxu0 0
          %673 = vmatmul.mubr.bf16.gmra.mxu0 %v638
          %v674 = vpop.f32.mrf.mxu0
          %v675 = vadd.f32 0.0, %v674
          %v676 = vpop.f32.mrf.mxu0
          %v677 = vadd.f32 0.0, %v676
          %v678 = vpop.f32.mrf.mxu0
          %v679 = vpop.f32.mrf.mxu0
          %680 = vdwg.mxu0
          %vm681 = vcmask 1041408
          %v682 = vsel %vm681, %v675, 0.0
          %v683 = vrot.slane %v682, 4
          %v684 = vadd.f32 %v682, %v683
          %v685 = vrot.slane %v684, 2
          %v686 = vadd.f32 %v684, %v685
          %v687 = vrot.slane %v686, 1
          %v688 = vadd.f32 %v686, %v687
          %v689 = vsel %vm681, %v677, 0.0
          %v690 = vrot.slane %v689, 4
          %v691 = vadd.f32 %v689, %v690
          %v692 = vrot.slane %v691, 2
          %v693 = vadd.f32 %v691, %v692
          %v694 = vrot.slane %v693, 1
          %v695 = vadd.f32 %v693, %v694
          %v696 = vmul.f32 %v675, %v675
          %v697 = vmul.f32 %v677, %v677
          %v698 = vsel %vm681, %v696, 0.0
          %v699 = vrot.slane %v698, 4
          %v700 = vadd.f32 %v698, %v699
          %v701 = vrot.slane %v700, 2
          %v702 = vadd.f32 %v700, %v701
          %v703 = vrot.slane %v702, 1
          %v704 = vadd.f32 %v702, %v703
          %v705 = vsel %vm681, %v697, 0.0
          %v706 = vrot.slane %v705, 4
          %v707 = vadd.f32 %v705, %v706
          %v708 = vrot.slane %v707, 2
          %v709 = vadd.f32 %v707, %v708
          %v710 = vrot.slane %v709, 1
          %v711 = vadd.f32 %v709, %v710
          %v712 = vlaneseq
          %v713 = vshrl.u32 %v712, 7
          %vm714 = vcmp.eq.s32.totalorder %v713, 0
          %v715 = vsel %vm714, %v688, %v704
          %v716 = vsel %vm714, %v695, %v711
          %v717 = vld [vmem:[%s2] sm:$0xff]
          %v718 = vld [vmem:[%s2 + $0x8] sm:$0xff]
          %v719 = vld [vmem:[%s2 + $0x10] sm:$0xff]
          %v720 = vld [vmem:[%s2 + $0x18] sm:$0xff]
          %v721 = vld [vmem:[%s2 + $0x20] sm:$0xff]
          %v722 = vld [vmem:[%s2 + $0x28] sm:$0xff]
          %v723 = vld [vmem:[%s2 + $0x30] sm:$0xff]
          %v724 = vld [vmem:[%s2 + $0x38] sm:$0xff]
          %v725 = vld [vmem:[%s2 + $0x40] sm:$0xff]
          %v726 = vld [vmem:[%s2 + $0x48] sm:$0xff]
          %v727 = vld [vmem:[%s2 + $0x50] sm:$0xff]
          %v728 = vld [vmem:[%s2 + $0x58] sm:$0xff]
          %v729 = vld [vmem:[%s2 + $0x60] sm:$0xff]
          %v730 = vld [vmem:[%s2 + $0x68] sm:$0xff]
          %v731 = vld [vmem:[%s2 + $0x70] sm:$0xff]
          %v732 = vld [vmem:[%s2 + $0x78] sm:$0xff]
          %v733 = vld [vmem:[%s2 + $0x80] sm:$0xff]
          %v734 = vld [vmem:[%s2 + $0x88] sm:$0xff]
          %v735 = vld [vmem:[%s2 + $0x90] sm:$0xff]
          %v736 = vld [vmem:[%s2 + $0x98] sm:$0xff]
          %v737 = vld [vmem:[%s2 + $0xa0] sm:$0xff]
          %v738 = vld [vmem:[%s2 + $0xa8] sm:$0xff]
          %v739 = vld [vmem:[%s2 + $0xb0] sm:$0xff]
          %v740 = vld [vmem:[%s2 + $0xb8] sm:$0xff]
          %v741 = vld [vmem:[%s2 + $0xc0] sm:$0xff]
          %v742 = vld [vmem:[%s2 + $0xc8] sm:$0xff]
          %v743 = vld [vmem:[%s2 + $0xd0] sm:$0xff]
          %v744 = vld [vmem:[%s2 + $0xd8] sm:$0xff]
          %v745 = vld [vmem:[%s2 + $0xe0] sm:$0xff]
          %v746 = vld [vmem:[%s2 + $0xe8] sm:$0xff]
          %v747 = vld [vmem:[%s2 + $0xf0] sm:$0xff]
          %v748 = vld [vmem:[%s2 + $0xf8] sm:$0xff]
          %749 = vmatprep.subr.mxu0 0.0
          %750 = vmatpush1.msra.mxu0 %v732
          %751 = vmatprep.subr.mxu0 0.0
          %752 = vmatpush1.msra.mxu0 %v731
          %753 = vmatprep.subr.mxu0 0.0
          %754 = vmatpush1.msra.mxu0 %v730
          %755 = vmatprep.subr.mxu0 0.0
          %756 = vmatpush1.msra.mxu0 %v729
          %757 = vmatprep.subr.mxu0 0.0
          %758 = vmatpush1.msra.mxu0 %v728
          %759 = vmatprep.subr.mxu0 0.0
          %760 = vmatpush1.msra.mxu0 %v727
          %761 = vmatprep.subr.mxu0 0.0
          %762 = vmatpush1.msra.mxu0 %v726
          %763 = vmatprep.subr.mxu0 0.0
          %764 = vmatpush1.msra.mxu0 %v725
          %765 = vmatprep.subr.mxu0 0.0
          %766 = vmatpush1.msra.mxu0 %v724
          %767 = vmatprep.subr.mxu0 0.0
          %768 = vmatpush1.msra.mxu0 %v723
          %769 = vmatprep.subr.mxu0 0.0
          %770 = vmatpush1.msra.mxu0 %v722
          %771 = vmatprep.subr.mxu0 0.0
          %772 = vmatpush1.msra.mxu0 %v721
          %773 = vmatprep.subr.mxu0 0.0
          %774 = vmatpush1.msra.mxu0 %v720
          %775 = vmatprep.subr.mxu0 0.0
          %776 = vmatpush1.msra.mxu0 %v719
          %777 = vmatprep.subr.mxu0 0.0
          %778 = vmatpush1.msra.mxu0 %v718
          %779 = vmatprep.subr.mxu0 0.0
          %780 = vmatpush1.msra.mxu0 %v717
          %781 = vmatprep.subr.mxu0 0.0
          %782 = vmatpush2.msra.mxu0 %v748
          %783 = vmatprep.subr.mxu0 0.0
          %784 = vmatpush2.msra.mxu0 %v747
          %785 = vmatprep.subr.mxu0 0.0
          %786 = vmatpush2.msra.mxu0 %v746
          %787 = vmatprep.subr.mxu0 0.0
          %788 = vmatpush2.msra.mxu0 %v745
          %789 = vmatprep.subr.mxu0 0.0
          %790 = vmatpush2.msra.mxu0 %v744
          %791 = vmatprep.subr.mxu0 0.0
          %792 = vmatpush2.msra.mxu0 %v743
          %793 = vmatprep.subr.mxu0 0.0
          %794 = vmatpush2.msra.mxu0 %v742
          %795 = vmatprep.subr.mxu0 0.0
          %796 = vmatpush2.msra.mxu0 %v741
          %797 = vmatprep.subr.mxu0 0.0
          %798 = vmatpush2.msra.mxu0 %v740
          %799 = vmatprep.subr.mxu0 0.0
          %800 = vmatpush2.msra.mxu0 %v739
          %801 = vmatprep.subr.mxu0 0.0
          %802 = vmatpush2.msra.mxu0 %v738
          %803 = vmatprep.subr.mxu0 0.0
          %804 = vmatpush2.msra.mxu0 %v737
          %805 = vmatprep.subr.mxu0 0.0
          %806 = vmatpush2.msra.mxu0 %v736
          %807 = vmatprep.subr.mxu0 0.0
          %808 = vmatpush2.msra.mxu0 %v735
          %809 = vmatprep.subr.mxu0 0.0
          %810 = vmatpush2.msra.mxu0 %v734
          %811 = vmatprep.subr.mxu0 0.0
          %812 = vmatpush2.msra.mxu0 %v733
          %813 = vmatprep.mubr.f32.mxu0 %v716
          %814 = vmatmul.mubr.f32.gmra.mxu0 %v715
          %v815 = vpop.f32.mrf.mxu0
          %v816 = vadd.f32 0.0, %v815
          %v817 = vpop.f32.mrf.mxu0
          %818 = vdwg.mxu0
          %v819 = vmul.f32 %v816, 0.125
          %v820 = vmul.f32 %v819, %v819
          %v822 = vrot.slane %v820, 7
          %v824 = vsub.f32 %v819, %v822
          %v825 = vmax.f32 %v824, 0.0
          %v826 = vadd.f32 %v825, 1e-05
          %v827 = vrsqrt.pop %v826
          %v828 = vsub.f32 0.0, %v819
          %v830 = vrot.slane %v827, 1
          %v832 = vmul.f32 %v828, %v830
          %v833 = vlaneseq
          %v834 = vshrl.u32 %v833, 7
          %v835 = vsub.s32 1, %v834
          %v836 = vrot.slane %v827, %v835
          %v837 = vlaneseq
          %v838 = vshrl.u32 %v837, 7
          %v839 = vsub.s32 0, %v838
          %v840 = vrot.slane %v832, %v839
          %v841 = vsel %vm714, %v836, %v840
          %v842 = vld [vmem:[#allocation7] sm:$0xff]
          %v843 = vld [vmem:[#allocation7 + $0x8] sm:$0xff]
          %v844 = vld [vmem:[#allocation7 + $0x10] sm:$0xff]
          %v845 = vld [vmem:[#allocation7 + $0x18] sm:$0xff]
          %v846 = vld [vmem:[#allocation7 + $0x20] sm:$0xff]
          %v847 = vld [vmem:[#allocation7 + $0x28] sm:$0xff]
          %v848 = vld [vmem:[#allocation7 + $0x30] sm:$0xff]
          %v849 = vld [vmem:[#allocation7 + $0x38] sm:$0xff]
          %v850 = vld [vmem:[#allocation7 + $0x40] sm:$0xff]
          %v851 = vld [vmem:[#allocation7 + $0x48] sm:$0xff]
          %v852 = vld [vmem:[#allocation7 + $0x50] sm:$0xff]
          %v853 = vld [vmem:[#allocation7 + $0x58] sm:$0xff]
          %v854 = vld [vmem:[#allocation7 + $0x60] sm:$0xff]
          %v855 = vld [vmem:[#allocation7 + $0x68] sm:$0xff]
          %v856 = vld [vmem:[#allocation7 + $0x70] sm:$0xff]
          %v857 = vld [vmem:[#allocation7 + $0x78] sm:$0xff]
          %vm858 = vcmask 523264
          %v860 = vsel %vm858, %v841, 0
          %862 = vmatprep.subr.mxu0 0.0
          %863 = vmatpush1.msra.mxu0 0.0
          %864 = vmatprep.subr.mxu0 0.0
          %865 = vmatpush1.msra.mxu0 0.0
          %866 = vmatprep.subr.mxu0 0.0
          %867 = vmatpush1.msra.mxu0 0.0
          %868 = vmatprep.subr.mxu0 0.0
          %869 = vmatpush1.msra.mxu0 0.0
          %870 = vmatprep.subr.mxu0 0.0
          %871 = vmatpush1.msra.mxu0 0.0
          %872 = vmatprep.subr.mxu0 0.0
          %873 = vmatpush1.msra.mxu0 0.0
          %874 = vmatprep.subr.mxu0 0.0
          %875 = vmatpush1.msra.mxu0 0.0
          %876 = vmatprep.subr.mxu0 0.0
          %877 = vmatpush1.msra.mxu0 0.0
          %878 = vmatprep.subr.mxu0 %v857
          %879 = vmatpush1.msra.mxu0 %v856
          %880 = vmatprep.subr.mxu0 %v855
          %881 = vmatpush1.msra.mxu0 %v854
          %882 = vmatprep.subr.mxu0 %v853
          %883 = vmatpush1.msra.mxu0 %v852
          %884 = vmatprep.subr.mxu0 %v851
          %885 = vmatpush1.msra.mxu0 %v850
          %886 = vmatprep.subr.mxu0 %v849
          %887 = vmatpush1.msra.mxu0 %v848
          %888 = vmatprep.subr.mxu0 %v847
          %889 = vmatpush1.msra.mxu0 %v846
          %890 = vmatprep.subr.mxu0 %v845
          %891 = vmatpush1.msra.mxu0 %v844
          %892 = vmatprep.subr.mxu0 %v843
          %893 = vmatpush1.msra.mxu0 %v842
          %894 = vmatprep.subr.mxu0 0.0
          %895 = vmatpush2.msra.mxu0 0.0
          %896 = vmatprep.subr.mxu0 0.0
          %897 = vmatpush2.msra.mxu0 0.0
          %898 = vmatprep.subr.mxu0 0.0
          %899 = vmatpush2.msra.mxu0 0.0
          %900 = vmatprep.subr.mxu0 0.0
          %901 = vmatpush2.msra.mxu0 0.0
          %902 = vmatprep.subr.mxu0 0.0
          %903 = vmatpush2.msra.mxu0 0.0
          %904 = vmatprep.subr.mxu0 0.0
          %905 = vmatpush2.msra.mxu0 0.0
          %906 = vmatprep.subr.mxu0 0.0
          %907 = vmatpush2.msra.mxu0 0.0
          %908 = vmatprep.subr.mxu0 0.0
          %909 = vmatpush2.msra.mxu0 0.0
          %910 = vmatprep.subr.mxu0 0.0
          %911 = vmatpush2.msra.mxu0 0.0
          %912 = vmatprep.subr.mxu0 0.0
          %913 = vmatpush2.msra.mxu0 0.0
          %914 = vmatprep.subr.mxu0 0.0
          %915 = vmatpush2.msra.mxu0 0.0
          %916 = vmatprep.subr.mxu0 0.0
          %917 = vmatpush2.msra.mxu0 0.0
          %918 = vmatprep.subr.mxu0 0.0
          %919 = vmatpush2.msra.mxu0 0.0
          %920 = vmatprep.subr.mxu0 0.0
          %921 = vmatpush2.msra.mxu0 0.0
          %922 = vmatprep.subr.mxu0 0.0
          %923 = vmatpush2.msra.mxu0 0.0
          %924 = vmatprep.subr.mxu0 0.0
          %925 = vmatpush2.msra.mxu0 0.0
          %926 = vmatprep.mubr.f32.mxu0 0.0
          %927 = vmatmul.mubr.f32.gmra.mxu0 %v860
          %v928 = vpop.f32.mrf.mxu0
          %v929 = vadd.f32 0.0, %v928
          %v930 = vpop.f32.mrf.mxu0
          %v931 = vadd.f32 0.0, %v930
          %932 = vdwg.mxu0
          %v933 = vlaneseq
          %v934 = vshrl.u32 %v933, 7
          %v935 = vsub.s32 0, %v934
          %v936 = vrot.slane %v929, %v935
          %v937 = vlaneseq
          %v938 = vshrl.u32 %v937, 7
          %v939 = vsub.s32 0, %v938
          %v940 = vrot.slane %v931, %v939
          %v941 = vmul.f32 %v675, %v936
          %v942 = vmul.f32 %v677, %v940
          %v943 = vlaneseq
          %v944 = vshrl.u32 %v943, 7
          %v945 = vsub.s32 1, %v944
          %v946 = vrot.slane %v929, %v945
          %v947 = vlaneseq
          %v948 = vshrl.u32 %v947, 7
          %v949 = vsub.s32 1, %v948
          %v950 = vrot.slane %v931, %v949
          %v951 = vadd.f32 %v941, %v946
          %v952 = vadd.f32 %v942, %v950
          %v953 = vmax.f32 %v951, 0.0
          %v954 = vmax.f32 %v952, 0.0
          %v955 = vpack.c.bf16 %v953, %v953
          %v956 = vpack.c.bf16 %v954, %v954
          %v957 = vld [vmem:[#allocation8] sm:$0xff]
          %v958 = vld [vmem:[#allocation8 + $0x8] sm:$0xff]
          %v959 = vld [vmem:[#allocation8 + $0x10] sm:$0xff]
          %v960 = vld [vmem:[#allocation8 + $0x18] sm:$0xff]
          %v961 = vld [vmem:[#allocation8 + $0x20] sm:$0xff]
          %v962 = vld [vmem:[#allocation8 + $0x28] sm:$0xff]
          %v963 = vld [vmem:[#allocation8 + $0x30] sm:$0xff]
          %v964 = vld [vmem:[#allocation8 + $0x38] sm:$0xff]
          %v965 = vld [vmem:[#allocation8 + $0x40] sm:$0xff]
          %v966 = vld [vmem:[#allocation8 + $0x48] sm:$0xff]
          %v967 = vld [vmem:[#allocation8 + $0x50] sm:$0xff]
          %v968 = vld [vmem:[#allocation8 + $0x58] sm:$0xff]
          %v969 = vld [vmem:[#allocation8 + $0x60] sm:$0xff]
          %v970 = vld [vmem:[#allocation8 + $0x68] sm:$0xff]
          %v971 = vld [vmem:[#allocation8 + $0x70] sm:$0xff]
          %v972 = vld [vmem:[#allocation8 + $0x78] sm:$0xff]
          %v973 = vld [vmem:[#allocation8 + $0x80] sm:$0xff]
          %v974 = vld [vmem:[#allocation8 + $0x88] sm:$0xff]
          %v975 = vld [vmem:[#allocation8 + $0x90] sm:$0xff]
          %v976 = vld [vmem:[#allocation8 + $0x98] sm:$0xff]
          %v977 = vld [vmem:[#allocation8 + $0xa0] sm:$0xff]
          %v978 = vld [vmem:[#allocation8 + $0xa8] sm:$0xff]
          %v979 = vld [vmem:[#allocation8 + $0xb0] sm:$0xff]
          %v980 = vld [vmem:[#allocation8 + $0xb8] sm:$0xff]
          %v981 = vld [vmem:[#allocation8 + $0xc0] sm:$0xff]
          %v982 = vld [vmem:[#allocation8 + $0xc8] sm:$0xff]
          %v983 = vld [vmem:[#allocation8 + $0xd0] sm:$0xff]
          %v984 = vld [vmem:[#allocation8 + $0xd8] sm:$0xff]
          %v985 = vld [vmem:[#allocation8 + $0xe0] sm:$0xff]
          %v986 = vld [vmem:[#allocation8 + $0xe8] sm:$0xff]
          %v987 = vld [vmem:[#allocation8 + $0xf0] sm:$0xff]
          %v988 = vld [vmem:[#allocation8 + $0xf8] sm:$0xff]
          %v1021 = vunpack.c.l.b16 %v957
          %v1022 = vunpack.c.h.b16 %v957
          %v1023 = vunpack.c.l.b16 %v958
          %v1024 = vunpack.c.h.b16 %v958
          %v1025 = vunpack.c.l.b16 %v959
          %v1026 = vunpack.c.h.b16 %v959
          %v1027 = vunpack.c.l.b16 %v960
          %v1028 = vunpack.c.h.b16 %v960
          %v1029 = vunpack.c.l.b16 %v961
          %v1030 = vunpack.c.h.b16 %v961
          %v1031 = vunpack.c.l.b16 %v962
          %v1032 = vunpack.c.h.b16 %v962
          %v1033 = vunpack.c.l.b16 %v963
          %v1034 = vunpack.c.h.b16 %v963
          %v1035 = vunpack.c.l.b16 %v964
          %v1036 = vunpack.c.h.b16 %v964
          %v1037 = vunpack.c.l.b16 %v965
          %v1038 = vunpack.c.h.b16 %v965
          %v1039 = vunpack.c.l.b16 %v966
          %v1040 = vunpack.c.h.b16 %v966
          %v1041 = vunpack.c.l.b16 %v967
          %v1042 = vunpack.c.h.b16 %v967
          %v1043 = vunpack.c.l.b16 %v968
          %v1044 = vunpack.c.h.b16 %v968
          %v1045 = vunpack.c.l.b16 %v969
          %v1046 = vunpack.c.h.b16 %v969
          %v1047 = vunpack.c.l.b16 %v970
          %v1048 = vunpack.c.h.b16 %v970
          %v1049 = vunpack.c.l.b16 %v971
          %v1050 = vunpack.c.h.b16 %v971
          %v1051 = vunpack.c.l.b16 %v972
          %v1052 = vunpack.c.h.b16 %v972
          %v1053 = vunpack.c.l.b16 %v973
          %v1054 = vunpack.c.h.b16 %v973
          %v1055 = vunpack.c.l.b16 %v974
          %v1056 = vunpack.c.h.b16 %v974
          %v1057 = vunpack.c.l.b16 %v975
          %v1058 = vunpack.c.h.b16 %v975
          %v1059 = vunpack.c.l.b16 %v976
          %v1060 = vunpack.c.h.b16 %v976
          %v1061 = vunpack.c.l.b16 %v977
          %v1062 = vunpack.c.h.b16 %v977
          %v1063 = vunpack.c.l.b16 %v978
          %v1064 = vunpack.c.h.b16 %v978
          %v1065 = vunpack.c.l.b16 %v979
          %v1066 = vunpack.c.h.b16 %v979
          %v1067 = vunpack.c.l.b16 %v980
          %v1068 = vunpack.c.h.b16 %v980
          %v1069 = vunpack.c.l.b16 %v981
          %v1070 = vunpack.c.h.b16 %v981
          %v1071 = vunpack.c.l.b16 %v982
          %v1072 = vunpack.c.h.b16 %v982
          %v1073 = vunpack.c.l.b16 %v983
          %v1074 = vunpack.c.h.b16 %v983
          %v1075 = vunpack.c.l.b16 %v984
          %v1076 = vunpack.c.h.b16 %v984
          %v1077 = vunpack.c.l.b16 %v985
          %v1078 = vunpack.c.h.b16 %v985
          %v1079 = vunpack.c.l.b16 %v986
          %v1080 = vunpack.c.h.b16 %v986
          %v1081 = vunpack.c.l.b16 %v987
          %v1082 = vunpack.c.h.b16 %v987
          %v1083 = vunpack.c.l.b16 %v988
          %v1084 = vunpack.c.h.b16 %v988
          %v1085 = vpack.c.b16 %v1023, %v1021
          %v1086 = vpack.c.b16 %v1024, %v1022
          %v1087 = vpack.c.b16 %v1027, %v1025
          %v1088 = vpack.c.b16 %v1028, %v1026
          %v1089 = vpack.c.b16 %v1031, %v1029
          %v1090 = vpack.c.b16 %v1032, %v1030
          %v1091 = vpack.c.b16 %v1035, %v1033
          %v1092 = vpack.c.b16 %v1036, %v1034
          %v1093 = vpack.c.b16 %v1039, %v1037
          %v1094 = vpack.c.b16 %v1040, %v1038
          %v1095 = vpack.c.b16 %v1043, %v1041
          %v1096 = vpack.c.b16 %v1044, %v1042
          %v1097 = vpack.c.b16 %v1047, %v1045
          %v1098 = vpack.c.b16 %v1048, %v1046
          %v1099 = vpack.c.b16 %v1051, %v1049
          %v1100 = vpack.c.b16 %v1052, %v1050
          %v1101 = vpack.c.b16 %v1055, %v1053
          %v1102 = vpack.c.b16 %v1056, %v1054
          %v1103 = vpack.c.b16 %v1059, %v1057
          %v1104 = vpack.c.b16 %v1060, %v1058
          %v1105 = vpack.c.b16 %v1063, %v1061
          %v1106 = vpack.c.b16 %v1064, %v1062
          %v1107 = vpack.c.b16 %v1067, %v1065
          %v1108 = vpack.c.b16 %v1068, %v1066
          %v1109 = vpack.c.b16 %v1071, %v1069
          %v1110 = vpack.c.b16 %v1072, %v1070
          %v1111 = vpack.c.b16 %v1075, %v1073
          %v1112 = vpack.c.b16 %v1076, %v1074
          %v1113 = vpack.c.b16 %v1079, %v1077
          %v1114 = vpack.c.b16 %v1080, %v1078
          %v1115 = vpack.c.b16 %v1083, %v1081
          %v1116 = vpack.c.b16 %v1084, %v1082
          %1149 = vmatprep.subr.bf16.mxu0 %v1100
          %1150 = vmatpush1.bf16.msra.mxu0 %v1099
          %1151 = vmatprep.subr.bf16.mxu0 %v1098
          %1152 = vmatpush1.bf16.msra.mxu0 %v1097
          %1153 = vmatprep.subr.bf16.mxu0 %v1096
          %1154 = vmatpush1.bf16.msra.mxu0 %v1095
          %1155 = vmatprep.subr.bf16.mxu0 %v1094
          %1156 = vmatpush1.bf16.msra.mxu0 %v1093
          %1157 = vmatprep.subr.bf16.mxu0 %v1092
          %1158 = vmatpush1.bf16.msra.mxu0 %v1091
          %1159 = vmatprep.subr.bf16.mxu0 %v1090
          %1160 = vmatpush1.bf16.msra.mxu0 %v1089
          %1161 = vmatprep.subr.bf16.mxu0 %v1088
          %1162 = vmatpush1.bf16.msra.mxu0 %v1087
          %1163 = vmatprep.subr.bf16.mxu0 %v1086
          %1164 = vmatpush1.bf16.msra.mxu0 %v1085
          %1165 = vmatprep.subr.bf16.mxu0 %v1116
          %1166 = vmatpush2.bf16.msra.mxu0 %v1115
          %1167 = vmatprep.subr.bf16.mxu0 %v1114
          %1168 = vmatpush2.bf16.msra.mxu0 %v1113
          %1169 = vmatprep.subr.bf16.mxu0 %v1112
          %1170 = vmatpush2.bf16.msra.mxu0 %v1111
          %1171 = vmatprep.subr.bf16.mxu0 %v1110
          %1172 = vmatpush2.bf16.msra.mxu0 %v1109
          %1173 = vmatprep.subr.bf16.mxu0 %v1108
          %1174 = vmatpush2.bf16.msra.mxu0 %v1107
          %1175 = vmatprep.subr.bf16.mxu0 %v1106
          %1176 = vmatpush2.bf16.msra.mxu0 %v1105
          %1177 = vmatprep.subr.bf16.mxu0 %v1104
          %1178 = vmatpush2.bf16.msra.mxu0 %v1103
          %1179 = vmatprep.subr.bf16.mxu0 %v1102
          %1180 = vmatpush2.bf16.msra.mxu0 %v1101
          %1181 = vmatprep.mubr.bf16.mxu0 %v956
          %1182 = vmatmul.mubr.bf16.gmra.mxu0 %v955
          %v1183 = vpop.f32.mrf.mxu0
          %v1184 = vadd.f32 0.0, %v1183
          %v1185 = vpop.f32.mrf.mxu0
          %v1186 = vadd.f32 0.0, %v1185
          %v1187 = vpop.f32.mrf.mxu0
          %v1188 = vpop.f32.mrf.mxu0
          %1189 = vdwg.mxu0
          %v1190 = vsel %vm681, %v1184, 0.0
          %v1191 = vrot.slane %v1190, 4
          %v1192 = vadd.f32 %v1190, %v1191
          %v1193 = vrot.slane %v1192, 2
          %v1194 = vadd.f32 %v1192, %v1193
          %v1195 = vrot.slane %v1194, 1
          %v1196 = vadd.f32 %v1194, %v1195
          %v1197 = vsel %vm681, %v1186, 0.0
          %v1198 = vrot.slane %v1197, 4
          %v1199 = vadd.f32 %v1197, %v1198
          %v1200 = vrot.slane %v1199, 2
          %v1201 = vadd.f32 %v1199, %v1200
          %v1202 = vrot.slane %v1201, 1
          %v1203 = vadd.f32 %v1201, %v1202
          %v1204 = vmul.f32 %v1184, %v1184
          %v1205 = vmul.f32 %v1186, %v1186
          %v1206 = vsel %vm681, %v1204, 0.0
          %v1207 = vrot.slane %v1206, 4
          %v1208 = vadd.f32 %v1206, %v1207
          %v1209 = vrot.slane %v1208, 2
          %v1210 = vadd.f32 %v1208, %v1209
          %v1211 = vrot.slane %v1210, 1
          %v1212 = vadd.f32 %v1210, %v1211
          %v1213 = vsel %vm681, %v1205, 0.0
          %v1214 = vrot.slane %v1213, 4
          %v1215 = vadd.f32 %v1213, %v1214
          %v1216 = vrot.slane %v1215, 2
          %v1217 = vadd.f32 %v1215, %v1216
          %v1218 = vrot.slane %v1217, 1
          %v1219 = vadd.f32 %v1217, %v1218
          %v1220 = vsel %vm714, %v1196, %v1212
          %v1221 = vsel %vm714, %v1203, %v1219
          %v1222 = vld [vmem:[%s5] sm:$0xff]
          %v1223 = vld [vmem:[%s5 + $0x8] sm:$0xff]
          %v1224 = vld [vmem:[%s5 + $0x10] sm:$0xff]
          %v1225 = vld [vmem:[%s5 + $0x18] sm:$0xff]
          %v1226 = vld [vmem:[%s5 + $0x20] sm:$0xff]
          %v1227 = vld [vmem:[%s5 + $0x28] sm:$0xff]
          %v1228 = vld [vmem:[%s5 + $0x30] sm:$0xff]
          %v1229 = vld [vmem:[%s5 + $0x38] sm:$0xff]
          %v1230 = vld [vmem:[%s5 + $0x40] sm:$0xff]
          %v1231 = vld [vmem:[%s5 + $0x48] sm:$0xff]
          %v1232 = vld [vmem:[%s5 + $0x50] sm:$0xff]
          %v1233 = vld [vmem:[%s5 + $0x58] sm:$0xff]
          %v1234 = vld [vmem:[%s5 + $0x60] sm:$0xff]
          %v1235 = vld [vmem:[%s5 + $0x68] sm:$0xff]
          %v1236 = vld [vmem:[%s5 + $0x70] sm:$0xff]
          %v1237 = vld [vmem:[%s5 + $0x78] sm:$0xff]
          %v1238 = vld [vmem:[%s5 + $0x80] sm:$0xff]
          %v1239 = vld [vmem:[%s5 + $0x88] sm:$0xff]
          %v1240 = vld [vmem:[%s5 + $0x90] sm:$0xff]
          %v1241 = vld [vmem:[%s5 + $0x98] sm:$0xff]
          %v1242 = vld [vmem:[%s5 + $0xa0] sm:$0xff]
          %v1243 = vld [vmem:[%s5 + $0xa8] sm:$0xff]
          %v1244 = vld [vmem:[%s5 + $0xb0] sm:$0xff]
          %v1245 = vld [vmem:[%s5 + $0xb8] sm:$0xff]
          %v1246 = vld [vmem:[%s5 + $0xc0] sm:$0xff]
          %v1247 = vld [vmem:[%s5 + $0xc8] sm:$0xff]
          %v1248 = vld [vmem:[%s5 + $0xd0] sm:$0xff]
          %v1249 = vld [vmem:[%s5 + $0xd8] sm:$0xff]
          %v1250 = vld [vmem:[%s5 + $0xe0] sm:$0xff]
          %v1251 = vld [vmem:[%s5 + $0xe8] sm:$0xff]
          %v1252 = vld [vmem:[%s5 + $0xf0] sm:$0xff]
          %v1253 = vld [vmem:[%s5 + $0xf8] sm:$0xff]
          %1254 = vmatprep.subr.mxu0 0.0
          %1255 = vmatpush1.msra.mxu0 %v1237
          %1256 = vmatprep.subr.mxu0 0.0
          %1257 = vmatpush1.msra.mxu0 %v1236
          %1258 = vmatprep.subr.mxu0 0.0
          %1259 = vmatpush1.msra.mxu0 %v1235
          %1260 = vmatprep.subr.mxu0 0.0
          %1261 = vmatpush1.msra.mxu0 %v1234
          %1262 = vmatprep.subr.mxu0 0.0
          %1263 = vmatpush1.msra.mxu0 %v1233
          %1264 = vmatprep.subr.mxu0 0.0
          %1265 = vmatpush1.msra.mxu0 %v1232
          %1266 = vmatprep.subr.mxu0 0.0
          %1267 = vmatpush1.msra.mxu0 %v1231
          %1268 = vmatprep.subr.mxu0 0.0
          %1269 = vmatpush1.msra.mxu0 %v1230
          %1270 = vmatprep.subr.mxu0 0.0
          %1271 = vmatpush1.msra.mxu0 %v1229
          %1272 = vmatprep.subr.mxu0 0.0
          %1273 = vmatpush1.msra.mxu0 %v1228
          %1274 = vmatprep.subr.mxu0 0.0
          %1275 = vmatpush1.msra.mxu0 %v1227
          %1276 = vmatprep.subr.mxu0 0.0
          %1277 = vmatpush1.msra.mxu0 %v1226
          %1278 = vmatprep.subr.mxu0 0.0
          %1279 = vmatpush1.msra.mxu0 %v1225
          %1280 = vmatprep.subr.mxu0 0.0
          %1281 = vmatpush1.msra.mxu0 %v1224
          %1282 = vmatprep.subr.mxu0 0.0
          %1283 = vmatpush1.msra.mxu0 %v1223
          %1284 = vmatprep.subr.mxu0 0.0
          %1285 = vmatpush1.msra.mxu0 %v1222
          %1286 = vmatprep.subr.mxu0 0.0
          %1287 = vmatpush2.msra.mxu0 %v1253
          %1288 = vmatprep.subr.mxu0 0.0
          %1289 = vmatpush2.msra.mxu0 %v1252
          %1290 = vmatprep.subr.mxu0 0.0
          %1291 = vmatpush2.msra.mxu0 %v1251
          %1292 = vmatprep.subr.mxu0 0.0
          %1293 = vmatpush2.msra.mxu0 %v1250
          %1294 = vmatprep.subr.mxu0 0.0
          %1295 = vmatpush2.msra.mxu0 %v1249
          %1296 = vmatprep.subr.mxu0 0.0
          %1297 = vmatpush2.msra.mxu0 %v1248
          %1298 = vmatprep.subr.mxu0 0.0
          %1299 = vmatpush2.msra.mxu0 %v1247
          %1300 = vmatprep.subr.mxu0 0.0
          %1301 = vmatpush2.msra.mxu0 %v1246
          %1302 = vmatprep.subr.mxu0 0.0
          %1303 = vmatpush2.msra.mxu0 %v1245
          %1304 = vmatprep.subr.mxu0 0.0
          %1305 = vmatpush2.msra.mxu0 %v1244
          %1306 = vmatprep.subr.mxu0 0.0
          %1307 = vmatpush2.msra.mxu0 %v1243
          %1308 = vmatprep.subr.mxu0 0.0
          %1309 = vmatpush2.msra.mxu0 %v1242
          %1310 = vmatprep.subr.mxu0 0.0
          %1311 = vmatpush2.msra.mxu0 %v1241
          %1312 = vmatprep.subr.mxu0 0.0
          %1313 = vmatpush2.msra.mxu0 %v1240
          %1314 = vmatprep.subr.mxu0 0.0
          %1315 = vmatpush2.msra.mxu0 %v1239
          %1316 = vmatprep.subr.mxu0 0.0
          %1317 = vmatpush2.msra.mxu0 %v1238
          %1318 = vmatprep.mubr.f32.mxu0 %v1221
          %1319 = vmatmul.mubr.f32.gmra.mxu0 %v1220
          %v1320 = vpop.f32.mrf.mxu0
          %v1321 = vadd.f32 0.0, %v1320
          %v1322 = vpop.f32.mrf.mxu0
          %1323 = vdwg.mxu0
          %v1324 = vmul.f32 %v1321, 0.0625
          %v1325 = vmul.f32 %v1324, %v1324
          %v1327 = vrot.slane %v1325, 7
          %v1329 = vsub.f32 %v1324, %v1327
          %v1330 = vmax.f32 %v1329, 0.0
          %v1331 = vadd.f32 %v1330, 1e-05
          %v1332 = vrsqrt.pop %v1331
          %v1333 = vsub.f32 0.0, %v1324
          %v1335 = vrot.slane %v1332, 1
          %v1337 = vmul.f32 %v1333, %v1335
          %v1338 = vlaneseq
          %v1339 = vshrl.u32 %v1338, 7
          %v1340 = vsub.s32 1, %v1339
          %v1341 = vrot.slane %v1332, %v1340
          %v1342 = vlaneseq
          %v1343 = vshrl.u32 %v1342, 7
          %v1344 = vsub.s32 0, %v1343
          %v1345 = vrot.slane %v1337, %v1344
          %v1346 = vsel %vm714, %v1341, %v1345
          %v1347 = vld [vmem:[#allocation10] sm:$0xff]
          %v1348 = vld [vmem:[#allocation10 + $0x8] sm:$0xff]
          %v1349 = vld [vmem:[#allocation10 + $0x10] sm:$0xff]
          %v1350 = vld [vmem:[#allocation10 + $0x18] sm:$0xff]
          %v1351 = vld [vmem:[#allocation10 + $0x20] sm:$0xff]
          %v1352 = vld [vmem:[#allocation10 + $0x28] sm:$0xff]
          %v1353 = vld [vmem:[#allocation10 + $0x30] sm:$0xff]
          %v1354 = vld [vmem:[#allocation10 + $0x38] sm:$0xff]
          %vm1355 = vcmask 261120
          %v1357 = vsel %vm1355, %v1346, 0
          %1359 = vmatprep.subr.mxu0 0.0
          %1360 = vmatpush1.msra.mxu0 0.0
          %1361 = vmatprep.subr.mxu0 0.0
          %1362 = vmatpush1.msra.mxu0 0.0
          %1363 = vmatprep.subr.mxu0 0.0
          %1364 = vmatpush1.msra.mxu0 0.0
          %1365 = vmatprep.subr.mxu0 0.0
          %1366 = vmatpush1.msra.mxu0 0.0
          %1367 = vmatprep.subr.mxu0 0.0
          %1368 = vmatpush1.msra.mxu0 0.0
          %1369 = vmatprep.subr.mxu0 0.0
          %1370 = vmatpush1.msra.mxu0 0.0
          %1371 = vmatprep.subr.mxu0 0.0
          %1372 = vmatpush1.msra.mxu0 0.0
          %1373 = vmatprep.subr.mxu0 0.0
          %1374 = vmatpush1.msra.mxu0 0.0
          %1375 = vmatprep.subr.mxu0 0.0
          %1376 = vmatpush1.msra.mxu0 0.0
          %1377 = vmatprep.subr.mxu0 0.0
          %1378 = vmatpush1.msra.mxu0 0.0
          %1379 = vmatprep.subr.mxu0 0.0
          %1380 = vmatpush1.msra.mxu0 0.0
          %1381 = vmatprep.subr.mxu0 0.0
          %1382 = vmatpush1.msra.mxu0 0.0
          %1383 = vmatprep.subr.mxu0 %v1354
          %1384 = vmatpush1.msra.mxu0 %v1353
          %1385 = vmatprep.subr.mxu0 %v1352
          %1386 = vmatpush1.msra.mxu0 %v1351
          %1387 = vmatprep.subr.mxu0 %v1350
          %1388 = vmatpush1.msra.mxu0 %v1349
          %1389 = vmatprep.subr.mxu0 %v1348
          %1390 = vmatpush1.msra.mxu0 %v1347
          %1391 = vmatprep.subr.mxu0 0.0
          %1392 = vmatpush2.msra.mxu0 0.0
          %1393 = vmatprep.subr.mxu0 0.0
          %1394 = vmatpush2.msra.mxu0 0.0
          %1395 = vmatprep.subr.mxu0 0.0
          %1396 = vmatpush2.msra.mxu0 0.0
          %1397 = vmatprep.subr.mxu0 0.0
          %1398 = vmatpush2.msra.mxu0 0.0
          %1399 = vmatprep.subr.mxu0 0.0
          %1400 = vmatpush2.msra.mxu0 0.0
          %1401 = vmatprep.subr.mxu0 0.0
          %1402 = vmatpush2.msra.mxu0 0.0
          %1403 = vmatprep.subr.mxu0 0.0
          %1404 = vmatpush2.msra.mxu0 0.0
          %1405 = vmatprep.subr.mxu0 0.0
          %1406 = vmatpush2.msra.mxu0 0.0
          %1407 = vmatprep.subr.mxu0 0.0
          %1408 = vmatpush2.msra.mxu0 0.0
          %1409 = vmatprep.subr.mxu0 0.0
          %1410 = vmatpush2.msra.mxu0 0.0
          %1411 = vmatprep.subr.mxu0 0.0
          %1412 = vmatpush2.msra.mxu0 0.0
          %1413 = vmatprep.subr.mxu0 0.0
          %1414 = vmatpush2.msra.mxu0 0.0
          %1415 = vmatprep.subr.mxu0 0.0
          %1416 = vmatpush2.msra.mxu0 0.0
          %1417 = vmatprep.subr.mxu0 0.0
          %1418 = vmatpush2.msra.mxu0 0.0
          %1419 = vmatprep.subr.mxu0 0.0
          %1420 = vmatpush2.msra.mxu0 0.0
          %1421 = vmatprep.subr.mxu0 0.0
          %1422 = vmatpush2.msra.mxu0 0.0
          %1423 = vmatprep.mubr.f32.mxu0 0.0
          %1424 = vmatmul.mubr.f32.gmra.mxu0 %v1357
          %v1425 = vpop.f32.mrf.mxu0
          %v1426 = vadd.f32 0.0, %v1425
          %v1427 = vpop.f32.mrf.mxu0
          %v1428 = vadd.f32 0.0, %v1427
          %1429 = vdwg.mxu0
          %v1430 = vlaneseq
          %v1431 = vshrl.u32 %v1430, 7
          %v1432 = vsub.s32 0, %v1431
          %v1433 = vrot.slane %v1426, %v1432
          %v1434 = vlaneseq
          %v1435 = vshrl.u32 %v1434, 7
          %v1436 = vsub.s32 0, %v1435
          %v1437 = vrot.slane %v1428, %v1436
          %v1438 = vmul.f32 %v1184, %v1433
          %v1439 = vmul.f32 %v1186, %v1437
          %v1440 = vlaneseq
          %v1441 = vshrl.u32 %v1440, 7
          %v1442 = vsub.s32 1, %v1441
          %v1443 = vrot.slane %v1426, %v1442
          %v1444 = vlaneseq
          %v1445 = vshrl.u32 %v1444, 7
          %v1446 = vsub.s32 1, %v1445
          %v1447 = vrot.slane %v1428, %v1446
          %v1448 = vadd.f32 %v1438, %v1443
          %v1449 = vadd.f32 %v1439, %v1447
          %v1450 = vmax.f32 %v1448, 0.0
          %v1451 = vmax.f32 %v1449, 0.0
          %v1452 = vpack.c.bf16 %v1450, %v1450
          %v1453 = vpack.c.bf16 %v1451, %v1451
          %v1454 = vld [vmem:[#allocation11] sm:$0xff]
          %v1455 = vld [vmem:[#allocation11 + $0x8] sm:$0xff]
          %v1456 = vld [vmem:[#allocation11 + $0x10] sm:$0xff]
          %v1457 = vld [vmem:[#allocation11 + $0x18] sm:$0xff]
          %v1458 = vld [vmem:[#allocation11 + $0x20] sm:$0xff]
          %v1459 = vld [vmem:[#allocation11 + $0x28] sm:$0xff]
          %v1460 = vld [vmem:[#allocation11 + $0x30] sm:$0xff]
          %v1461 = vld [vmem:[#allocation11 + $0x38] sm:$0xff]
          %v1462 = vld [vmem:[#allocation11 + $0x40] sm:$0xff]
          %v1463 = vld [vmem:[#allocation11 + $0x48] sm:$0xff]
          %v1464 = vld [vmem:[#allocation11 + $0x50] sm:$0xff]
          %v1465 = vld [vmem:[#allocation11 + $0x58] sm:$0xff]
          %v1466 = vld [vmem:[#allocation11 + $0x60] sm:$0xff]
          %v1467 = vld [vmem:[#allocation11 + $0x68] sm:$0xff]
          %v1468 = vld [vmem:[#allocation11 + $0x70] sm:$0xff]
          %v1469 = vld [vmem:[#allocation11 + $0x78] sm:$0xff]
          %v1470 = vld [vmem:[#allocation11 + $0x80] sm:$0xff]
          %v1471 = vld [vmem:[#allocation11 + $0x88] sm:$0xff]
          %v1472 = vld [vmem:[#allocation11 + $0x90] sm:$0xff]
          %v1473 = vld [vmem:[#allocation11 + $0x98] sm:$0xff]
          %v1474 = vld [vmem:[#allocation11 + $0xa0] sm:$0xff]
          %v1475 = vld [vmem:[#allocation11 + $0xa8] sm:$0xff]
          %v1476 = vld [vmem:[#allocation11 + $0xb0] sm:$0xff]
          %v1477 = vld [vmem:[#allocation11 + $0xb8] sm:$0xff]
          %v1478 = vld [vmem:[#allocation11 + $0xc0] sm:$0xff]
          %v1479 = vld [vmem:[#allocation11 + $0xc8] sm:$0xff]
          %v1480 = vld [vmem:[#allocation11 + $0xd0] sm:$0xff]
          %v1481 = vld [vmem:[#allocation11 + $0xd8] sm:$0xff]
          %v1482 = vld [vmem:[#allocation11 + $0xe0] sm:$0xff]
          %v1483 = vld [vmem:[#allocation11 + $0xe8] sm:$0xff]
          %v1484 = vld [vmem:[#allocation11 + $0xf0] sm:$0xff]
          %v1485 = vld [vmem:[#allocation11 + $0xf8] sm:$0xff]
          %v1518 = vunpack.c.l.b16 %v1454
          %v1519 = vunpack.c.h.b16 %v1454
          %v1520 = vunpack.c.l.b16 %v1455
          %v1521 = vunpack.c.h.b16 %v1455
          %v1522 = vunpack.c.l.b16 %v1456
          %v1523 = vunpack.c.h.b16 %v1456
          %v1524 = vunpack.c.l.b16 %v1457
          %v1525 = vunpack.c.h.b16 %v1457
          %v1526 = vunpack.c.l.b16 %v1458
          %v1527 = vunpack.c.h.b16 %v1458
          %v1528 = vunpack.c.l.b16 %v1459
          %v1529 = vunpack.c.h.b16 %v1459
          %v1530 = vunpack.c.l.b16 %v1460
          %v1531 = vunpack.c.h.b16 %v1460
          %v1532 = vunpack.c.l.b16 %v1461
          %v1533 = vunpack.c.h.b16 %v1461
          %v1534 = vunpack.c.l.b16 %v1462
          %v1535 = vunpack.c.h.b16 %v1462
          %v1536 = vunpack.c.l.b16 %v1463
          %v1537 = vunpack.c.h.b16 %v1463
          %v1538 = vunpack.c.l.b16 %v1464
          %v1539 = vunpack.c.h.b16 %v1464
          %v1540 = vunpack.c.l.b16 %v1465
          %v1541 = vunpack.c.h.b16 %v1465
          %v1542 = vunpack.c.l.b16 %v1466
          %v1543 = vunpack.c.h.b16 %v1466
          %v1544 = vunpack.c.l.b16 %v1467
          %v1545 = vunpack.c.h.b16 %v1467
          %v1546 = vunpack.c.l.b16 %v1468
          %v1547 = vunpack.c.h.b16 %v1468
          %v1548 = vunpack.c.l.b16 %v1469
          %v1549 = vunpack.c.h.b16 %v1469
          %v1550 = vunpack.c.l.b16 %v1470
          %v1551 = vunpack.c.h.b16 %v1470
          %v1552 = vunpack.c.l.b16 %v1471
          %v1553 = vunpack.c.h.b16 %v1471
          %v1554 = vunpack.c.l.b16 %v1472
          %v1555 = vunpack.c.h.b16 %v1472
          %v1556 = vunpack.c.l.b16 %v1473
          %v1557 = vunpack.c.h.b16 %v1473
          %v1558 = vunpack.c.l.b16 %v1474
          %v1559 = vunpack.c.h.b16 %v1474
          %v1560 = vunpack.c.l.b16 %v1475
          %v1561 = vunpack.c.h.b16 %v1475
          %v1562 = vunpack.c.l.b16 %v1476
          %v1563 = vunpack.c.h.b16 %v1476
          %v1564 = vunpack.c.l.b16 %v1477
          %v1565 = vunpack.c.h.b16 %v1477
          %v1566 = vunpack.c.l.b16 %v1478
          %v1567 = vunpack.c.h.b16 %v1478
          %v1568 = vunpack.c.l.b16 %v1479
          %v1569 = vunpack.c.h.b16 %v1479
          %v1570 = vunpack.c.l.b16 %v1480
          %v1571 = vunpack.c.h.b16 %v1480
          %v1572 = vunpack.c.l.b16 %v1481
          %v1573 = vunpack.c.h.b16 %v1481
          %v1574 = vunpack.c.l.b16 %v1482
          %v1575 = vunpack.c.h.b16 %v1482
          %v1576 = vunpack.c.l.b16 %v1483
          %v1577 = vunpack.c.h.b16 %v1483
          %v1578 = vunpack.c.l.b16 %v1484
          %v1579 = vunpack.c.h.b16 %v1484
          %v1580 = vunpack.c.l.b16 %v1485
          %v1581 = vunpack.c.h.b16 %v1485
          %v1582 = vpack.c.b16 %v1520, %v1518
          %v1583 = vpack.c.b16 %v1521, %v1519
          %v1584 = vpack.c.b16 %v1524, %v1522
          %v1585 = vpack.c.b16 %v1525, %v1523
          %v1586 = vpack.c.b16 %v1528, %v1526
          %v1587 = vpack.c.b16 %v1529, %v1527
          %v1588 = vpack.c.b16 %v1532, %v1530
          %v1589 = vpack.c.b16 %v1533, %v1531
          %v1590 = vpack.c.b16 %v1536, %v1534
          %v1591 = vpack.c.b16 %v1537, %v1535
          %v1592 = vpack.c.b16 %v1540, %v1538
          %v1593 = vpack.c.b16 %v1541, %v1539
          %v1594 = vpack.c.b16 %v1544, %v1542
          %v1595 = vpack.c.b16 %v1545, %v1543
          %v1596 = vpack.c.b16 %v1548, %v1546
          %v1597 = vpack.c.b16 %v1549, %v1547
          %v1598 = vpack.c.b16 %v1552, %v1550
          %v1599 = vpack.c.b16 %v1553, %v1551
          %v1600 = vpack.c.b16 %v1556, %v1554
          %v1601 = vpack.c.b16 %v1557, %v1555
          %v1602 = vpack.c.b16 %v1560, %v1558
          %v1603 = vpack.c.b16 %v1561, %v1559
          %v1604 = vpack.c.b16 %v1564, %v1562
          %v1605 = vpack.c.b16 %v1565, %v1563
          %v1606 = vpack.c.b16 %v1568, %v1566
          %v1607 = vpack.c.b16 %v1569, %v1567
          %v1608 = vpack.c.b16 %v1572, %v1570
          %v1609 = vpack.c.b16 %v1573, %v1571
          %v1610 = vpack.c.b16 %v1576, %v1574
          %v1611 = vpack.c.b16 %v1577, %v1575
          %v1612 = vpack.c.b16 %v1580, %v1578
          %v1613 = vpack.c.b16 %v1581, %v1579
          %1646 = vmatprep.subr.bf16.mxu0 %v1597
          %1647 = vmatpush1.bf16.msra.mxu0 %v1596
          %1648 = vmatprep.subr.bf16.mxu0 %v1595
          %1649 = vmatpush1.bf16.msra.mxu0 %v1594
          %1650 = vmatprep.subr.bf16.mxu0 %v1593
          %1651 = vmatpush1.bf16.msra.mxu0 %v1592
          %1652 = vmatprep.subr.bf16.mxu0 %v1591
          %1653 = vmatpush1.bf16.msra.mxu0 %v1590
          %1654 = vmatprep.subr.bf16.mxu0 %v1589
          %1655 = vmatpush1.bf16.msra.mxu0 %v1588
          %1656 = vmatprep.subr.bf16.mxu0 %v1587
          %1657 = vmatpush1.bf16.msra.mxu0 %v1586
          %1658 = vmatprep.subr.bf16.mxu0 %v1585
          %1659 = vmatpush1.bf16.msra.mxu0 %v1584
          %1660 = vmatprep.subr.bf16.mxu0 %v1583
          %1661 = vmatpush1.bf16.msra.mxu0 %v1582
          %1662 = vmatprep.subr.bf16.mxu0 %v1613
          %1663 = vmatpush2.bf16.msra.mxu0 %v1612
          %1664 = vmatprep.subr.bf16.mxu0 %v1611
          %1665 = vmatpush2.bf16.msra.mxu0 %v1610
          %1666 = vmatprep.subr.bf16.mxu0 %v1609
          %1667 = vmatpush2.bf16.msra.mxu0 %v1608
          %1668 = vmatprep.subr.bf16.mxu0 %v1607
          %1669 = vmatpush2.bf16.msra.mxu0 %v1606
          %1670 = vmatprep.subr.bf16.mxu0 %v1605
          %1671 = vmatpush2.bf16.msra.mxu0 %v1604
          %1672 = vmatprep.subr.bf16.mxu0 %v1603
          %1673 = vmatpush2.bf16.msra.mxu0 %v1602
          %1674 = vmatprep.subr.bf16.mxu0 %v1601
          %1675 = vmatpush2.bf16.msra.mxu0 %v1600
          %1676 = vmatprep.subr.bf16.mxu0 %v1599
          %1677 = vmatpush2.bf16.msra.mxu0 %v1598
          %1678 = vmatprep.mubr.bf16.mxu0 %v1453
          %1679 = vmatmul.mubr.bf16.gmra.mxu0 %v1452
          %v1680 = vpop.f32.mrf.mxu0
          %v1681 = vadd.f32 0.0, %v1680
          %v1682 = vpop.f32.mrf.mxu0
          %v1683 = vadd.f32 0.0, %v1682
          %v1684 = vpop.f32.mrf.mxu0
          %v1685 = vpop.f32.mrf.mxu0
          %1686 = vdwg.mxu0
          %v1687 = vsel %vm681, %v1681, 0.0
          %v1688 = vrot.slane %v1687, 4
          %v1689 = vadd.f32 %v1687, %v1688
          %v1690 = vrot.slane %v1689, 2
          %v1691 = vadd.f32 %v1689, %v1690
          %v1692 = vrot.slane %v1691, 1
          %v1693 = vadd.f32 %v1691, %v1692
          %v1694 = vsel %vm681, %v1683, 0.0
          %v1695 = vrot.slane %v1694, 4
          %v1696 = vadd.f32 %v1694, %v1695
          %v1697 = vrot.slane %v1696, 2
          %v1698 = vadd.f32 %v1696, %v1697
          %v1699 = vrot.slane %v1698, 1
          %v1700 = vadd.f32 %v1698, %v1699
          %v1701 = vmul.f32 %v1681, %v1681
          %v1702 = vmul.f32 %v1683, %v1683
          %v1703 = vsel %vm681, %v1701, 0.0
          %v1704 = vrot.slane %v1703, 4
          %v1705 = vadd.f32 %v1703, %v1704
          %v1706 = vrot.slane %v1705, 2
          %v1707 = vadd.f32 %v1705, %v1706
          %v1708 = vrot.slane %v1707, 1
          %v1709 = vadd.f32 %v1707, %v1708
          %v1710 = vsel %vm681, %v1702, 0.0
          %v1711 = vrot.slane %v1710, 4
          %v1712 = vadd.f32 %v1710, %v1711
          %v1713 = vrot.slane %v1712, 2
          %v1714 = vadd.f32 %v1712, %v1713
          %v1715 = vrot.slane %v1714, 1
          %v1716 = vadd.f32 %v1714, %v1715
          %v1717 = vsel %vm714, %v1693, %v1709
          %v1718 = vsel %vm714, %v1700, %v1716
          %v1719 = vld [vmem:[%s8] sm:$0xff]
          %v1720 = vld [vmem:[%s8 + $0x8] sm:$0xff]
          %v1721 = vld [vmem:[%s8 + $0x10] sm:$0xff]
          %v1722 = vld [vmem:[%s8 + $0x18] sm:$0xff]
          %v1723 = vld [vmem:[%s8 + $0x20] sm:$0xff]
          %v1724 = vld [vmem:[%s8 + $0x28] sm:$0xff]
          %v1725 = vld [vmem:[%s8 + $0x30] sm:$0xff]
          %v1726 = vld [vmem:[%s8 + $0x38] sm:$0xff]
          %v1727 = vld [vmem:[%s8 + $0x40] sm:$0xff]
          %v1728 = vld [vmem:[%s8 + $0x48] sm:$0xff]
          %v1729 = vld [vmem:[%s8 + $0x50] sm:$0xff]
          %v1730 = vld [vmem:[%s8 + $0x58] sm:$0xff]
          %v1731 = vld [vmem:[%s8 + $0x60] sm:$0xff]
          %v1732 = vld [vmem:[%s8 + $0x68] sm:$0xff]
          %v1733 = vld [vmem:[%s8 + $0x70] sm:$0xff]
          %v1734 = vld [vmem:[%s8 + $0x78] sm:$0xff]
          %v1735 = vld [vmem:[%s8 + $0x80] sm:$0xff]
          %v1736 = vld [vmem:[%s8 + $0x88] sm:$0xff]
          %v1737 = vld [vmem:[%s8 + $0x90] sm:$0xff]
          %v1738 = vld [vmem:[%s8 + $0x98] sm:$0xff]
          %v1739 = vld [vmem:[%s8 + $0xa0] sm:$0xff]
          %v1740 = vld [vmem:[%s8 + $0xa8] sm:$0xff]
          %v1741 = vld [vmem:[%s8 + $0xb0] sm:$0xff]
          %v1742 = vld [vmem:[%s8 + $0xb8] sm:$0xff]
          %v1743 = vld [vmem:[%s8 + $0xc0] sm:$0xff]
          %v1744 = vld [vmem:[%s8 + $0xc8] sm:$0xff]
          %v1745 = vld [vmem:[%s8 + $0xd0] sm:$0xff]
          %v1746 = vld [vmem:[%s8 + $0xd8] sm:$0xff]
          %v1747 = vld [vmem:[%s8 + $0xe0] sm:$0xff]
          %v1748 = vld [vmem:[%s8 + $0xe8] sm:$0xff]
          %v1749 = vld [vmem:[%s8 + $0xf0] sm:$0xff]
          %v1750 = vld [vmem:[%s8 + $0xf8] sm:$0xff]
          %1751 = vmatprep.subr.mxu0 0.0
          %1752 = vmatpush1.msra.mxu0 %v1734
          %1753 = vmatprep.subr.mxu0 0.0
          %1754 = vmatpush1.msra.mxu0 %v1733
          %1755 = vmatprep.subr.mxu0 0.0
          %1756 = vmatpush1.msra.mxu0 %v1732
          %1757 = vmatprep.subr.mxu0 0.0
          %1758 = vmatpush1.msra.mxu0 %v1731
          %1759 = vmatprep.subr.mxu0 0.0
          %1760 = vmatpush1.msra.mxu0 %v1730
          %1761 = vmatprep.subr.mxu0 0.0
          %1762 = vmatpush1.msra.mxu0 %v1729
          %1763 = vmatprep.subr.mxu0 0.0
          %1764 = vmatpush1.msra.mxu0 %v1728
          %1765 = vmatprep.subr.mxu0 0.0
          %1766 = vmatpush1.msra.mxu0 %v1727
          %1767 = vmatprep.subr.mxu0 0.0
          %1768 = vmatpush1.msra.mxu0 %v1726
          %1769 = vmatprep.subr.mxu0 0.0
          %1770 = vmatpush1.msra.mxu0 %v1725
          %1771 = vmatprep.subr.mxu0 0.0
          %1772 = vmatpush1.msra.mxu0 %v1724
          %1773 = vmatprep.subr.mxu0 0.0
          %1774 = vmatpush1.msra.mxu0 %v1723
          %1775 = vmatprep.subr.mxu0 0.0
          %1776 = vmatpush1.msra.mxu0 %v1722
          %1777 = vmatprep.subr.mxu0 0.0
          %1778 = vmatpush1.msra.mxu0 %v1721
          %1779 = vmatprep.subr.mxu0 0.0
          %1780 = vmatpush1.msra.mxu0 %v1720
          %1781 = vmatprep.subr.mxu0 0.0
          %1782 = vmatpush1.msra.mxu0 %v1719
          %1783 = vmatprep.subr.mxu0 0.0
          %1784 = vmatpush2.msra.mxu0 %v1750
          %1785 = vmatprep.subr.mxu0 0.0
          %1786 = vmatpush2.msra.mxu0 %v1749
          %1787 = vmatprep.subr.mxu0 0.0
          %1788 = vmatpush2.msra.mxu0 %v1748
          %1789 = vmatprep.subr.mxu0 0.0
          %1790 = vmatpush2.msra.mxu0 %v1747
          %1791 = vmatprep.subr.mxu0 0.0
          %1792 = vmatpush2.msra.mxu0 %v1746
          %1793 = vmatprep.subr.mxu0 0.0
          %1794 = vmatpush2.msra.mxu0 %v1745
          %1795 = vmatprep.subr.mxu0 0.0
          %1796 = vmatpush2.msra.mxu0 %v1744
          %1797 = vmatprep.subr.mxu0 0.0
          %1798 = vmatpush2.msra.mxu0 %v1743
          %1799 = vmatprep.subr.mxu0 0.0
          %1800 = vmatpush2.msra.mxu0 %v1742
          %1801 = vmatprep.subr.mxu0 0.0
          %1802 = vmatpush2.msra.mxu0 %v1741
          %1803 = vmatprep.subr.mxu0 0.0
          %1804 = vmatpush2.msra.mxu0 %v1740
          %1805 = vmatprep.subr.mxu0 0.0
          %1806 = vmatpush2.msra.mxu0 %v1739
          %1807 = vmatprep.subr.mxu0 0.0
          %1808 = vmatpush2.msra.mxu0 %v1738
          %1809 = vmatprep.subr.mxu0 0.0
          %1810 = vmatpush2.msra.mxu0 %v1737
          %1811 = vmatprep.subr.mxu0 0.0
          %1812 = vmatpush2.msra.mxu0 %v1736
          %1813 = vmatprep.subr.mxu0 0.0
          %1814 = vmatpush2.msra.mxu0 %v1735
          %1815 = vmatprep.mubr.f32.mxu0 %v1718
          %1816 = vmatmul.mubr.f32.gmra.mxu0 %v1717
          %v1817 = vpop.f32.mrf.mxu0
          %v1818 = vadd.f32 0.0, %v1817
          %v1819 = vpop.f32.mrf.mxu0
          %1820 = vdwg.mxu0
          %v1821 = vmul.f32 %v1818, 0.03125
          %v1822 = vmul.f32 %v1821, %v1821
          %v1824 = vrot.slane %v1822, 7
          %v1826 = vsub.f32 %v1821, %v1824
          %v1827 = vmax.f32 %v1826, 0.0
          %v1828 = vadd.f32 %v1827, 1e-05
          %v1829 = vrsqrt.pop %v1828
          %v1830 = vsub.f32 0.0, %v1821
          %v1832 = vrot.slane %v1829, 1
          %v1834 = vmul.f32 %v1830, %v1832
          %v1835 = vlaneseq
          %v1836 = vshrl.u32 %v1835, 7
          %v1837 = vsub.s32 1, %v1836
          %v1838 = vrot.slane %v1829, %v1837
          %v1839 = vlaneseq
          %v1840 = vshrl.u32 %v1839, 7
          %v1841 = vsub.s32 0, %v1840
          %v1842 = vrot.slane %v1834, %v1841
          %v1843 = vsel %vm714, %v1838, %v1842
          %v1844 = vld [vmem:[#allocation13] sm:$0xff]
          %v1845 = vld [vmem:[#allocation13 + $0x8] sm:$0xff]
          %v1846 = vld [vmem:[#allocation13 + $0x10] sm:$0xff]
          %v1847 = vld [vmem:[#allocation13 + $0x18] sm:$0xff]
          %v1849 = vsel %vm636, %v1843, 0
          %1851 = vmatprep.subr.mxu0 0.0
          %1852 = vmatpush1.msra.mxu0 0.0
          %1853 = vmatprep.subr.mxu0 0.0
          %1854 = vmatpush1.msra.mxu0 0.0
          %1855 = vmatprep.subr.mxu0 0.0
          %1856 = vmatpush1.msra.mxu0 0.0
          %1857 = vmatprep.subr.mxu0 0.0
          %1858 = vmatpush1.msra.mxu0 0.0
          %1859 = vmatprep.subr.mxu0 0.0
          %1860 = vmatpush1.msra.mxu0 0.0
          %1861 = vmatprep.subr.mxu0 0.0
          %1862 = vmatpush1.msra.mxu0 0.0
          %1863 = vmatprep.subr.mxu0 0.0
          %1864 = vmatpush1.msra.mxu0 0.0
          %1865 = vmatprep.subr.mxu0 0.0
          %1866 = vmatpush1.msra.mxu0 0.0
          %1867 = vmatprep.subr.mxu0 0.0
          %1868 = vmatpush1.msra.mxu0 0.0
          %1869 = vmatprep.subr.mxu0 0.0
          %1870 = vmatpush1.msra.mxu0 0.0
          %1871 = vmatprep.subr.mxu0 0.0
          %1872 = vmatpush1.msra.mxu0 0.0
          %1873 = vmatprep.subr.mxu0 0.0
          %1874 = vmatpush1.msra.mxu0 0.0
          %1875 = vmatprep.subr.mxu0 0.0
          %1876 = vmatpush1.msra.mxu0 0.0
          %1877 = vmatprep.subr.mxu0 0.0
          %1878 = vmatpush1.msra.mxu0 0.0
          %1879 = vmatprep.subr.mxu0 %v1847
          %1880 = vmatpush1.msra.mxu0 %v1846
          %1881 = vmatprep.subr.mxu0 %v1845
          %1882 = vmatpush1.msra.mxu0 %v1844
          %1883 = vmatprep.subr.mxu0 0.0
          %1884 = vmatpush2.msra.mxu0 0.0
          %1885 = vmatprep.subr.mxu0 0.0
          %1886 = vmatpush2.msra.mxu0 0.0
          %1887 = vmatprep.subr.mxu0 0.0
          %1888 = vmatpush2.msra.mxu0 0.0
          %1889 = vmatprep.subr.mxu0 0.0
          %1890 = vmatpush2.msra.mxu0 0.0
          %1891 = vmatprep.subr.mxu0 0.0
          %1892 = vmatpush2.msra.mxu0 0.0
          %1893 = vmatprep.subr.mxu0 0.0
          %1894 = vmatpush2.msra.mxu0 0.0
          %1895 = vmatprep.subr.mxu0 0.0
          %1896 = vmatpush2.msra.mxu0 0.0
          %1897 = vmatprep.subr.mxu0 0.0
          %1898 = vmatpush2.msra.mxu0 0.0
          %1899 = vmatprep.subr.mxu0 0.0
          %1900 = vmatpush2.msra.mxu0 0.0
          %1901 = vmatprep.subr.mxu0 0.0
          %1902 = vmatpush2.msra.mxu0 0.0
          %1903 = vmatprep.subr.mxu0 0.0
          %1904 = vmatpush2.msra.mxu0 0.0
          %1905 = vmatprep.subr.mxu0 0.0
          %1906 = vmatpush2.msra.mxu0 0.0
          %1907 = vmatprep.subr.mxu0 0.0
          %1908 = vmatpush2.msra.mxu0 0.0
          %1909 = vmatprep.subr.mxu0 0.0
          %1910 = vmatpush2.msra.mxu0 0.0
          %1911 = vmatprep.subr.mxu0 0.0
          %1912 = vmatpush2.msra.mxu0 0.0
          %1913 = vmatprep.subr.mxu0 0.0
          %1914 = vmatpush2.msra.mxu0 0.0
          %1915 = vmatprep.mubr.f32.mxu0 0.0
          %1916 = vmatmul.mubr.f32.gmra.mxu0 %v1849
          %v1917 = vpop.f32.mrf.mxu0
          %v1918 = vadd.f32 0.0, %v1917
          %v1919 = vpop.f32.mrf.mxu0
          %v1920 = vadd.f32 0.0, %v1919
          %1921 = vdwg.mxu0
          %v1922 = vlaneseq
          %v1923 = vshrl.u32 %v1922, 7
          %v1924 = vsub.s32 0, %v1923
          %v1925 = vrot.slane %v1918, %v1924
          %v1926 = vlaneseq
          %v1927 = vshrl.u32 %v1926, 7
          %v1928 = vsub.s32 0, %v1927
          %v1929 = vrot.slane %v1920, %v1928
          %v1930 = vmul.f32 %v1681, %v1925
          %v1931 = vmul.f32 %v1683, %v1929
          %v1932 = vlaneseq
          %v1933 = vshrl.u32 %v1932, 7
          %v1934 = vsub.s32 1, %v1933
          %v1935 = vrot.slane %v1918, %v1934
          %v1936 = vlaneseq
          %v1937 = vshrl.u32 %v1936, 7
          %v1938 = vsub.s32 1, %v1937
          %v1939 = vrot.slane %v1920, %v1938
          %v1940 = vadd.f32 %v1930, %v1935
          %v1941 = vadd.f32 %v1931, %v1939
          %v1942 = vmax.f32 %v1940, 0.0
          %v1943 = vmax.f32 %v1941, 0.0
          %v1944 = vpack.c.bf16 %v1942, %v1942
          %v1945 = vpack.c.bf16 %v1943, %v1943
          %v1946 = vld [vmem:[#allocation14] sm:$0xff]
          %v1947 = vld [vmem:[#allocation14 + $0x8] sm:$0xff]
          %v1948 = vld [vmem:[#allocation14 + $0x10] sm:$0xff]
          %v1949 = vld [vmem:[#allocation14 + $0x18] sm:$0xff]
          %v1950 = vld [vmem:[#allocation14 + $0x20] sm:$0xff]
          %v1951 = vld [vmem:[#allocation14 + $0x28] sm:$0xff]
          %v1952 = vld [vmem:[#allocation14 + $0x30] sm:$0xff]
          %v1953 = vld [vmem:[#allocation14 + $0x38] sm:$0xff]
          %v1954 = vld [vmem:[#allocation14 + $0x40] sm:$0xff]
          %v1955 = vld [vmem:[#allocation14 + $0x48] sm:$0xff]
          %v1956 = vld [vmem:[#allocation14 + $0x50] sm:$0xff]
          %v1957 = vld [vmem:[#allocation14 + $0x58] sm:$0xff]
          %v1958 = vld [vmem:[#allocation14 + $0x60] sm:$0xff]
          %v1959 = vld [vmem:[#allocation14 + $0x68] sm:$0xff]
          %v1960 = vld [vmem:[#allocation14 + $0x70] sm:$0xff]
          %v1961 = vld [vmem:[#allocation14 + $0x78] sm:$0xff]
          %v1962 = vld [vmem:[#allocation14 + $0x80] sm:$0xff]
          %v1963 = vld [vmem:[#allocation14 + $0x88] sm:$0xff]
          %v1964 = vld [vmem:[#allocation14 + $0x90] sm:$0xff]
          %v1965 = vld [vmem:[#allocation14 + $0x98] sm:$0xff]
          %v1966 = vld [vmem:[#allocation14 + $0xa0] sm:$0xff]
          %v1967 = vld [vmem:[#allocation14 + $0xa8] sm:$0xff]
          %v1968 = vld [vmem:[#allocation14 + $0xb0] sm:$0xff]
          %v1969 = vld [vmem:[#allocation14 + $0xb8] sm:$0xff]
          %v1970 = vld [vmem:[#allocation14 + $0xc0] sm:$0xff]
          %v1971 = vld [vmem:[#allocation14 + $0xc8] sm:$0xff]
          %v1972 = vld [vmem:[#allocation14 + $0xd0] sm:$0xff]
          %v1973 = vld [vmem:[#allocation14 + $0xd8] sm:$0xff]
          %v1974 = vld [vmem:[#allocation14 + $0xe0] sm:$0xff]
          %v1975 = vld [vmem:[#allocation14 + $0xe8] sm:$0xff]
          %v1976 = vld [vmem:[#allocation14 + $0xf0] sm:$0xff]
          %v1977 = vld [vmem:[#allocation14 + $0xf8] sm:$0xff]
          %v2010 = vunpack.c.l.b16 %v1946
          %v2011 = vunpack.c.h.b16 %v1946
          %v2012 = vunpack.c.l.b16 %v1947
          %v2013 = vunpack.c.h.b16 %v1947
          %v2014 = vunpack.c.l.b16 %v1948
          %v2015 = vunpack.c.h.b16 %v1948
          %v2016 = vunpack.c.l.b16 %v1949
          %v2017 = vunpack.c.h.b16 %v1949
          %v2018 = vunpack.c.l.b16 %v1950
          %v2019 = vunpack.c.h.b16 %v1950
          %v2020 = vunpack.c.l.b16 %v1951
          %v2021 = vunpack.c.h.b16 %v1951
          %v2022 = vunpack.c.l.b16 %v1952
          %v2023 = vunpack.c.h.b16 %v1952
          %v2024 = vunpack.c.l.b16 %v1953
          %v2025 = vunpack.c.h.b16 %v1953
          %v2026 = vunpack.c.l.b16 %v1954
          %v2027 = vunpack.c.h.b16 %v1954
          %v2028 = vunpack.c.l.b16 %v1955
          %v2029 = vunpack.c.h.b16 %v1955
          %v2030 = vunpack.c.l.b16 %v1956
          %v2031 = vunpack.c.h.b16 %v1956
          %v2032 = vunpack.c.l.b16 %v1957
          %v2033 = vunpack.c.h.b16 %v1957
          %v2034 = vunpack.c.l.b16 %v1958
          %v2035 = vunpack.c.h.b16 %v1958
          %v2036 = vunpack.c.l.b16 %v1959
          %v2037 = vunpack.c.h.b16 %v1959
          %v2038 = vunpack.c.l.b16 %v1960
          %v2039 = vunpack.c.h.b16 %v1960
          %v2040 = vunpack.c.l.b16 %v1961
          %v2041 = vunpack.c.h.b16 %v1961
          %v2042 = vunpack.c.l.b16 %v1962
          %v2043 = vunpack.c.h.b16 %v1962
          %v2044 = vunpack.c.l.b16 %v1963
          %v2045 = vunpack.c.h.b16 %v1963
          %v2046 = vunpack.c.l.b16 %v1964
          %v2047 = vunpack.c.h.b16 %v1964
          %v2048 = vunpack.c.l.b16 %v1965
          %v2049 = vunpack.c.h.b16 %v1965
          %v2050 = vunpack.c.l.b16 %v1966
          %v2051 = vunpack.c.h.b16 %v1966
          %v2052 = vunpack.c.l.b16 %v1967
          %v2053 = vunpack.c.h.b16 %v1967
          %v2054 = vunpack.c.l.b16 %v1968
          %v2055 = vunpack.c.h.b16 %v1968
          %v2056 = vunpack.c.l.b16 %v1969
          %v2057 = vunpack.c.h.b16 %v1969
          %v2058 = vunpack.c.l.b16 %v1970
          %v2059 = vunpack.c.h.b16 %v1970
          %v2060 = vunpack.c.l.b16 %v1971
          %v2061 = vunpack.c.h.b16 %v1971
          %v2062 = vunpack.c.l.b16 %v1972
          %v2063 = vunpack.c.h.b16 %v1972
          %v2064 = vunpack.c.l.b16 %v1973
          %v2065 = vunpack.c.h.b16 %v1973
          %v2066 = vunpack.c.l.b16 %v1974
          %v2067 = vunpack.c.h.b16 %v1974
          %v2068 = vunpack.c.l.b16 %v1975
          %v2069 = vunpack.c.h.b16 %v1975
          %v2070 = vunpack.c.l.b16 %v1976
          %v2071 = vunpack.c.h.b16 %v1976
          %v2072 = vunpack.c.l.b16 %v1977
          %v2073 = vunpack.c.h.b16 %v1977
          %v2074 = vpack.c.b16 %v2012, %v2010
          %v2075 = vpack.c.b16 %v2013, %v2011
          %v2076 = vpack.c.b16 %v2016, %v2014
          %v2077 = vpack.c.b16 %v2017, %v2015
          %v2078 = vpack.c.b16 %v2020, %v2018
          %v2079 = vpack.c.b16 %v2021, %v2019
          %v2080 = vpack.c.b16 %v2024, %v2022
          %v2081 = vpack.c.b16 %v2025, %v2023
          %v2082 = vpack.c.b16 %v2028, %v2026
          %v2083 = vpack.c.b16 %v2029, %v2027
          %v2084 = vpack.c.b16 %v2032, %v2030
          %v2085 = vpack.c.b16 %v2033, %v2031
          %v2086 = vpack.c.b16 %v2036, %v2034
          %v2087 = vpack.c.b16 %v2037, %v2035
          %v2088 = vpack.c.b16 %v2040, %v2038
          %v2089 = vpack.c.b16 %v2041, %v2039
          %v2090 = vpack.c.b16 %v2044, %v2042
          %v2091 = vpack.c.b16 %v2045, %v2043
          %v2092 = vpack.c.b16 %v2048, %v2046
          %v2093 = vpack.c.b16 %v2049, %v2047
          %v2094 = vpack.c.b16 %v2052, %v2050
          %v2095 = vpack.c.b16 %v2053, %v2051
          %v2096 = vpack.c.b16 %v2056, %v2054
          %v2097 = vpack.c.b16 %v2057, %v2055
          %v2098 = vpack.c.b16 %v2060, %v2058
          %v2099 = vpack.c.b16 %v2061, %v2059
          %v2100 = vpack.c.b16 %v2064, %v2062
          %v2101 = vpack.c.b16 %v2065, %v2063
          %v2102 = vpack.c.b16 %v2068, %v2066
          %v2103 = vpack.c.b16 %v2069, %v2067
          %v2104 = vpack.c.b16 %v2072, %v2070
          %v2105 = vpack.c.b16 %v2073, %v2071
          %2138 = vmatprep.subr.bf16.mxu0 %v2089
          %2139 = vmatpush1.bf16.msra.mxu0 %v2088
          %2140 = vmatprep.subr.bf16.mxu0 %v2087
          %2141 = vmatpush1.bf16.msra.mxu0 %v2086
          %2142 = vmatprep.subr.bf16.mxu0 %v2085
          %2143 = vmatpush1.bf16.msra.mxu0 %v2084
          %2144 = vmatprep.subr.bf16.mxu0 %v2083
          %2145 = vmatpush1.bf16.msra.mxu0 %v2082
          %2146 = vmatprep.subr.bf16.mxu0 %v2081
          %2147 = vmatpush1.bf16.msra.mxu0 %v2080
          %2148 = vmatprep.subr.bf16.mxu0 %v2079
          %2149 = vmatpush1.bf16.msra.mxu0 %v2078
          %2150 = vmatprep.subr.bf16.mxu0 %v2077
          %2151 = vmatpush1.bf16.msra.mxu0 %v2076
          %2152 = vmatprep.subr.bf16.mxu0 %v2075
          %2153 = vmatpush1.bf16.msra.mxu0 %v2074
          %2154 = vmatprep.subr.bf16.mxu0 %v2105
          %2155 = vmatpush2.bf16.msra.mxu0 %v2104
          %2156 = vmatprep.subr.bf16.mxu0 %v2103
          %2157 = vmatpush2.bf16.msra.mxu0 %v2102
          %2158 = vmatprep.subr.bf16.mxu0 %v2101
          %2159 = vmatpush2.bf16.msra.mxu0 %v2100
          %2160 = vmatprep.subr.bf16.mxu0 %v2099
          %2161 = vmatpush2.bf16.msra.mxu0 %v2098
          %2162 = vmatprep.subr.bf16.mxu0 %v2097
          %2163 = vmatpush2.bf16.msra.mxu0 %v2096
          %2164 = vmatprep.subr.bf16.mxu0 %v2095
          %2165 = vmatpush2.bf16.msra.mxu0 %v2094
          %2166 = vmatprep.subr.bf16.mxu0 %v2093
          %2167 = vmatpush2.bf16.msra.mxu0 %v2092
          %2168 = vmatprep.subr.bf16.mxu0 %v2091
          %2169 = vmatpush2.bf16.msra.mxu0 %v2090
          %2170 = vmatprep.mubr.bf16.mxu0 %v1945
          %2171 = vmatmul.mubr.bf16.gmra.mxu0 %v1944
          %v2172 = vpop.f32.mrf.mxu0
          %v2173 = vadd.f32 0.0, %v2172
          %v2174 = vpop.f32.mrf.mxu0
          %v2175 = vadd.f32 0.0, %v2174
          %v2176 = vpop.f32.mrf.mxu0
          %v2177 = vpop.f32.mrf.mxu0
          %2178 = vdwg.mxu0
          %v2179 = vsel %vm681, %v2173, 0.0
          %v2180 = vrot.slane %v2179, 4
          %v2181 = vadd.f32 %v2179, %v2180
          %v2182 = vrot.slane %v2181, 2
          %v2183 = vadd.f32 %v2181, %v2182
          %v2184 = vrot.slane %v2183, 1
          %v2185 = vadd.f32 %v2183, %v2184
          %v2186 = vsel %vm681, %v2175, 0.0
          %v2187 = vrot.slane %v2186, 4
          %v2188 = vadd.f32 %v2186, %v2187
          %v2189 = vrot.slane %v2188, 2
          %v2190 = vadd.f32 %v2188, %v2189
          %v2191 = vrot.slane %v2190, 1
          %v2192 = vadd.f32 %v2190, %v2191
          %v2193 = vmul.f32 %v2173, %v2173
          %v2194 = vmul.f32 %v2175, %v2175
          %v2195 = vsel %vm681, %v2193, 0.0
          %v2196 = vrot.slane %v2195, 4
          %v2197 = vadd.f32 %v2195, %v2196
          %v2198 = vrot.slane %v2197, 2
          %v2199 = vadd.f32 %v2197, %v2198
          %v2200 = vrot.slane %v2199, 1
          %v2201 = vadd.f32 %v2199, %v2200
          %v2202 = vsel %vm681, %v2194, 0.0
          %v2203 = vrot.slane %v2202, 4
          %v2204 = vadd.f32 %v2202, %v2203
          %v2205 = vrot.slane %v2204, 2
          %v2206 = vadd.f32 %v2204, %v2205
          %v2207 = vrot.slane %v2206, 1
          %v2208 = vadd.f32 %v2206, %v2207
          %v2209 = vsel %vm714, %v2185, %v2201
          %v2210 = vsel %vm714, %v2192, %v2208
          %v2211 = vld [vmem:[%s11] sm:$0xff]
          %v2212 = vld [vmem:[%s11 + $0x8] sm:$0xff]
          %v2213 = vld [vmem:[%s11 + $0x10] sm:$0xff]
          %v2214 = vld [vmem:[%s11 + $0x18] sm:$0xff]
          %v2215 = vld [vmem:[%s11 + $0x20] sm:$0xff]
          %v2216 = vld [vmem:[%s11 + $0x28] sm:$0xff]
          %v2217 = vld [vmem:[%s11 + $0x30] sm:$0xff]
          %v2218 = vld [vmem:[%s11 + $0x38] sm:$0xff]
          %v2219 = vld [vmem:[%s11 + $0x40] sm:$0xff]
          %v2220 = vld [vmem:[%s11 + $0x48] sm:$0xff]
          %v2221 = vld [vmem:[%s11 + $0x50] sm:$0xff]
          %v2222 = vld [vmem:[%s11 + $0x58] sm:$0xff]
          %v2223 = vld [vmem:[%s11 + $0x60] sm:$0xff]
          %v2224 = vld [vmem:[%s11 + $0x68] sm:$0xff]
          %v2225 = vld [vmem:[%s11 + $0x70] sm:$0xff]
          %v2226 = vld [vmem:[%s11 + $0x78] sm:$0xff]
          %v2227 = vld [vmem:[%s11 + $0x80] sm:$0xff]
          %v2228 = vld [vmem:[%s11 + $0x88] sm:$0xff]
          %v2229 = vld [vmem:[%s11 + $0x90] sm:$0xff]
          %v2230 = vld [vmem:[%s11 + $0x98] sm:$0xff]
          %v2231 = vld [vmem:[%s11 + $0xa0] sm:$0xff]
          %v2232 = vld [vmem:[%s11 + $0xa8] sm:$0xff]
          %v2233 = vld [vmem:[%s11 + $0xb0] sm:$0xff]
          %v2234 = vld [vmem:[%s11 + $0xb8] sm:$0xff]
          %v2235 = vld [vmem:[%s11 + $0xc0] sm:$0xff]
          %v2236 = vld [vmem:[%s11 + $0xc8] sm:$0xff]
          %v2237 = vld [vmem:[%s11 + $0xd0] sm:$0xff]
          %v2238 = vld [vmem:[%s11 + $0xd8] sm:$0xff]
          %v2239 = vld [vmem:[%s11 + $0xe0] sm:$0xff]
          %v2240 = vld [vmem:[%s11 + $0xe8] sm:$0xff]
          %v2241 = vld [vmem:[%s11 + $0xf0] sm:$0xff]
          %v2242 = vld [vmem:[%s11 + $0xf8] sm:$0xff]
          %2243 = vmatprep.subr.mxu0 0.0
          %2244 = vmatpush1.msra.mxu0 %v2226
          %2245 = vmatprep.subr.mxu0 0.0
          %2246 = vmatpush1.msra.mxu0 %v2225
          %2247 = vmatprep.subr.mxu0 0.0
          %2248 = vmatpush1.msra.mxu0 %v2224
          %2249 = vmatprep.subr.mxu0 0.0
          %2250 = vmatpush1.msra.mxu0 %v2223
          %2251 = vmatprep.subr.mxu0 0.0
          %2252 = vmatpush1.msra.mxu0 %v2222
          %2253 = vmatprep.subr.mxu0 0.0
          %2254 = vmatpush1.msra.mxu0 %v2221
          %2255 = vmatprep.subr.mxu0 0.0
          %2256 = vmatpush1.msra.mxu0 %v2220
          %2257 = vmatprep.subr.mxu0 0.0
          %2258 = vmatpush1.msra.mxu0 %v2219
          %2259 = vmatprep.subr.mxu0 0.0
          %2260 = vmatpush1.msra.mxu0 %v2218
          %2261 = vmatprep.subr.mxu0 0.0
          %2262 = vmatpush1.msra.mxu0 %v2217
          %2263 = vmatprep.subr.mxu0 0.0
          %2264 = vmatpush1.msra.mxu0 %v2216
          %2265 = vmatprep.subr.mxu0 0.0
          %2266 = vmatpush1.msra.mxu0 %v2215
          %2267 = vmatprep.subr.mxu0 0.0
          %2268 = vmatpush1.msra.mxu0 %v2214
          %2269 = vmatprep.subr.mxu0 0.0
          %2270 = vmatpush1.msra.mxu0 %v2213
          %2271 = vmatprep.subr.mxu0 0.0
          %2272 = vmatpush1.msra.mxu0 %v2212
          %2273 = vmatprep.subr.mxu0 0.0
          %2274 = vmatpush1.msra.mxu0 %v2211
          %2275 = vmatprep.subr.mxu0 0.0
          %2276 = vmatpush2.msra.mxu0 %v2242
          %2277 = vmatprep.subr.mxu0 0.0
          %2278 = vmatpush2.msra.mxu0 %v2241
          %2279 = vmatprep.subr.mxu0 0.0
          %2280 = vmatpush2.msra.mxu0 %v2240
          %2281 = vmatprep.subr.mxu0 0.0
          %2282 = vmatpush2.msra.mxu0 %v2239
          %2283 = vmatprep.subr.mxu0 0.0
          %2284 = vmatpush2.msra.mxu0 %v2238
          %2285 = vmatprep.subr.mxu0 0.0
          %2286 = vmatpush2.msra.mxu0 %v2237
          %2287 = vmatprep.subr.mxu0 0.0
          %2288 = vmatpush2.msra.mxu0 %v2236
          %2289 = vmatprep.subr.mxu0 0.0
          %2290 = vmatpush2.msra.mxu0 %v2235
          %2291 = vmatprep.subr.mxu0 0.0
          %2292 = vmatpush2.msra.mxu0 %v2234
          %2293 = vmatprep.subr.mxu0 0.0
          %2294 = vmatpush2.msra.mxu0 %v2233
          %2295 = vmatprep.subr.mxu0 0.0
          %2296 = vmatpush2.msra.mxu0 %v2232
          %2297 = vmatprep.subr.mxu0 0.0
          %2298 = vmatpush2.msra.mxu0 %v2231
          %2299 = vmatprep.subr.mxu0 0.0
          %2300 = vmatpush2.msra.mxu0 %v2230
          %2301 = vmatprep.subr.mxu0 0.0
          %2302 = vmatpush2.msra.mxu0 %v2229
          %2303 = vmatprep.subr.mxu0 0.0
          %2304 = vmatpush2.msra.mxu0 %v2228
          %2305 = vmatprep.subr.mxu0 0.0
          %2306 = vmatpush2.msra.mxu0 %v2227
          %2307 = vmatprep.mubr.f32.mxu0 %v2210
          %2308 = vmatmul.mubr.f32.gmra.mxu0 %v2209
          %v2309 = vpop.f32.mrf.mxu0
          %v2310 = vadd.f32 0.0, %v2309
          %v2311 = vpop.f32.mrf.mxu0
          %2312 = vdwg.mxu0
          %v2313 = vmul.f32 %v2310, 0.015625
          %v2314 = vmul.f32 %v2313, %v2313
          %v2316 = vrot.slane %v2314, 7
          %v2318 = vsub.f32 %v2313, %v2316
          %v2319 = vmax.f32 %v2318, 0.0
          %v2320 = vadd.f32 %v2319, 1e-05
          %v2321 = vrsqrt.pop %v2320
          %v2322 = vsub.f32 0.0, %v2313
          %v2324 = vrot.slane %v2321, 1
          %v2326 = vmul.f32 %v2322, %v2324
          %v2327 = vlaneseq
          %v2328 = vshrl.u32 %v2327, 7
          %v2329 = vsub.s32 1, %v2328
          %v2330 = vrot.slane %v2321, %v2329
          %v2331 = vlaneseq
          %v2332 = vshrl.u32 %v2331, 7
          %v2333 = vsub.s32 0, %v2332
          %v2334 = vrot.slane %v2326, %v2333
          %v2335 = vsel %vm714, %v2330, %v2334
          %v2336 = vld [vmem:[#allocation16] sm:$0xff]
          %v2337 = vld [vmem:[#allocation16 + $0x8] sm:$0xff]
          %vm2338 = vcmask 64512
          %v2340 = vsel %vm2338, %v2335, 0
          %2342 = vmatprep.subr.mxu0 0.0
          %2343 = vmatpush1.msra.mxu0 0.0
          %2344 = vmatprep.subr.mxu0 0.0
          %2345 = vmatpush1.msra.mxu0 0.0
          %2346 = vmatprep.subr.mxu0 0.0
          %2347 = vmatpush1.msra.mxu0 0.0
          %2348 = vmatprep.subr.mxu0 0.0
          %2349 = vmatpush1.msra.mxu0 0.0
          %2350 = vmatprep.subr.mxu0 0.0
          %2351 = vmatpush1.msra.mxu0 0.0
          %2352 = vmatprep.subr.mxu0 0.0
          %2353 = vmatpush1.msra.mxu0 0.0
          %2354 = vmatprep.subr.mxu0 0.0
          %2355 = vmatpush1.msra.mxu0 0.0
          %2356 = vmatprep.subr.mxu0 0.0
          %2357 = vmatpush1.msra.mxu0 0.0
          %2358 = vmatprep.subr.mxu0 0.0
          %2359 = vmatpush1.msra.mxu0 0.0
          %2360 = vmatprep.subr.mxu0 0.0
          %2361 = vmatpush1.msra.mxu0 0.0
          %2362 = vmatprep.subr.mxu0 0.0
          %2363 = vmatpush1.msra.mxu0 0.0
          %2364 = vmatprep.subr.mxu0 0.0
          %2365 = vmatpush1.msra.mxu0 0.0
          %2366 = vmatprep.subr.mxu0 0.0
          %2367 = vmatpush1.msra.mxu0 0.0
          %2368 = vmatprep.subr.mxu0 0.0
          %2369 = vmatpush1.msra.mxu0 0.0
          %2370 = vmatprep.subr.mxu0 0.0
          %2371 = vmatpush1.msra.mxu0 0.0
          %2372 = vmatprep.subr.mxu0 %v2337
          %2373 = vmatpush1.msra.mxu0 %v2336
          %2374 = vmatprep.subr.mxu0 0.0
          %2375 = vmatpush2.msra.mxu0 0.0
          %2376 = vmatprep.subr.mxu0 0.0
          %2377 = vmatpush2.msra.mxu0 0.0
          %2378 = vmatprep.subr.mxu0 0.0
          %2379 = vmatpush2.msra.mxu0 0.0
          %2380 = vmatprep.subr.mxu0 0.0
          %2381 = vmatpush2.msra.mxu0 0.0
          %2382 = vmatprep.subr.mxu0 0.0
          %2383 = vmatpush2.msra.mxu0 0.0
          %2384 = vmatprep.subr.mxu0 0.0
          %2385 = vmatpush2.msra.mxu0 0.0
          %2386 = vmatprep.subr.mxu0 0.0
          %2387 = vmatpush2.msra.mxu0 0.0
          %2388 = vmatprep.subr.mxu0 0.0
          %2389 = vmatpush2.msra.mxu0 0.0
          %2390 = vmatprep.subr.mxu0 0.0
          %2391 = vmatpush2.msra.mxu0 0.0
          %2392 = vmatprep.subr.mxu0 0.0
          %2393 = vmatpush2.msra.mxu0 0.0
          %2394 = vmatprep.subr.mxu0 0.0
          %2395 = vmatpush2.msra.mxu0 0.0
          %2396 = vmatprep.subr.mxu0 0.0
          %2397 = vmatpush2.msra.mxu0 0.0
          %2398 = vmatprep.subr.mxu0 0.0
          %2399 = vmatpush2.msra.mxu0 0.0
          %2400 = vmatprep.subr.mxu0 0.0
          %2401 = vmatpush2.msra.mxu0 0.0
          %2402 = vmatprep.subr.mxu0 0.0
          %2403 = vmatpush2.msra.mxu0 0.0
          %2404 = vmatprep.subr.mxu0 0.0
          %2405 = vmatpush2.msra.mxu0 0.0
          %2406 = vmatprep.mubr.f32.mxu0 0.0
          %2407 = vmatmul.mubr.f32.gmra.mxu0 %v2340
          %v2408 = vpop.f32.mrf.mxu0
          %v2409 = vadd.f32 0.0, %v2408
          %v2410 = vpop.f32.mrf.mxu0
          %v2411 = vadd.f32 0.0, %v2410
          %2412 = vdwg.mxu0
          %v2413 = vlaneseq
          %v2414 = vshrl.u32 %v2413, 7
          %v2415 = vsub.s32 0, %v2414
          %v2416 = vrot.slane %v2409, %v2415
          %v2417 = vlaneseq
          %v2418 = vshrl.u32 %v2417, 7
          %v2419 = vsub.s32 0, %v2418
          %v2420 = vrot.slane %v2411, %v2419
          %v2421 = vmul.f32 %v2173, %v2416
          %v2422 = vmul.f32 %v2175, %v2420
          %v2423 = vlaneseq
          %v2424 = vshrl.u32 %v2423, 7
          %v2425 = vsub.s32 1, %v2424
          %v2426 = vrot.slane %v2409, %v2425
          %v2427 = vlaneseq
          %v2428 = vshrl.u32 %v2427, 7
          %v2429 = vsub.s32 1, %v2428
          %v2430 = vrot.slane %v2411, %v2429
          %v2431 = vadd.f32 %v2421, %v2426
          %v2432 = vadd.f32 %v2422, %v2430
          %v2433 = vmax.f32 %v2431, 0.0
          %v2434 = vmax.f32 %v2432, 0.0
          %v2435 = vpack.c.bf16 %v2433, %v2433
          %v2436 = vpack.c.bf16 %v2434, %v2434
          %v2439 = vcombine.low %v2435, %v2436
          %v2441 = vunpack.c.l.s4 1966171168
          %v2442 = vunpack.c.0.s8 %v2441
          %v2443 = vlaneseq
          %v2444 = vshrl.u32 %v2443, 7
          %v2445 = vsub.s32 %v2442, %v2444
          %v2446 = vrot.slane %v2439, %v2445
          %v2448 = vunpack.c.l.s4 1966171168
          %v2449 = vunpack.c.0.s8 %v2448
          %v2450 = vlaneseq
          %v2451 = vshrl.u32 %v2450, 7
          %v2452 = vsub.s32 %v2449, %v2451
          %v2453 = vrot.slane %v2446, %v2452
          %2455 = vst [vmem:[#allocation2] sm:$0x3] %v2453
        $region120: #{forward.1} parent=75 // pred_fallthru
          _
        %v2456 = vld [vmem:[#allocation2] sm:$0x3]
        %v2457 = vld [vmem:[%s565] sm:$0xff]
        %v2458 = vld [vmem:[%s565 + $0x8] sm:$0xff]
        %v2459 = vld [vmem:[%s565 + $0x10] sm:$0xff]
        %v2460 = vld [vmem:[%s565 + $0x18] sm:$0xff]
        %v2461 = vld [vmem:[%s565 + $0x20] sm:$0xff]
        %v2462 = vld [vmem:[%s565 + $0x28] sm:$0xff]
        %v2463 = vld [vmem:[%s565 + $0x30] sm:$0xff]
        %v2464 = vld [vmem:[%s565 + $0x38] sm:$0xff]
        %v2465 = vld [vmem:[%s565 + $0x40] sm:$0xff]
        %v2466 = vld [vmem:[%s565 + $0x48] sm:$0xff]
        %v2467 = vld [vmem:[%s565 + $0x50] sm:$0xff]
        %v2468 = vld [vmem:[%s565 + $0x58] sm:$0xff]
        %v2469 = vld [vmem:[%s565 + $0x60] sm:$0xff]
        %v2470 = vld [vmem:[%s565 + $0x68] sm:$0xff]
        %v2471 = vld [vmem:[%s565 + $0x70] sm:$0xff]
        %v2472 = vld [vmem:[%s565 + $0x78] sm:$0xff]
        %v2473 = vld [vmem:[%s565 + $0x80] sm:$0xff]
        %v2474 = vld [vmem:[%s565 + $0x88] sm:$0xff]
        %v2475 = vld [vmem:[%s565 + $0x90] sm:$0xff]
        %v2476 = vld [vmem:[%s565 + $0x98] sm:$0xff]
        %v2477 = vld [vmem:[%s565 + $0xa0] sm:$0xff]
        %v2478 = vld [vmem:[%s565 + $0xa8] sm:$0xff]
        %v2479 = vld [vmem:[%s565 + $0xb0] sm:$0xff]
        %v2480 = vld [vmem:[%s565 + $0xb8] sm:$0xff]
        %v2481 = vld [vmem:[%s565 + $0xc0] sm:$0xff]
        %v2482 = vld [vmem:[%s565 + $0xc8] sm:$0xff]
        %v2483 = vld [vmem:[%s565 + $0xd0] sm:$0xff]
        %v2484 = vld [vmem:[%s565 + $0xd8] sm:$0xff]
        %v2485 = vld [vmem:[%s565 + $0xe0] sm:$0xff]
        %v2486 = vld [vmem:[%s565 + $0xe8] sm:$0xff]
        %v2487 = vld [vmem:[%s565 + $0xf0] sm:$0xff]
        %v2488 = vld [vmem:[%s565 + $0xf8] sm:$0xff]
        %v2489 = vld [vmem:[%s565 + $0x100] sm:$0xff]
        %v2490 = vld [vmem:[%s565 + $0x108] sm:$0xff]
        %v2491 = vld [vmem:[%s565 + $0x110] sm:$0xff]
        %v2492 = vld [vmem:[%s565 + $0x118] sm:$0xff]
        %v2493 = vld [vmem:[%s565 + $0x120] sm:$0xff]
        %v2494 = vld [vmem:[%s565 + $0x128] sm:$0xff]
        %v2495 = vld [vmem:[%s565 + $0x130] sm:$0xff]
        %v2496 = vld [vmem:[%s565 + $0x138] sm:$0xff]
        %v2497 = vld [vmem:[%s565 + $0x140] sm:$0xff]
        %v2498 = vld [vmem:[%s565 + $0x148] sm:$0xff]
        %v2499 = vld [vmem:[%s565 + $0x150] sm:$0xff]
        %v2500 = vld [vmem:[%s565 + $0x158] sm:$0xff]
        %v2501 = vld [vmem:[%s565 + $0x160] sm:$0xff]
        %v2502 = vld [vmem:[%s565 + $0x168] sm:$0xff]
        %v2503 = vld [vmem:[%s565 + $0x170] sm:$0xff]
        %v2504 = vld [vmem:[%s565 + $0x178] sm:$0xff]
        %v2505 = vld [vmem:[%s565 + $0x180] sm:$0xff]
        %v2506 = vld [vmem:[%s565 + $0x188] sm:$0xff]
        %v2507 = vld [vmem:[%s565 + $0x190] sm:$0xff]
        %v2508 = vld [vmem:[%s565 + $0x198] sm:$0xff]
        %v2509 = vld [vmem:[%s565 + $0x1a0] sm:$0xff]
        %v2510 = vld [vmem:[%s565 + $0x1a8] sm:$0xff]
        %v2511 = vld [vmem:[%s565 + $0x1b0] sm:$0xff]
        %v2512 = vld [vmem:[%s565 + $0x1b8] sm:$0xff]
        %v2513 = vld [vmem:[%s565 + $0x1c0] sm:$0xff]
        %v2514 = vld [vmem:[%s565 + $0x1c8] sm:$0xff]
        %v2515 = vld [vmem:[%s565 + $0x1d0] sm:$0xff]
        %v2516 = vld [vmem:[%s565 + $0x1d8] sm:$0xff]
        %v2517 = vld [vmem:[%s565 + $0x1e0] sm:$0xff]
        %v2518 = vld [vmem:[%s565 + $0x1e8] sm:$0xff]
        %v2519 = vld [vmem:[%s565 + $0x1f0] sm:$0xff]
        %v2520 = vld [vmem:[%s565 + $0x1f8] sm:$0xff]
        %v2523 = vunpack.c.l.s4 1966171168
        %v2524 = vunpack.c.0.s8 %v2523
        %v2525 = vlaneseq
        %v2526 = vshrl.u32 %v2525, 7
        %v2527 = vsub.s32 %v2524, %v2526
        %v2528 = vrot.slane %v2456, %v2527
        %v2529 = vcombine.high %v2528, %v2528
        %v2531 = vunpack.c.l.s4 1966171168
        %v2532 = vunpack.c.0.s8 %v2531
        %v2533 = vlaneseq
        %v2534 = vshrl.u32 %v2533, 7
        %v2535 = vsub.s32 %v2532, %v2534
        %v2536 = vrot.slane %v2528, %v2535
        %v2538 = vunpack.c.l.s4 1966171168
        %v2539 = vunpack.c.0.s8 %v2538
        %v2540 = vlaneseq
        %v2541 = vshrl.u32 %v2540, 7
        %v2542 = vsub.s32 %v2539, %v2541
        %v2543 = vrot.slane %v2529, %v2542
        %v2610 = vunpack.c.l.b16 %v2457
        %v2611 = vunpack.c.h.b16 %v2457
        %v2612 = vunpack.c.l.b16 %v2458
        %v2613 = vunpack.c.h.b16 %v2458
        %v2614 = vunpack.c.l.b16 %v2459
        %v2615 = vunpack.c.h.b16 %v2459
        %v2616 = vunpack.c.l.b16 %v2460
        %v2617 = vunpack.c.h.b16 %v2460
        %v2618 = vunpack.c.l.b16 %v2461
        %v2619 = vunpack.c.h.b16 %v2461
        %v2620 = vunpack.c.l.b16 %v2462
        %v2621 = vunpack.c.h.b16 %v2462
        %v2622 = vunpack.c.l.b16 %v2463
        %v2623 = vunpack.c.h.b16 %v2463
        %v2624 = vunpack.c.l.b16 %v2464
        %v2625 = vunpack.c.h.b16 %v2464
        %v2626 = vunpack.c.l.b16 %v2465
        %v2627 = vunpack.c.h.b16 %v2465
        %v2628 = vunpack.c.l.b16 %v2466
        %v2629 = vunpack.c.h.b16 %v2466
        %v2630 = vunpack.c.l.b16 %v2467
        %v2631 = vunpack.c.h.b16 %v2467
        %v2632 = vunpack.c.l.b16 %v2468
        %v2633 = vunpack.c.h.b16 %v2468
        %v2634 = vunpack.c.l.b16 %v2469
        %v2635 = vunpack.c.h.b16 %v2469
        %v2636 = vunpack.c.l.b16 %v2470
        %v2637 = vunpack.c.h.b16 %v2470
        %v2638 = vunpack.c.l.b16 %v2471
        %v2639 = vunpack.c.h.b16 %v2471
        %v2640 = vunpack.c.l.b16 %v2472
        %v2641 = vunpack.c.h.b16 %v2472
        %v2642 = vunpack.c.l.b16 %v2473
        %v2643 = vunpack.c.h.b16 %v2473
        %v2644 = vunpack.c.l.b16 %v2474
        %v2645 = vunpack.c.h.b16 %v2474
        %v2646 = vunpack.c.l.b16 %v2475
        %v2647 = vunpack.c.h.b16 %v2475
        %v2648 = vunpack.c.l.b16 %v2476
        %v2649 = vunpack.c.h.b16 %v2476
        %v2650 = vunpack.c.l.b16 %v2477
        %v2651 = vunpack.c.h.b16 %v2477
        %v2652 = vunpack.c.l.b16 %v2478
        %v2653 = vunpack.c.h.b16 %v2478
        %v2654 = vunpack.c.l.b16 %v2479
        %v2655 = vunpack.c.h.b16 %v2479
        %v2656 = vunpack.c.l.b16 %v2480
        %v2657 = vunpack.c.h.b16 %v2480
        %v2658 = vunpack.c.l.b16 %v2481
        %v2659 = vunpack.c.h.b16 %v2481
        %v2660 = vunpack.c.l.b16 %v2482
        %v2661 = vunpack.c.h.b16 %v2482
        %v2662 = vunpack.c.l.b16 %v2483
        %v2663 = vunpack.c.h.b16 %v2483
        %v2664 = vunpack.c.l.b16 %v2484
        %v2665 = vunpack.c.h.b16 %v2484
        %v2666 = vunpack.c.l.b16 %v2485
        %v2667 = vunpack.c.h.b16 %v2485
        %v2668 = vunpack.c.l.b16 %v2486
        %v2669 = vunpack.c.h.b16 %v2486
        %v2670 = vunpack.c.l.b16 %v2487
        %v2671 = vunpack.c.h.b16 %v2487
        %v2672 = vunpack.c.l.b16 %v2488
        %v2673 = vunpack.c.h.b16 %v2488
        %v2674 = vunpack.c.l.b16 %v2489
        %v2675 = vunpack.c.h.b16 %v2489
        %v2676 = vunpack.c.l.b16 %v2490
        %v2677 = vunpack.c.h.b16 %v2490
        %v2678 = vunpack.c.l.b16 %v2491
        %v2679 = vunpack.c.h.b16 %v2491
        %v2680 = vunpack.c.l.b16 %v2492
        %v2681 = vunpack.c.h.b16 %v2492
        %v2682 = vunpack.c.l.b16 %v2493
        %v2683 = vunpack.c.h.b16 %v2493
        %v2684 = vunpack.c.l.b16 %v2494
        %v2685 = vunpack.c.h.b16 %v2494
        %v2686 = vunpack.c.l.b16 %v2495
        %v2687 = vunpack.c.h.b16 %v2495
        %v2688 = vunpack.c.l.b16 %v2496
        %v2689 = vunpack.c.h.b16 %v2496
        %v2690 = vunpack.c.l.b16 %v2497
        %v2691 = vunpack.c.h.b16 %v2497
        %v2692 = vunpack.c.l.b16 %v2498
        %v2693 = vunpack.c.h.b16 %v2498
        %v2694 = vunpack.c.l.b16 %v2499
        %v2695 = vunpack.c.h.b16 %v2499
        %v2696 = vunpack.c.l.b16 %v2500
        %v2697 = vunpack.c.h.b16 %v2500
        %v2698 = vunpack.c.l.b16 %v2501
        %v2699 = vunpack.c.h.b16 %v2501
        %v2700 = vunpack.c.l.b16 %v2502
        %v2701 = vunpack.c.h.b16 %v2502
        %v2702 = vunpack.c.l.b16 %v2503
        %v2703 = vunpack.c.h.b16 %v2503
        %v2704 = vunpack.c.l.b16 %v2504
        %v2705 = vunpack.c.h.b16 %v2504
        %v2706 = vunpack.c.l.b16 %v2505
        %v2707 = vunpack.c.h.b16 %v2505
        %v2708 = vunpack.c.l.b16 %v2506
        %v2709 = vunpack.c.h.b16 %v2506
        %v2710 = vunpack.c.l.b16 %v2507
        %v2711 = vunpack.c.h.b16 %v2507
        %v2712 = vunpack.c.l.b16 %v2508
        %v2713 = vunpack.c.h.b16 %v2508
        %v2714 = vunpack.c.l.b16 %v2509
        %v2715 = vunpack.c.h.b16 %v2509
        %v2716 = vunpack.c.l.b16 %v2510
        %v2717 = vunpack.c.h.b16 %v2510
        %v2718 = vunpack.c.l.b16 %v2511
        %v2719 = vunpack.c.h.b16 %v2511
        %v2720 = vunpack.c.l.b16 %v2512
        %v2721 = vunpack.c.h.b16 %v2512
        %v2722 = vunpack.c.l.b16 %v2513
        %v2723 = vunpack.c.h.b16 %v2513
        %v2724 = vunpack.c.l.b16 %v2514
        %v2725 = vunpack.c.h.b16 %v2514
        %v2726 = vunpack.c.l.b16 %v2515
        %v2727 = vunpack.c.h.b16 %v2515
        %v2728 = vunpack.c.l.b16 %v2516
        %v2729 = vunpack.c.h.b16 %v2516
        %v2730 = vunpack.c.l.b16 %v2517
        %v2731 = vunpack.c.h.b16 %v2517
        %v2732 = vunpack.c.l.b16 %v2518
        %v2733 = vunpack.c.h.b16 %v2518
        %v2734 = vunpack.c.l.b16 %v2519
        %v2735 = vunpack.c.h.b16 %v2519
        %v2736 = vunpack.c.l.b16 %v2520
        %v2737 = vunpack.c.h.b16 %v2520
        %v2738 = vpack.c.b16 %v2614, %v2610
        %v2739 = vpack.c.b16 %v2615, %v2611
        %v2740 = vpack.c.b16 %v2616, %v2612
        %v2741 = vpack.c.b16 %v2617, %v2613
        %v2742 = vpack.c.b16 %v2622, %v2618
        %v2743 = vpack.c.b16 %v2623, %v2619
        %v2744 = vpack.c.b16 %v2624, %v2620
        %v2745 = vpack.c.b16 %v2625, %v2621
        %v2746 = vpack.c.b16 %v2630, %v2626
        %v2747 = vpack.c.b16 %v2631, %v2627
        %v2748 = vpack.c.b16 %v2632, %v2628
        %v2749 = vpack.c.b16 %v2633, %v2629
        %v2750 = vpack.c.b16 %v2638, %v2634
        %v2751 = vpack.c.b16 %v2639, %v2635
        %v2752 = vpack.c.b16 %v2640, %v2636
        %v2753 = vpack.c.b16 %v2641, %v2637
        %v2754 = vpack.c.b16 %v2646, %v2642
        %v2755 = vpack.c.b16 %v2647, %v2643
        %v2756 = vpack.c.b16 %v2648, %v2644
        %v2757 = vpack.c.b16 %v2649, %v2645
        %v2758 = vpack.c.b16 %v2654, %v2650
        %v2759 = vpack.c.b16 %v2655, %v2651
        %v2760 = vpack.c.b16 %v2656, %v2652
        %v2761 = vpack.c.b16 %v2657, %v2653
        %v2762 = vpack.c.b16 %v2662, %v2658
        %v2763 = vpack.c.b16 %v2663, %v2659
        %v2764 = vpack.c.b16 %v2664, %v2660
        %v2765 = vpack.c.b16 %v2665, %v2661
        %v2766 = vpack.c.b16 %v2670, %v2666
        %v2767 = vpack.c.b16 %v2671, %v2667
        %v2768 = vpack.c.b16 %v2672, %v2668
        %v2769 = vpack.c.b16 %v2673, %v2669
        %v2770 = vpack.c.b16 %v2678, %v2674
        %v2771 = vpack.c.b16 %v2679, %v2675
        %v2772 = vpack.c.b16 %v2680, %v2676
        %v2773 = vpack.c.b16 %v2681, %v2677
        %v2774 = vpack.c.b16 %v2686, %v2682
        %v2775 = vpack.c.b16 %v2687, %v2683
        %v2776 = vpack.c.b16 %v2688, %v2684
        %v2777 = vpack.c.b16 %v2689, %v2685
        %v2778 = vpack.c.b16 %v2694, %v2690
        %v2779 = vpack.c.b16 %v2695, %v2691
        %v2780 = vpack.c.b16 %v2696, %v2692
        %v2781 = vpack.c.b16 %v2697, %v2693
        %v2782 = vpack.c.b16 %v2702, %v2698
        %v2783 = vpack.c.b16 %v2703, %v2699
        %v2784 = vpack.c.b16 %v2704, %v2700
        %v2785 = vpack.c.b16 %v2705, %v2701
        %v2786 = vpack.c.b16 %v2710, %v2706
        %v2787 = vpack.c.b16 %v2711, %v2707
        %v2788 = vpack.c.b16 %v2712, %v2708
        %v2789 = vpack.c.b16 %v2713, %v2709
        %v2790 = vpack.c.b16 %v2718, %v2714
        %v2791 = vpack.c.b16 %v2719, %v2715
        %v2792 = vpack.c.b16 %v2720, %v2716
        %v2793 = vpack.c.b16 %v2721, %v2717
        %v2794 = vpack.c.b16 %v2726, %v2722
        %v2795 = vpack.c.b16 %v2727, %v2723
        %v2796 = vpack.c.b16 %v2728, %v2724
        %v2797 = vpack.c.b16 %v2729, %v2725
        %v2798 = vpack.c.b16 %v2734, %v2730
        %v2799 = vpack.c.b16 %v2735, %v2731
        %v2800 = vpack.c.b16 %v2736, %v2732
        %v2801 = vpack.c.b16 %v2737, %v2733
        %2866 = vmatprep.subr.bf16.mxu0 %v2767
        %2867 = vmatpush1.bf16.msra.mxu0 %v2766
        %2868 = vmatprep.subr.bf16.mxu0 %v2763
        %2869 = vmatpush1.bf16.msra.mxu0 %v2762
        %2870 = vmatprep.subr.bf16.mxu0 %v2759
        %2871 = vmatpush1.bf16.msra.mxu0 %v2758
        %2872 = vmatprep.subr.bf16.mxu0 %v2755
        %2873 = vmatpush1.bf16.msra.mxu0 %v2754
        %2874 = vmatprep.subr.bf16.mxu0 %v2751
        %2875 = vmatpush1.bf16.msra.mxu0 %v2750
        %2876 = vmatprep.subr.bf16.mxu0 %v2747
        %2877 = vmatpush1.bf16.msra.mxu0 %v2746
        %2878 = vmatprep.subr.bf16.mxu0 %v2743
        %2879 = vmatpush1.bf16.msra.mxu0 %v2742
        %2880 = vmatprep.subr.bf16.mxu0 %v2739
        %2881 = vmatpush1.bf16.msra.mxu0 %v2738
        %2882 = vmatprep.subr.bf16.mxu0 %v2799
        %2883 = vmatpush2.bf16.msra.mxu0 %v2798
        %2884 = vmatprep.subr.bf16.mxu0 %v2795
        %2885 = vmatpush2.bf16.msra.mxu0 %v2794
        %2886 = vmatprep.subr.bf16.mxu0 %v2791
        %2887 = vmatpush2.bf16.msra.mxu0 %v2790
        %2888 = vmatprep.subr.bf16.mxu0 %v2787
        %2889 = vmatpush2.bf16.msra.mxu0 %v2786
        %2890 = vmatprep.subr.bf16.mxu0 %v2783
        %2891 = vmatpush2.bf16.msra.mxu0 %v2782
        %2892 = vmatprep.subr.bf16.mxu0 %v2779
        %2893 = vmatpush2.bf16.msra.mxu0 %v2778
        %2894 = vmatprep.subr.bf16.mxu0 %v2775
        %2895 = vmatpush2.bf16.msra.mxu0 %v2774
        %2896 = vmatprep.subr.bf16.mxu0 %v2771
        %2897 = vmatpush2.bf16.msra.mxu0 %v2770
        %2898 = vmatprep.mubr.bf16.mxu0 %v2543
        %2899 = vmatmul.mubr.bf16.gmra.mxu0 %v2536
        %v2900 = vpop.f32.mrf.mxu0
        %v2901 = vadd.f32 0.0, %v2900
        %v2902 = vpop.f32.mrf.mxu0
        %v2903 = vadd.f32 0.0, %v2902
        %v2904 = vpop.f32.mrf.mxu0
        %v2905 = vpop.f32.mrf.mxu0
        %2906 = vdwg.mxu0
        %2907 = vmatprep.subr.bf16.mxu0 %v2769
        %2908 = vmatpush1.bf16.msra.mxu0 %v2768
        %2909 = vmatprep.subr.bf16.mxu0 %v2765
        %2910 = vmatpush1.bf16.msra.mxu0 %v2764
        %2911 = vmatprep.subr.bf16.mxu0 %v2761
        %2912 = vmatpush1.bf16.msra.mxu0 %v2760
        %2913 = vmatprep.subr.bf16.mxu0 %v2757
        %2914 = vmatpush1.bf16.msra.mxu0 %v2756
        %2915 = vmatprep.subr.bf16.mxu0 %v2753
        %2916 = vmatpush1.bf16.msra.mxu0 %v2752
        %2917 = vmatprep.subr.bf16.mxu0 %v2749
        %2918 = vmatpush1.bf16.msra.mxu0 %v2748
        %2919 = vmatprep.subr.bf16.mxu0 %v2745
        %2920 = vmatpush1.bf16.msra.mxu0 %v2744
        %2921 = vmatprep.subr.bf16.mxu0 %v2741
        %2922 = vmatpush1.bf16.msra.mxu0 %v2740
        %2923 = vmatprep.subr.bf16.mxu0 %v2801
        %2924 = vmatpush2.bf16.msra.mxu0 %v2800
        %2925 = vmatprep.subr.bf16.mxu0 %v2797
        %2926 = vmatpush2.bf16.msra.mxu0 %v2796
        %2927 = vmatprep.subr.bf16.mxu0 %v2793
        %2928 = vmatpush2.bf16.msra.mxu0 %v2792
        %2929 = vmatprep.subr.bf16.mxu0 %v2789
        %2930 = vmatpush2.bf16.msra.mxu0 %v2788
        %2931 = vmatprep.subr.bf16.mxu0 %v2785
        %2932 = vmatpush2.bf16.msra.mxu0 %v2784
        %2933 = vmatprep.subr.bf16.mxu0 %v2781
        %2934 = vmatpush2.bf16.msra.mxu0 %v2780
        %2935 = vmatprep.subr.bf16.mxu0 %v2777
        %2936 = vmatpush2.bf16.msra.mxu0 %v2776
        %2937 = vmatprep.subr.bf16.mxu0 %v2773
        %2938 = vmatpush2.bf16.msra.mxu0 %v2772
        %2939 = vmatprep.mubr.bf16.mxu0 %v2543
        %2940 = vmatmul.mubr.bf16.gmra.mxu0 %v2536
        %v2941 = vpop.f32.mrf.mxu0
        %v2942 = vadd.f32 0.0, %v2941
        %v2943 = vpop.f32.mrf.mxu0
        %v2944 = vadd.f32 0.0, %v2943
        %v2945 = vpop.f32.mrf.mxu0
        %v2946 = vpop.f32.mrf.mxu0
        %2947 = vdwg.mxu0
        %v2948 = vtanh.pop %v2901
        %v2949 = vtanh.pop %v2903
        %v2950 = vtanh.pop %v2942
        %v2951 = vtanh.pop %v2944
        %v2956 = vcombine.low %v2948, %v2949
        %v2957 = vcombine.low %v2950, %v2951
        %v2959 = vunpack.c.l.s4 1983009808
        %v2960 = vunpack.c.0.s8 %v2959
        %v2961 = vlaneseq
        %v2962 = vshrl.u32 %v2961, 7
        %v2963 = vsub.s32 %v2960, %v2962
        %v2964 = vrot.slane %v2956, %v2963
        %v2966 = vunpack.c.l.s4 1983009808
        %v2967 = vunpack.c.0.s8 %v2966
        %v2968 = vlaneseq
        %v2969 = vshrl.u32 %v2968, 7
        %v2970 = vsub.s32 %v2967, %v2969
        %v2971 = vrot.slane %v2957, %v2970
        %v2972 = vcombine.low %v2964, %v2971
        %2974 = vst [vmem:[%s615] sm:$0xff] %v2972
        %s2975 = smul.u32 4, %s33
        %p2976 = scmp.lt.s32.totalorder %s2975, 31
        %s2977 = scalar_select %p2976, %s2975, 31
        %s2978 = smul.addr %s2977, 2
        %s2979 = scalar_lea.vmem %s14, %s2978
        // Predicated region
        $region121: #{forward.1} parent=75 // pred_check
          %p2980 = pneg %p350
        $region122: #{forward.1} parent=75 // pred_check_branch
          %2982 = sbr.rel (%p2980) target = $region124
        $region123: #{forward.1} parent=75 // pred_region
          %s2983 = smul.u32 4, %s33
        $region124: #{forward.1} parent=75 // pred_fallthru
          _
      $region76: #{forward.1} parent=5 // pred_fallthru
        _
      %p2984 = scmp.le.s32.totalorder 2, %s28
      // Predicated region
      $region125: #{forward.1} parent=5 // pred_check
        %p2985 = pneg %p2984
      $region126: #{forward.1} parent=5 // pred_check_branch
        %2987 = sbr.rel (%p2985) target = $region128
      $region127: #{forward.1} parent=5 // pred_region
        %s2988 = ssub.s32 %s28, 2
        // Predicated region
        $region129: #{forward.1} parent=127 // pred_check
          %p2989 = pneg %p356
        $region130: #{forward.1} parent=127 // pred_check_branch
          %2991 = sbr.rel (%p2989) target = $region132
        $region131: #{forward.1} parent=127 // pred_region
          %s2992 = smul.u32 4, %s34
          %p2993 = scmp.lt.s32.totalorder %s2992, 31
          %s2994 = scalar_select %p2993, %s2992, 31
          %s2995 = smul.addr %s2994, 2
          %s2996 = scalar_lea.vmem %s14, %s2995
        $region132: #{forward.1} parent=127 // pred_fallthru
          _
      $region128: #{forward.1} parent=5 // pred_fallthru
        _
    $region6: #{forward.1} parent=1 // loop_footer
      %s32 = sadd.s32 1, %s28
    $region7: #{forward.1} parent=1 // loop_footer_branch
      %27 = sbr.rel target = $region3
    $region8: #{forward.1} parent=1 // loop_exit
      _
    %2997 = vsyncpa [#allocation4], 1
    %s2998 = scalar_lea.sflag [#allocation4], 1
    %2999 = vsyncpa %s2998, 1
    %3000 = vsyncpa [#allocation6], 1
    %3001 = vsyncpa [#allocation9], 1
    %3002 = vsyncpa [#allocation12], 1
    %3003 = vsyncpa [#allocation15], 1
    %3004 = vsyncpa [#allocation18], 1
    %s3005 = scalar_lea.sflag [#allocation18], 1
    %3006 = vsyncpa %s3005, 1

</llo_original>
